<compile_context>
chip_gen: v7x
topology: tpu7x:2x2x1
jax: 0.10.0
libtpu: 0.0.40
codegen_flags: <defaults>
</compile_context>

<pallas_src>
import jax
import jax.numpy as jnp
from jax import lax
from jax.experimental import pallas as pl
from jax.experimental.pallas import tpu as pltpu


# Per-branch conv output spatial sizes, in PyTorch concat order:
#   x1 = conv1_1 (4,3), x2 = conv1_2 (3,4), x1_1 (4,2), x1_2 (3,3),
#   x2_1 (3,3), x2_2 (2,4)
_REGION_HW = ((4, 3), (3, 4), (4, 2), (3, 3), (3, 3), (2, 4))
_COUT = 128


# ---------------------------------------------------------------------------
# Fused kernel: whole FeatureExtractor forward for Nb boards per grid step.
#   x_ref   : (R, 16)     R = Nb*16; row = board*16 + h*4 + w, col = cin
#   w1a/w1b : (16, 256)   [conv1_1 | conv1_2] tap-A / tap-B weights
#   w2a/w2b : (128, 256)  [conv2_1 | conv2_2] tap-A / tap-B weights
#   b1, b2  : (1, 256)    [b1_1 | b1_2], [b2_1 | b2_2]
#   out_ref : (6, R, 128) region-major activation slab
# ---------------------------------------------------------------------------
def fused_feature_kernel(x_ref, w1a_ref, w1b_ref, w2a_ref, w2b_ref,
                         b1_ref, b2_ref, out_ref):
    f32 = jnp.float32
    x = x_ref[...]                                   # (R, 16)
    R = x.shape[0]

    def dot(a, w_ref):
        return jnp.dot(a, w_ref[...], preferred_element_type=f32)

    def shift_up(v, k):
        # shifted[r] = v[(r + k) % R]; rows contaminated by the wraparound /
        # board-boundary crossing (w==3 for k=1, h==3 for k=4) are exactly the
        # rows the wrapper never reads.
        return pltpu.roll(v, R - k, axis=0)

    relu = lambda v: jnp.maximum(v, 0.0)

    # ---- layer 1: conv1_1 & conv1_2 fused along N; full-height tap matmuls --
    qa = dot(x, w1a_ref) + b1_ref[...]               # (R, 256)
    qb = dot(x, w1b_ref)                             # (R, 256)
    x1 = relu(qa[:, 0:128] + shift_up(qb[:, 0:128], 1))       # conv1_1 grid
    x2 = relu(qa[:, 128:256] + shift_up(qb[:, 128:256], 4))   # conv1_2 grid

    # ---- layer 2: conv2_1 & conv2_2 fused along N, applied to x1 and x2 -----
    b2 = b2_ref[...]
    pa1 = dot(x1, w2a_ref) + b2                      # (R, 256)
    pb1 = dot(x1, w2b_ref)
    pa2 = dot(x2, w2a_ref) + b2
    pb2 = dot(x2, w2b_ref)

    y11 = relu(pa1[:, 0:128] + shift_up(pb1[:, 0:128], 1))      # conv2_1(x1)
    y12 = relu(pa1[:, 128:256] + shift_up(pb1[:, 128:256], 4))  # conv2_2(x1)
    y21 = relu(pa2[:, 0:128] + shift_up(pb2[:, 0:128], 1))      # conv2_1(x2)
    y22 = relu(pa2[:, 128:256] + shift_up(pb2[:, 128:256], 4))  # conv2_2(x2)

    # ---- six full, aligned, lane-dense region stores ------------------------
    out_ref[0, :, :] = x1
    out_ref[1, :, :] = x2
    out_ref[2, :, :] = y11
    out_ref[3, :, :] = y12
    out_ref[4, :, :] = y21
    out_ref[5, :, :] = y22


# ---------------------------------------------------------------------------
# FeatureExtractor forward
# ---------------------------------------------------------------------------
def init_params(key):
    """Deterministic synthetic parameters (shapes follow the nn.Module)."""
    ks = jax.random.split(key, 8)

    def mk(k_w, k_b, kh, kw, cin, cout):
        fan_in = kh * kw * cin
        w = jax.random.normal(k_w, (kh * kw * cin, cout), jnp.float32) / jnp.sqrt(fan_in)
        b = 0.01 * jax.random.normal(k_b, (cout,), jnp.float32)
        return w, b

    return {
        "conv1_1": mk(ks[0], ks[1], 1, 2, 16, 128),   # torch weight (128,16,1,2)
        "conv1_2": mk(ks[2], ks[3], 2, 1, 16, 128),   # torch weight (128,16,2,1)
        "conv2_1": mk(ks[4], ks[5], 1, 2, 128, 128),  # torch weight (128,128,1,2)
        "conv2_2": mk(ks[6], ks[7], 2, 1, 128, 128),  # torch weight (128,128,2,1)
    }


def _pick_boards_per_step(batch):
    # 16 boards -> M = 256 rows per matmul (saturates the v6e/v7x MXU M dim)
    # while per-step VMEM stays ~2 MB << the 32 MiB scoped default (v7x-safe).
    return max(1, min(16, batch))


@jax.jit
def feature_extractor_forward(x_nchw, params):
    B, C, H, W = x_nchw.shape
    assert (C, H, W) == (16, 4, 4), (C, H, W)

    w11, b11 = params["conv1_1"]
    w12, b12 = params["conv1_2"]
    w21, b21 = params["conv2_1"]
    w22, b22 = params["conv2_2"]

    # Fuse sibling convs along the output-channel (lane) dim: N = 256.
    w1a = jnp.concatenate([w11[0:16], w12[0:16]], axis=1)        # (16, 256) tap A
    w1b = jnp.concatenate([w11[16:32], w12[16:32]], axis=1)      # (16, 256) tap B
    w2a = jnp.concatenate([w21[0:128], w22[0:128]], axis=1)      # (128, 256)
    w2b = jnp.concatenate([w21[128:256], w22[128:256]], axis=1)  # (128, 256)
    b1 = jnp.concatenate([b11, b12]).reshape(1, 256)
    b2 = jnp.concatenate([b21, b22]).reshape(1, 256)

    # Rows = board-major flattened positions (h*4 + w), lanes = input channel.
    x_rows = jnp.transpose(x_nchw.astype(jnp.float32).reshape(B, 16, 16),
                           (0, 2, 1))                            # (B, 16, 16)

    nb = _pick_boards_per_step(B)
    bp = ((B + nb - 1) // nb) * nb                               # padded batch
    if bp != B:
        x_rows = jnp.pad(x_rows, ((0, bp - B), (0, 0), (0, 0)))
    x_flat = x_rows.reshape(bp * 16, 16)

    rows = nb * 16
    const = lambda i: (0, 0)   # weights / biases stay resident in VMEM

    slab = pl.pallas_call(
        fused_feature_kernel,
        out_shape=jax.ShapeDtypeStruct((6, bp * 16, _COUT), jnp.float32),
        grid=(bp // nb,),
        in_specs=[
            pl.BlockSpec((rows, 16), lambda i: (i, 0)),
            pl.BlockSpec((16, 256), const),
            pl.BlockSpec((16, 256), const),
            pl.BlockSpec((128, 256), const),
            pl.BlockSpec((128, 256), const),
            pl.BlockSpec((1, 256), const),
            pl.BlockSpec((1, 256), const),
        ],
        out_specs=pl.BlockSpec((6, rows, _COUT), lambda i: (0, i, 0)),
        compiler_params=pltpu.CompilerParams(
            dimension_semantics=("parallel",)),   # shard batch steps over TCs
    )(x_flat, w1a, w1b, w2a, w2b, b1, b2)

    # Slab -> PyTorch NCHW-flatten + concat via six slice/transpose copies.
    slab = slab.reshape(6, bp, 4, 4, _COUT)
    pieces = []
    for k, (h_out, w_out) in enumerate(_REGION_HW):
        r = slab[k, :B, :h_out, :w_out, :]        # (B, H_out, W_out, 128)
        r = jnp.transpose(r, (0, 3, 1, 2))        # (B, 128, H_out, W_out)
        pieces.append(r.reshape(B, _COUT * h_out * w_out))
    return jnp.concatenate(pieces, axis=1)        # (B, 7424)


# ---------------------------------------------------------------------------
# Pure-JAX reference (lax.conv at HIGHEST precision) for correctness checking
# ---------------------------------------------------------------------------
def _conv_relu_ref(x_nhwc, w_mat, bias, kh, kw):
    cin = x_nhwc.shape[-1]
    cout = w_mat.shape[-1]
    w_hwio = w_mat.reshape(kh, kw, cin, cout)
    y = lax.conv_general_dilated(
        x_nhwc, w_hwio, window_strides=(1, 1), padding="VALID",
        dimension_numbers=("NHWC", "HWIO", "NHWC"),
        precision=lax.Precision.HIGHEST)
    return jnp.maximum(y + bias, 0.0)


def _nhwc_to_nchw_flat(x_nhwc):
    B = x_nhwc.shape[0]
    return jnp.transpose(x_nhwc, (0, 3, 1, 2)).reshape(B, -1)


def feature_extractor_ref(x_nchw, params):
    x = jnp.transpose(x_nchw, (0, 2, 3, 1)).astype(jnp.float32)
    w11, b11 = params["conv1_1"]
    w12, b12 = params["conv1_2"]
    w21, b21 = params["conv2_1"]
    w22, b22 = params["conv2_2"]
    x1 = _conv_relu_ref(x, w11, b11, 1, 2)
    x2 = _conv_relu_ref(x, w12, b12, 2, 1)
    x1_1 = _conv_relu_ref(x1, w21, b21, 1, 2)
    x1_2 = _conv_relu_ref(x1, w22, b22, 2, 1)
    x2_1 = _conv_relu_ref(x2, w21, b21, 1, 2)
    x2_2 = _conv_relu_ref(x2, w22, b22, 2, 1)
    return jnp.concatenate(
        [_nhwc_to_nchw_flat(t) for t in (x1, x2, x1_1, x1_2, x2_1, x2_2)], axis=1)


if __name__ == "__main__":
    key = jax.random.PRNGKey(0)
    k_p, k_x = jax.random.split(key)
    params = init_params(k_p)

    # 2048 boards: 16 one-hot channels, 4x4 board (NCHW like PyTorch).
    # B=24 exercises both batching (Nb=16) and the pad-to-multiple path.
    B = 24
    x = jax.random.normal(k_x, (B, 16, 4, 4), jnp.float32)

    out = jax.block_until_ready(feature_extractor_forward(x, params))
    assert out.shape == (B, 7424), out.shape

    ref = jax.block_until_ready(feature_extractor_ref(x, params))
    max_diff = float(jnp.max(jnp.abs(out - ref)))
    assert jnp.allclose(out, ref, atol=3e-2, rtol=3e-2), (
        f"mismatch vs reference, max|diff|={max_diff}")

    print("KERNEL_OK")
</pallas_src>

<mosaic_0001>
module attributes {stable_mosaic.version = 11 : i64} {
  func.func @fused_feature_kernel(%arg0: i32, %arg1: memref<256x16xf32, #tpu.memory_space<vmem>>, %arg2: memref<16x256xf32, #tpu.memory_space<vmem>>, %arg3: memref<16x256xf32, #tpu.memory_space<vmem>>, %arg4: memref<128x256xf32, #tpu.memory_space<vmem>>, %arg5: memref<128x256xf32, #tpu.memory_space<vmem>>, %arg6: memref<1x256xf32, #tpu.memory_space<vmem>>, %arg7: memref<1x256xf32, #tpu.memory_space<vmem>>, %arg8: memref<6x256x128xf32, #tpu.memory_space<vmem>>) attributes {dimension_semantics = [#tpu.dimension_semantics<parallel>], iteration_bounds = array<i64: 2>, scalar_prefetch = 0 : i64, scratch_operands = 0 : i64, tpu.core_type = #tpu.core_type<tc>, window_params = [{transform_indices = @transform_0, window_bounds = array<i64: 256, 16>}, {pipeline_mode = #tpu.pipeline_mode<synchronous>, transform_indices = @transform_1, window_bounds = array<i64: 16, 256>}, {pipeline_mode = #tpu.pipeline_mode<synchronous>, transform_indices = @transform_2, window_bounds = array<i64: 16, 256>}, {pipeline_mode = #tpu.pipeline_mode<synchronous>, transform_indices = @transform_3, window_bounds = array<i64: 128, 256>}, {pipeline_mode = #tpu.pipeline_mode<synchronous>, transform_indices = @transform_4, window_bounds = array<i64: 128, 256>}, {pipeline_mode = #tpu.pipeline_mode<synchronous>, transform_indices = @transform_5, window_bounds = array<i64: 1, 256>}, {pipeline_mode = #tpu.pipeline_mode<synchronous>, transform_indices = @transform_6, window_bounds = array<i64: 1, 256>}, {transform_indices = @transform_7, window_bounds = array<i64: 6, 256, 128>}]} {
    %c0 = arith.constant 0 : index
    %c0_0 = arith.constant 0 : index
    %0 = vector.load %arg1[%c0, %c0_0] : memref<256x16xf32, #tpu.memory_space<vmem>>, vector<256x16xf32>
    %c0_1 = arith.constant 0 : index
    %c0_2 = arith.constant 0 : index
    %1 = vector.load %arg2[%c0_1, %c0_2] : memref<16x256xf32, #tpu.memory_space<vmem>>, vector<16x256xf32>
    %cst = arith.constant dense<0.000000e+00> : vector<256x256xf32>
    %2 = tpu.matmul %0, %1, %cst {dimension_numbers = #tpu.dot_dimension_numbers<[1], [0], [0], [1], [0, 0, 1, 1], [], []>} : vector<256x16xf32>, vector<16x256xf32>, vector<256x256xf32> -> vector<256x256xf32>
    %c0_3 = arith.constant 0 : index
    %c0_4 = arith.constant 0 : index
    %3 = vector.load %arg6[%c0_3, %c0_4] : memref<1x256xf32, #tpu.memory_space<vmem>>, vector<1x256xf32>
    %4 = vector.broadcast %3 : vector<1x256xf32> to vector<256x256xf32>
    %5 = arith.addf %2, %4 : vector<256x256xf32>
    %c0_5 = arith.constant 0 : index
    %c0_6 = arith.constant 0 : index
    %6 = vector.load %arg3[%c0_5, %c0_6] : memref<16x256xf32, #tpu.memory_space<vmem>>, vector<16x256xf32>
    %cst_7 = arith.constant dense<0.000000e+00> : vector<256x256xf32>
    %7 = tpu.matmul %0, %6, %cst_7 {dimension_numbers = #tpu.dot_dimension_numbers<[1], [0], [0], [1], [0, 0, 1, 1], [], []>} : vector<256x16xf32>, vector<16x256xf32>, vector<256x256xf32> -> vector<256x256xf32>
    %8 = vector.extract_strided_slice %5 {offsets = [0, 0], sizes = [256, 128], strides = [1, 1]} : vector<256x256xf32> to vector<256x128xf32>
    %9 = vector.extract_strided_slice %7 {offsets = [0, 0], sizes = [256, 128], strides = [1, 1]} : vector<256x256xf32> to vector<256x128xf32>
    %c255_i32 = arith.constant 255 : i32
    %10 = tpu.dynamic_rotate %9 by %c255_i32 dim 0 : vector<256x128xf32>, i32 -> vector<256x128xf32>
    %11 = arith.addf %8, %10 : vector<256x128xf32>
    %cst_8 = arith.constant 0.000000e+00 : f32
    %12 = vector.broadcast %cst_8 : f32 to vector<256x128xf32>
    %13 = arith.maximumf %11, %12 : vector<256x128xf32>
    %14 = vector.extract_strided_slice %5 {offsets = [0, 128], sizes = [256, 128], strides = [1, 1]} : vector<256x256xf32> to vector<256x128xf32>
    %15 = vector.extract_strided_slice %7 {offsets = [0, 128], sizes = [256, 128], strides = [1, 1]} : vector<256x256xf32> to vector<256x128xf32>
    %c252_i32 = arith.constant 252 : i32
    %16 = tpu.dynamic_rotate %15 by %c252_i32 dim 0 : vector<256x128xf32>, i32 -> vector<256x128xf32>
    %17 = arith.addf %14, %16 : vector<256x128xf32>
    %cst_9 = arith.constant 0.000000e+00 : f32
    %18 = vector.broadcast %cst_9 : f32 to vector<256x128xf32>
    %19 = arith.maximumf %17, %18 : vector<256x128xf32>
    %c0_10 = arith.constant 0 : index
    %c0_11 = arith.constant 0 : index
    %20 = vector.load %arg7[%c0_10, %c0_11] : memref<1x256xf32, #tpu.memory_space<vmem>>, vector<1x256xf32>
    %c0_12 = arith.constant 0 : index
    %c0_13 = arith.constant 0 : index
    %21 = vector.load %arg4[%c0_12, %c0_13] : memref<128x256xf32, #tpu.memory_space<vmem>>, vector<128x256xf32>
    %cst_14 = arith.constant dense<0.000000e+00> : vector<256x256xf32>
    %22 = tpu.matmul %13, %21, %cst_14 {dimension_numbers = #tpu.dot_dimension_numbers<[1], [0], [0], [1], [0, 0, 1, 1], [], []>} : vector<256x128xf32>, vector<128x256xf32>, vector<256x256xf32> -> vector<256x256xf32>
    %23 = vector.broadcast %20 : vector<1x256xf32> to vector<256x256xf32>
    %24 = arith.addf %22, %23 : vector<256x256xf32>
    %c0_15 = arith.constant 0 : index
    %c0_16 = arith.constant 0 : index
    %25 = vector.load %arg5[%c0_15, %c0_16] : memref<128x256xf32, #tpu.memory_space<vmem>>, vector<128x256xf32>
    %cst_17 = arith.constant dense<0.000000e+00> : vector<256x256xf32>
    %26 = tpu.matmul %13, %25, %cst_17 {dimension_numbers = #tpu.dot_dimension_numbers<[1], [0], [0], [1], [0, 0, 1, 1], [], []>} : vector<256x128xf32>, vector<128x256xf32>, vector<256x256xf32> -> vector<256x256xf32>
    %c0_18 = arith.constant 0 : index
    %c0_19 = arith.constant 0 : index
    %27 = vector.load %arg4[%c0_18, %c0_19] : memref<128x256xf32, #tpu.memory_space<vmem>>, vector<128x256xf32>
    %cst_20 = arith.constant dense<0.000000e+00> : vector<256x256xf32>
    %28 = tpu.matmul %19, %27, %cst_20 {dimension_numbers = #tpu.dot_dimension_numbers<[1], [0], [0], [1], [0, 0, 1, 1], [], []>} : vector<256x128xf32>, vector<128x256xf32>, vector<256x256xf32> -> vector<256x256xf32>
    %29 = vector.broadcast %20 : vector<1x256xf32> to vector<256x256xf32>
    %30 = arith.addf %28, %29 : vector<256x256xf32>
    %c0_21 = arith.constant 0 : index
    %c0_22 = arith.constant 0 : index
    %31 = vector.load %arg5[%c0_21, %c0_22] : memref<128x256xf32, #tpu.memory_space<vmem>>, vector<128x256xf32>
    %cst_23 = arith.constant dense<0.000000e+00> : vector<256x256xf32>
    %32 = tpu.matmul %19, %31, %cst_23 {dimension_numbers = #tpu.dot_dimension_numbers<[1], [0], [0], [1], [0, 0, 1, 1], [], []>} : vector<256x128xf32>, vector<128x256xf32>, vector<256x256xf32> -> vector<256x256xf32>
    %33 = vector.extract_strided_slice %24 {offsets = [0, 0], sizes = [256, 128], strides = [1, 1]} : vector<256x256xf32> to vector<256x128xf32>
    %34 = vector.extract_strided_slice %26 {offsets = [0, 0], sizes = [256, 128], strides = [1, 1]} : vector<256x256xf32> to vector<256x128xf32>
    %c255_i32_24 = arith.constant 255 : i32
    %35 = tpu.dynamic_rotate %34 by %c255_i32_24 dim 0 : vector<256x128xf32>, i32 -> vector<256x128xf32>
    %36 = arith.addf %33, %35 : vector<256x128xf32>
    %cst_25 = arith.constant 0.000000e+00 : f32
    %37 = vector.broadcast %cst_25 : f32 to vector<256x128xf32>
    %38 = arith.maximumf %36, %37 : vector<256x128xf32>
    %39 = vector.extract_strided_slice %24 {offsets = [0, 128], sizes = [256, 128], strides = [1, 1]} : vector<256x256xf32> to vector<256x128xf32>
    %40 = vector.extract_strided_slice %26 {offsets = [0, 128], sizes = [256, 128], strides = [1, 1]} : vector<256x256xf32> to vector<256x128xf32>
    %c252_i32_26 = arith.constant 252 : i32
    %41 = tpu.dynamic_rotate %40 by %c252_i32_26 dim 0 : vector<256x128xf32>, i32 -> vector<256x128xf32>
    %42 = arith.addf %39, %41 : vector<256x128xf32>
    %cst_27 = arith.constant 0.000000e+00 : f32
    %43 = vector.broadcast %cst_27 : f32 to vector<256x128xf32>
    %44 = arith.maximumf %42, %43 : vector<256x128xf32>
    %45 = vector.extract_strided_slice %30 {offsets = [0, 0], sizes = [256, 128], strides = [1, 1]} : vector<256x256xf32> to vector<256x128xf32>
    %46 = vector.extract_strided_slice %32 {offsets = [0, 0], sizes = [256, 128], strides = [1, 1]} : vector<256x256xf32> to vector<256x128xf32>
    %c255_i32_28 = arith.constant 255 : i32
    %47 = tpu.dynamic_rotate %46 by %c255_i32_28 dim 0 : vector<256x128xf32>, i32 -> vector<256x128xf32>
    %48 = arith.addf %45, %47 : vector<256x128xf32>
    %cst_29 = arith.constant 0.000000e+00 : f32
    %49 = vector.broadcast %cst_29 : f32 to vector<256x128xf32>
    %50 = arith.maximumf %48, %49 : vector<256x128xf32>
    %51 = vector.extract_strided_slice %30 {offsets = [0, 128], sizes = [256, 128], strides = [1, 1]} : vector<256x256xf32> to vector<256x128xf32>
    %52 = vector.extract_strided_slice %32 {offsets = [0, 128], sizes = [256, 128], strides = [1, 1]} : vector<256x256xf32> to vector<256x128xf32>
    %c252_i32_30 = arith.constant 252 : i32
    %53 = tpu.dynamic_rotate %52 by %c252_i32_30 dim 0 : vector<256x128xf32>, i32 -> vector<256x128xf32>
    %54 = arith.addf %51, %53 : vector<256x128xf32>
    %cst_31 = arith.constant 0.000000e+00 : f32
    %55 = vector.broadcast %cst_31 : f32 to vector<256x128xf32>
    %56 = arith.maximumf %54, %55 : vector<256x128xf32>
    %c0_32 = arith.constant 0 : index
    %c0_33 = arith.constant 0 : index
    %c0_34 = arith.constant 0 : index
    %57 = vector.load %arg8[%c0_32, %c0_33, %c0_34] : memref<6x256x128xf32, #tpu.memory_space<vmem>>, vector<1x256x128xf32>
    %58 = vector.shape_cast %57 : vector<1x256x128xf32> to vector<256x128xf32>
    %59 = vector.shape_cast %13 : vector<256x128xf32> to vector<1x256x128xf32>
    tpu.vector_store %arg8[%c0_32, %c0_33, %c0_34], %59 {strides = array<i32>} : memref<6x256x128xf32, #tpu.memory_space<vmem>>, vector<1x256x128xf32>,
    %c1 = arith.constant 1 : index
    %c0_35 = arith.constant 0 : index
    %c0_36 = arith.constant 0 : index
    %60 = vector.load %arg8[%c1, %c0_35, %c0_36] : memref<6x256x128xf32, #tpu.memory_space<vmem>>, vector<1x256x128xf32>
    %61 = vector.shape_cast %60 : vector<1x256x128xf32> to vector<256x128xf32>
    %62 = vector.shape_cast %19 : vector<256x128xf32> to vector<1x256x128xf32>
    tpu.vector_store %arg8[%c1, %c0_35, %c0_36], %62 {strides = array<i32>} : memref<6x256x128xf32, #tpu.memory_space<vmem>>, vector<1x256x128xf32>,
    %c2 = arith.constant 2 : index
    %c0_37 = arith.constant 0 : index
    %c0_38 = arith.constant 0 : index
    %63 = vector.load %arg8[%c2, %c0_37, %c0_38] : memref<6x256x128xf32, #tpu.memory_space<vmem>>, vector<1x256x128xf32>
    %64 = vector.shape_cast %63 : vector<1x256x128xf32> to vector<256x128xf32>
    %65 = vector.shape_cast %38 : vector<256x128xf32> to vector<1x256x128xf32>
    tpu.vector_store %arg8[%c2, %c0_37, %c0_38], %65 {strides = array<i32>} : memref<6x256x128xf32, #tpu.memory_space<vmem>>, vector<1x256x128xf32>,
    %c3 = arith.constant 3 : index
    %c0_39 = arith.constant 0 : index
    %c0_40 = arith.constant 0 : index
    %66 = vector.load %arg8[%c3, %c0_39, %c0_40] : memref<6x256x128xf32, #tpu.memory_space<vmem>>, vector<1x256x128xf32>
    %67 = vector.shape_cast %66 : vector<1x256x128xf32> to vector<256x128xf32>
    %68 = vector.shape_cast %44 : vector<256x128xf32> to vector<1x256x128xf32>
    tpu.vector_store %arg8[%c3, %c0_39, %c0_40], %68 {strides = array<i32>} : memref<6x256x128xf32, #tpu.memory_space<vmem>>, vector<1x256x128xf32>,
    %c4 = arith.constant 4 : index
    %c0_41 = arith.constant 0 : index
    %c0_42 = arith.constant 0 : index
    %69 = vector.load %arg8[%c4, %c0_41, %c0_42] : memref<6x256x128xf32, #tpu.memory_space<vmem>>, vector<1x256x128xf32>
    %70 = vector.shape_cast %69 : vector<1x256x128xf32> to vector<256x128xf32>
    %71 = vector.shape_cast %50 : vector<256x128xf32> to vector<1x256x128xf32>
    tpu.vector_store %arg8[%c4, %c0_41, %c0_42], %71 {strides = array<i32>} : memref<6x256x128xf32, #tpu.memory_space<vmem>>, vector<1x256x128xf32>,
    %c5 = arith.constant 5 : index
    %c0_43 = arith.constant 0 : index
    %c0_44 = arith.constant 0 : index
    %72 = vector.load %arg8[%c5, %c0_43, %c0_44] : memref<6x256x128xf32, #tpu.memory_space<vmem>>, vector<1x256x128xf32>
    %73 = vector.shape_cast %72 : vector<1x256x128xf32> to vector<256x128xf32>
    %74 = vector.shape_cast %56 : vector<256x128xf32> to vector<1x256x128xf32>
    tpu.vector_store %arg8[%c5, %c0_43, %c0_44], %74 {strides = array<i32>} : memref<6x256x128xf32, #tpu.memory_space<vmem>>, vector<1x256x128xf32>,
    return
  }
  func.func @transform_0(%arg0: i32) -> (i32, i32) {
    %c0_i32 = arith.constant 0 : i32
    %c0_i32_0 = arith.constant 0 : i32
    return %arg0, %c0_i32 : i32, i32
  }
  func.func @transform_1(%arg0: i32) -> (i32, i32) {
    %c0_i32 = arith.constant 0 : i32
    %c0_i32_0 = arith.constant 0 : i32
    %c0_i32_1 = arith.constant 0 : i32
    return %c0_i32, %c0_i32_0 : i32, i32
  }
  func.func @transform_2(%arg0: i32) -> (i32, i32) {
    %c0_i32 = arith.constant 0 : i32
    %c0_i32_0 = arith.constant 0 : i32
    %c0_i32_1 = arith.constant 0 : i32
    return %c0_i32, %c0_i32_0 : i32, i32
  }
  func.func @transform_3(%arg0: i32) -> (i32, i32) {
    %c0_i32 = arith.constant 0 : i32
    %c0_i32_0 = arith.constant 0 : i32
    %c0_i32_1 = arith.constant 0 : i32
    return %c0_i32, %c0_i32_0 : i32, i32
  }
  func.func @transform_4(%arg0: i32) -> (i32, i32) {
    %c0_i32 = arith.constant 0 : i32
    %c0_i32_0 = arith.constant 0 : i32
    %c0_i32_1 = arith.constant 0 : i32
    return %c0_i32, %c0_i32_0 : i32, i32
  }
  func.func @transform_5(%arg0: i32) -> (i32, i32) {
    %c0_i32 = arith.constant 0 : i32
    %c0_i32_0 = arith.constant 0 : i32
    %c0_i32_1 = arith.constant 0 : i32
    return %c0_i32, %c0_i32_0 : i32, i32
  }
  func.func @transform_6(%arg0: i32) -> (i32, i32) {
    %c0_i32 = arith.constant 0 : i32
    %c0_i32_0 = arith.constant 0 : i32
    %c0_i32_1 = arith.constant 0 : i32
    return %c0_i32, %c0_i32_0 : i32, i32
  }
  func.func @transform_7(%arg0: i32) -> (i32, i32, i32) {
    %c0_i32 = arith.constant 0 : i32
    %c0_i32_0 = arith.constant 0 : i32
    %c0_i32_1 = arith.constant 0 : i32
    return %c0_i32, %arg0, %c0_i32_0 : i32, i32, i32
  }
}

</mosaic_0001>

<llo_original>
// kernel: feature_extractor_forward.1
$region0: #{feature_extractor_forward.1}
  #allocation0 [shape = 'u32[]', space=smem, size = 0x4, offset = 0x4, fixed_abs, tag = 'smem constant byte address 0x4 - core index']
  #allocation1 [shape = 'u32[144,128]{1,0:T(1,128)}', space=vmem, size = 0x12000, scoped, tag = 'internal scratch']
  %s0 = inlined_call_operand.vmem [shape: f32[512,16], index: 0, kind: input, shape index: {}]
  %s1 = inlined_call_operand.vmem [shape: f32[16,256], index: 1, kind: input, shape index: {}]
  %s2 = inlined_call_operand.vmem [shape: f32[16,256], index: 2, kind: input, shape index: {}]
  %s3 = inlined_call_operand.vmem [shape: f32[128,256], index: 3, kind: input, shape index: {}]
  %s4 = inlined_call_operand.vmem [shape: f32[128,256], index: 4, kind: input, shape index: {}]
  %s5 = inlined_call_operand.vmem [shape: f32[1,256], index: 5, kind: input, shape index: {}]
  %s6 = inlined_call_operand.vmem [shape: f32[1,256], index: 6, kind: input, shape index: {}]
  %s7 = inlined_call_operand.vmem [shape: f32[6,512,128], index: 7, kind: output, shape index: {}]
  %s8 = sld [smem:[#allocation0]]
  $region95: #{feature_extractor_forward.1} parent=0
    _
  %s10 = ssub.s32 1, %s8
  %s11 = scalar_select 0, %s10, %s8
  $region1: #{feature_extractor_forward.1} parent=0
    #allocation2 [shape = 'u8[1572864]{0}', space=vmem, size = 0x180000, scoped, tag = 'output window, operand 0']
    loop: start=0, step=1, limit=4
    $region2: #{feature_extractor_forward.1} parent=1 // loop_pre_header
      _
    $region3: #{feature_extractor_forward.1} parent=1 // loop_header
      %s13 = sphi 0, %s17
      %p14 = scmp.ge.s32.totalorder %s13, 4
      %s23 = sphi 0, %s25
      %s26 = sphi 0, %s23
      %s27 = sphi 0, %s26
      %s43 = sphi 0, %s27
      %s47 = sphi 0, %s47
      %s49 = sphi 0, %s47
      %s50 = sphi 0, %s49
      %s64 = sphi 0, %s50
      %s68 = sphi 0, %s68
      %s70 = sphi 0, %s68
      %s71 = sphi 0, %s70
      %s85 = sphi 0, %s71
      %s89 = sphi 0, %s89
      %s91 = sphi 0, %s89
      %s92 = sphi 0, %s91
      %s106 = sphi 0, %s92
      %s110 = sphi 0, %s110
      %s112 = sphi 0, %s110
      %s113 = sphi 0, %s112
      %s127 = sphi 0, %s113
      %s131 = sphi 0, %s131
      %s133 = sphi 0, %s131
      %s134 = sphi 0, %s133
      %s148 = sphi 0, %s134
      %s152 = sphi 0, %s152
      %s154 = sphi 0, %s152
      %s155 = sphi 0, %s154
      %s169 = sphi 0, %s155
      %s175 = sphi 0, %s177
      %s178 = sphi 0, %s175
      %s179 = sphi 0, %s178
      %s195 = sphi 0, %s179
    $region4: #{feature_extractor_forward.1} parent=1 // loop_header_branch
      %16 = sbr.rel (%p14) target = $region8
    $region5: #{feature_extractor_forward.1} parent=1 // loop_body
      %s18 = ssub.s32 %s13, 1
      %s19 = ssub.s32 %s13, 2
      %s20 = sadd.s32 %s13, 1
      %s21 = ssub.s32 %s13, %s20
      %p22 = scmp.eq.s32.totalorder %s21, 0
      %s24 = sadd.s32 %s23, 1
      %s25 = scalar_select %p22, %s23, %s24
      %p28 = pneg %p22
      %p29 = scmp.eq.s32.totalorder %s13, 1
      %p30 = por %p28, %p29
      %p31 = scmp.ne.s32.totalorder %s23, %s26
      %p32 = scmp.eq.s32.totalorder %s13, 0
      %p33 = por %p31, %p32
      %p34 = scmp.ne.s32.totalorder %s23, %s26
      %p35 = scmp.eq.s32.totalorder %s18, 1
      %p36 = por %p34, %p35
      %p37 = scmp.ne.s32.totalorder %s26, %s27
      %p38 = scmp.eq.s32.totalorder %s18, 0
      %p39 = por %p37, %p38
      %p40 = scmp.ne.s32.totalorder %s26, %s27
      %p41 = scmp.eq.s32.totalorder %s19, 1
      %p42 = por %p40, %p41
      %p44 = scmp.ne.s32.totalorder %s27, %s43
      %p45 = scmp.eq.s32.totalorder %s19, 0
      %p46 = por %p44, %p45
      %s48 = sadd.s32 %s47, 1
      %p51 = scmp.eq.s32.totalorder %s13, 1
      %p52 = scmp.ne.s32.totalorder %s47, %s49
      %p53 = scmp.eq.s32.totalorder %s13, 0
      %p54 = por %p52, %p53
      %p55 = scmp.ne.s32.totalorder %s47, %s49
      %p56 = scmp.eq.s32.totalorder %s18, 1
      %p57 = por %p55, %p56
      %p58 = scmp.ne.s32.totalorder %s49, %s50
      %p59 = scmp.eq.s32.totalorder %s18, 0
      %p60 = por %p58, %p59
      %p61 = scmp.ne.s32.totalorder %s49, %s50
      %p62 = scmp.eq.s32.totalorder %s19, 1
      %p63 = por %p61, %p62
      %p65 = scmp.ne.s32.totalorder %s50, %s64
      %p66 = scmp.eq.s32.totalorder %s19, 0
      %p67 = por %p65, %p66
      %s69 = sadd.s32 %s68, 1
      %p72 = scmp.eq.s32.totalorder %s13, 1
      %p73 = scmp.ne.s32.totalorder %s68, %s70
      %p74 = scmp.eq.s32.totalorder %s13, 0
      %p75 = por %p73, %p74
      %p76 = scmp.ne.s32.totalorder %s68, %s70
      %p77 = scmp.eq.s32.totalorder %s18, 1
      %p78 = por %p76, %p77
      %p79 = scmp.ne.s32.totalorder %s70, %s71
      %p80 = scmp.eq.s32.totalorder %s18, 0
      %p81 = por %p79, %p80
      %p82 = scmp.ne.s32.totalorder %s70, %s71
      %p83 = scmp.eq.s32.totalorder %s19, 1
      %p84 = por %p82, %p83
      %p86 = scmp.ne.s32.totalorder %s71, %s85
      %p87 = scmp.eq.s32.totalorder %s19, 0
      %p88 = por %p86, %p87
      %s90 = sadd.s32 %s89, 1
      %p93 = scmp.eq.s32.totalorder %s13, 1
      %p94 = scmp.ne.s32.totalorder %s89, %s91
      %p95 = scmp.eq.s32.totalorder %s13, 0
      %p96 = por %p94, %p95
      %p97 = scmp.ne.s32.totalorder %s89, %s91
      %p98 = scmp.eq.s32.totalorder %s18, 1
      %p99 = por %p97, %p98
      %p100 = scmp.ne.s32.totalorder %s91, %s92
      %p101 = scmp.eq.s32.totalorder %s18, 0
      %p102 = por %p100, %p101
      %p103 = scmp.ne.s32.totalorder %s91, %s92
      %p104 = scmp.eq.s32.totalorder %s19, 1
      %p105 = por %p103, %p104
      %p107 = scmp.ne.s32.totalorder %s92, %s106
      %p108 = scmp.eq.s32.totalorder %s19, 0
      %p109 = por %p107, %p108
      %s111 = sadd.s32 %s110, 1
      %p114 = scmp.eq.s32.totalorder %s13, 1
      %p115 = scmp.ne.s32.totalorder %s110, %s112
      %p116 = scmp.eq.s32.totalorder %s13, 0
      %p117 = por %p115, %p116
      %p118 = scmp.ne.s32.totalorder %s110, %s112
      %p119 = scmp.eq.s32.totalorder %s18, 1
      %p120 = por %p118, %p119
      %p121 = scmp.ne.s32.totalorder %s112, %s113
      %p122 = scmp.eq.s32.totalorder %s18, 0
      %p123 = por %p121, %p122
      %p124 = scmp.ne.s32.totalorder %s112, %s113
      %p125 = scmp.eq.s32.totalorder %s19, 1
      %p126 = por %p124, %p125
      %p128 = scmp.ne.s32.totalorder %s113, %s127
      %p129 = scmp.eq.s32.totalorder %s19, 0
      %p130 = por %p128, %p129
      %s132 = sadd.s32 %s131, 1
      %p135 = scmp.eq.s32.totalorder %s13, 1
      %p136 = scmp.ne.s32.totalorder %s131, %s133
      %p137 = scmp.eq.s32.totalorder %s13, 0
      %p138 = por %p136, %p137
      %p139 = scmp.ne.s32.totalorder %s131, %s133
      %p140 = scmp.eq.s32.totalorder %s18, 1
      %p141 = por %p139, %p140
      %p142 = scmp.ne.s32.totalorder %s133, %s134
      %p143 = scmp.eq.s32.totalorder %s18, 0
      %p144 = por %p142, %p143
      %p145 = scmp.ne.s32.totalorder %s133, %s134
      %p146 = scmp.eq.s32.totalorder %s19, 1
      %p147 = por %p145, %p146
      %p149 = scmp.ne.s32.totalorder %s134, %s148
      %p150 = scmp.eq.s32.totalorder %s19, 0
      %p151 = por %p149, %p150
      %s153 = sadd.s32 %s152, 1
      %p156 = scmp.eq.s32.totalorder %s13, 1
      %p157 = scmp.ne.s32.totalorder %s152, %s154
      %p158 = scmp.eq.s32.totalorder %s13, 0
      %p159 = por %p157, %p158
      %p160 = scmp.ne.s32.totalorder %s152, %s154
      %p161 = scmp.eq.s32.totalorder %s18, 1
      %p162 = por %p160, %p161
      %p163 = scmp.ne.s32.totalorder %s154, %s155
      %p164 = scmp.eq.s32.totalorder %s18, 0
      %p165 = por %p163, %p164
      %p166 = scmp.ne.s32.totalorder %s154, %s155
      %p167 = scmp.eq.s32.totalorder %s19, 1
      %p168 = por %p166, %p167
      %p170 = scmp.ne.s32.totalorder %s155, %s169
      %p171 = scmp.eq.s32.totalorder %s19, 0
      %p172 = por %p170, %p171
      %s173 = ssub.s32 %s13, %s20
      %p174 = scmp.eq.s32.totalorder %s173, 0
      %s176 = sadd.s32 %s175, 1
      %s177 = scalar_select %p174, %s175, %s176
      %p180 = pneg %p174
      %p181 = scmp.eq.s32.totalorder %s13, 1
      %p182 = por %p180, %p181
      %p183 = scmp.ne.s32.totalorder %s175, %s178
      %p184 = scmp.eq.s32.totalorder %s13, 0
      %p185 = por %p183, %p184
      %p186 = scmp.ne.s32.totalorder %s175, %s178
      %p187 = scmp.eq.s32.totalorder %s18, 1
      %p188 = por %p186, %p187
      %p189 = scmp.ne.s32.totalorder %s178, %s179
      %p190 = scmp.eq.s32.totalorder %s18, 0
      %p191 = por %p189, %p190
      %p192 = scmp.ne.s32.totalorder %s178, %s179
      %p193 = scmp.eq.s32.totalorder %s19, 1
      %p194 = por %p192, %p193
      %p196 = scmp.ne.s32.totalorder %s179, %s195
      %p197 = scmp.eq.s32.totalorder %s19, 0
      %p198 = por %p196, %p197
      %p199 = scmp.le.s32.totalorder 1, %s13
      %p200 = scmp.lt.s32.totalorder %s13, 3
      %p201 = pnand %p199, %p200
      %p202 = pneg %p201
      // Predicated region
      $region9: #{feature_extractor_forward.1} parent=5 // pred_check
        _
      $region10: #{feature_extractor_forward.1} parent=5 // pred_check_branch
        %204 = sbr.rel (%p201) target = $region12
      $region11: #{feature_extractor_forward.1} parent=5 // pred_region
        %s205 = ssub.s32 %s13, 1
        // Predicated region
        $region13: #{feature_extractor_forward.1} parent=11 // pred_check
          %p206 = pneg %p60
        $region14: #{feature_extractor_forward.1} parent=11 // pred_check_branch
          %208 = sbr.rel (%p206) target = $region16
        $region15: #{feature_extractor_forward.1} parent=11 // pred_region
          _
        $region16: #{feature_extractor_forward.1} parent=11 // pred_fallthru
          _
        // Predicated region
        $region17: #{feature_extractor_forward.1} parent=11 // pred_check
          %p209 = pneg %p81
        $region18: #{feature_extractor_forward.1} parent=11 // pred_check_branch
          %211 = sbr.rel (%p209) target = $region20
        $region19: #{feature_extractor_forward.1} parent=11 // pred_region
          _
        $region20: #{feature_extractor_forward.1} parent=11 // pred_fallthru
          _
        // Predicated region
        $region21: #{feature_extractor_forward.1} parent=11 // pred_check
          %p212 = pneg %p102
        $region22: #{feature_extractor_forward.1} parent=11 // pred_check_branch
          %214 = sbr.rel (%p212) target = $region24
        $region23: #{feature_extractor_forward.1} parent=11 // pred_region
          _
        $region24: #{feature_extractor_forward.1} parent=11 // pred_fallthru
          _
        // Predicated region
        $region25: #{feature_extractor_forward.1} parent=11 // pred_check
          %p215 = pneg %p123
        $region26: #{feature_extractor_forward.1} parent=11 // pred_check_branch
          %217 = sbr.rel (%p215) target = $region28
        $region27: #{feature_extractor_forward.1} parent=11 // pred_region
          _
        $region28: #{feature_extractor_forward.1} parent=11 // pred_fallthru
          _
        // Predicated region
        $region29: #{feature_extractor_forward.1} parent=11 // pred_check
          %p218 = pneg %p144
        $region30: #{feature_extractor_forward.1} parent=11 // pred_check_branch
          %220 = sbr.rel (%p218) target = $region32
        $region31: #{feature_extractor_forward.1} parent=11 // pred_region
          _
        $region32: #{feature_extractor_forward.1} parent=11 // pred_fallthru
          _
        // Predicated region
        $region33: #{feature_extractor_forward.1} parent=11 // pred_check
          %p221 = pneg %p165
        $region34: #{feature_extractor_forward.1} parent=11 // pred_check_branch
          %223 = sbr.rel (%p221) target = $region36
        $region35: #{feature_extractor_forward.1} parent=11 // pred_region
          _
        $region36: #{feature_extractor_forward.1} parent=11 // pred_fallthru
          _
      $region12: #{feature_extractor_forward.1} parent=5 // pred_fallthru
        _
      %p224 = scmp.lt.s32.totalorder %s13, 2
      // Predicated region
      $region37: #{feature_extractor_forward.1} parent=5 // pred_check
        %p225 = pneg %p224
      $region38: #{feature_extractor_forward.1} parent=5 // pred_check_branch
        %227 = sbr.rel (%p225) target = $region40
      $region39: #{feature_extractor_forward.1} parent=5 // pred_region
        // Predicated region
        $region41: #{feature_extractor_forward.1} parent=39 // pred_check
          %p228 = pneg %p33
        $region42: #{feature_extractor_forward.1} parent=39 // pred_check_branch
          %230 = sbr.rel (%p228) target = $region44
        $region43: #{feature_extractor_forward.1} parent=39 // pred_region
          %s231 = smul.u32 32, %s13
          %p232 = scmp.lt.s32.totalorder %s231, 63
          %s233 = scalar_select %p232, %s231, 63
          %s234 = smul.addr %s233, 8
          %s235 = scalar_lea.vmem %s0, %s234
          %s236 = smul.u32 32, %s13
        $region44: #{feature_extractor_forward.1} parent=39 // pred_fallthru
          _
      $region40: #{feature_extractor_forward.1} parent=5 // pred_fallthru
        _
      %p237 = scmp.le.s32.totalorder 1, %s13
      %p238 = scmp.lt.s32.totalorder %s13, 3
      %p239 = pnand %p237, %p238
      %p240 = pneg %p239
      // Predicated region
      $region45: #{feature_extractor_forward.1} parent=5 // pred_check
        _
      $region46: #{feature_extractor_forward.1} parent=5 // pred_check_branch
        %242 = sbr.rel (%p239) target = $region48
      $region47: #{feature_extractor_forward.1} parent=5 // pred_region
        %s243 = ssub.s32 %s13, 1
        %s244 = smul.u32 32, %s18
        %p245 = scmp.lt.s32.totalorder %s244, 63
        %s246 = scalar_select %p245, %s244, 63
        %s247 = smul.addr %s246, 8
        %s248 = scalar_lea.vmem %s0, %s247
        %p249 = pneg %p39
        %p250 = pneg %p36
        %p251 = pneg %p60
        %p252 = pneg %p57
        %p253 = pneg %p81
        %p254 = pneg %p78
        %p255 = pneg %p102
        %p256 = pneg %p99
        %p257 = pneg %p123
        %p258 = pneg %p120
        %p259 = pneg %p144
        %p260 = pneg %p141
        %p261 = pneg %p165
        %p262 = pneg %p162
        %p263 = pneg %p191
        %p264 = pneg %p188
        %s265 = sand.u32 %s178, 1
        %s266 = sand.u32 %s178, 1
        %s267 = smul.addr %s266, 1536
        %s268 = scalar_lea.vmem [#allocation2], %s267
        %s269 = smul.u32 32, %s18
        %p270 = scmp.lt.s32.totalorder %s269, 63
        %s271 = scalar_select %p270, %s269, 63
        %s272 = smul.addr %s271, 8
        %s273 = scalar_lea.vmem %s0, %s272
        %s274 = smul.u32 32, %s18
        %s275 = smul.u32 32, %s18
        %v276 = vld [vmem:[%s273] sm:$0xff]
        %v277 = vld [vmem:[%s273 + $0x8] sm:$0xff]
        %v278 = vld [vmem:[%s273 + $0x10] sm:$0xff]
        %v279 = vld [vmem:[%s273 + $0x18] sm:$0xff]
        %v280 = vld [vmem:[%s273 + $0x20] sm:$0xff]
        %v281 = vld [vmem:[%s273 + $0x28] sm:$0xff]
        %v282 = vld [vmem:[%s273 + $0x30] sm:$0xff]
        %v283 = vld [vmem:[%s273 + $0x38] sm:$0xff]
        %v284 = vld [vmem:[%s273 + $0x40] sm:$0xff]
        %v285 = vld [vmem:[%s273 + $0x48] sm:$0xff]
        %v286 = vld [vmem:[%s273 + $0x50] sm:$0xff]
        %v287 = vld [vmem:[%s273 + $0x58] sm:$0xff]
        %v288 = vld [vmem:[%s273 + $0x60] sm:$0xff]
        %v289 = vld [vmem:[%s273 + $0x68] sm:$0xff]
        %v290 = vld [vmem:[%s273 + $0x70] sm:$0xff]
        %v291 = vld [vmem:[%s273 + $0x78] sm:$0xff]
        %v292 = vld [vmem:[%s273 + $0x80] sm:$0xff]
        %v293 = vld [vmem:[%s273 + $0x88] sm:$0xff]
        %v294 = vld [vmem:[%s273 + $0x90] sm:$0xff]
        %v295 = vld [vmem:[%s273 + $0x98] sm:$0xff]
        %v296 = vld [vmem:[%s273 + $0xa0] sm:$0xff]
        %v297 = vld [vmem:[%s273 + $0xa8] sm:$0xff]
        %v298 = vld [vmem:[%s273 + $0xb0] sm:$0xff]
        %v299 = vld [vmem:[%s273 + $0xb8] sm:$0xff]
        %v300 = vld [vmem:[%s273 + $0xc0] sm:$0xff]
        %v301 = vld [vmem:[%s273 + $0xc8] sm:$0xff]
        %v302 = vld [vmem:[%s273 + $0xd0] sm:$0xff]
        %v303 = vld [vmem:[%s273 + $0xd8] sm:$0xff]
        %v304 = vld [vmem:[%s273 + $0xe0] sm:$0xff]
        %v305 = vld [vmem:[%s273 + $0xe8] sm:$0xff]
        %v306 = vld [vmem:[%s273 + $0xf0] sm:$0xff]
        %v307 = vld [vmem:[%s273 + $0xf8] sm:$0xff]
        %v308 = vld [vmem:[%s1] sm:$0xff]
        %v309 = vld [vmem:[%s1 + $0x8] sm:$0xff]
        %v310 = vld [vmem:[%s1 + $0x10] sm:$0xff]
        %v311 = vld [vmem:[%s1 + $0x18] sm:$0xff]
        %v312 = vld [vmem:[%s5] sm:$0x3]
        %v314 = vlaneseq
        %v315 = vshrl.u32 %v314, 7
        %v316 = vsub.s32 0, %v315
        %v317 = vrot.slane %v312, %v316
        %v318 = vlaneseq
        %v319 = vshrl.u32 %v318, 7
        %v320 = vsub.s32 1, %v319
        %v321 = vrot.slane %v312, %v320
        %vm324 = vcmask 130048
        %v326 = vsel %vm324, %v276, 0
        %v329 = vsel %vm324, %v277, 0
        %v332 = vsel %vm324, %v278, 0
        %v335 = vsel %vm324, %v279, 0
        %v338 = vsel %vm324, %v280, 0
        %v341 = vsel %vm324, %v281, 0
        %v344 = vsel %vm324, %v282, 0
        %v347 = vsel %vm324, %v283, 0
        %v350 = vsel %vm324, %v284, 0
        %v353 = vsel %vm324, %v285, 0
        %v356 = vsel %vm324, %v286, 0
        %v359 = vsel %vm324, %v287, 0
        %v362 = vsel %vm324, %v288, 0
        %v365 = vsel %vm324, %v289, 0
        %v368 = vsel %vm324, %v290, 0
        %v371 = vsel %vm324, %v291, 0
        %v374 = vsel %vm324, %v292, 0
        %v377 = vsel %vm324, %v293, 0
        %v380 = vsel %vm324, %v294, 0
        %v383 = vsel %vm324, %v295, 0
        %v386 = vsel %vm324, %v296, 0
        %v389 = vsel %vm324, %v297, 0
        %v392 = vsel %vm324, %v298, 0
        %v395 = vsel %vm324, %v299, 0
        %v398 = vsel %vm324, %v300, 0
        %v401 = vsel %vm324, %v301, 0
        %v404 = vsel %vm324, %v302, 0
        %v407 = vsel %vm324, %v303, 0
        %v410 = vsel %vm324, %v304, 0
        %v413 = vsel %vm324, %v305, 0
        %v416 = vsel %vm324, %v306, 0
        %v419 = vsel %vm324, %v307, 0
        %421 = vmatprep.subr.mxu0 %v309
        %422 = vmatpush1.msra.mxu0 %v308
        %423 = vmatprep.subr.mxu0 %v311
        %424 = vmatpush1.msra.mxu0 %v310
        %425 = vmatprep.subr.mxu0 0.0
        %426 = vmatpush1.msra.mxu0 0.0
        %427 = vmatprep.subr.mxu0 0.0
        %428 = vmatpush1.msra.mxu0 0.0
        %429 = vmatprep.subr.mxu0 0.0
        %430 = vmatpush1.msra.mxu0 0.0
        %431 = vmatprep.subr.mxu0 0.0
        %432 = vmatpush1.msra.mxu0 0.0
        %433 = vmatprep.subr.mxu0 0.0
        %434 = vmatpush1.msra.mxu0 0.0
        %435 = vmatprep.subr.mxu0 0.0
        %436 = vmatpush1.msra.mxu0 0.0
        %437 = vmatprep.subr.mxu0 0.0
        %438 = vmatpush1.msra.mxu0 0.0
        %439 = vmatprep.subr.mxu0 0.0
        %440 = vmatpush1.msra.mxu0 0.0
        %441 = vmatprep.subr.mxu0 0.0
        %442 = vmatpush1.msra.mxu0 0.0
        %443 = vmatprep.subr.mxu0 0.0
        %444 = vmatpush1.msra.mxu0 0.0
        %445 = vmatprep.subr.mxu0 0.0
        %446 = vmatpush1.msra.mxu0 0.0
        %447 = vmatprep.subr.mxu0 0.0
        %448 = vmatpush1.msra.mxu0 0.0
        %449 = vmatprep.subr.mxu0 0.0
        %450 = vmatpush1.msra.mxu0 0.0
        %451 = vmatprep.subr.mxu0 0.0
        %452 = vmatpush1.msra.mxu0 0.0
        %453 = vmatprep.subr.mxu0 0.0
        %454 = vmatpush1.msra.mxu0 0.0
        %455 = vmatprep.subr.mxu0 0.0
        %456 = vmatpush1.msra.mxu0 0.0
        %457 = vmatprep.subr.mxu0 0.0
        %458 = vmatpush1.msra.mxu0 0.0
        %459 = vmatprep.subr.mxu0 0.0
        %460 = vmatpush1.msra.mxu0 0.0
        %461 = vmatprep.subr.mxu0 0.0
        %462 = vmatpush1.msra.mxu0 0.0
        %463 = vmatprep.subr.mxu0 0.0
        %464 = vmatpush1.msra.mxu0 0.0
        %465 = vmatprep.subr.mxu0 0.0
        %466 = vmatpush1.msra.mxu0 0.0
        %467 = vmatprep.subr.mxu0 0.0
        %468 = vmatpush1.msra.mxu0 0.0
        %469 = vmatprep.subr.mxu0 0.0
        %470 = vmatpush1.msra.mxu0 0.0
        %471 = vmatprep.subr.mxu0 0.0
        %472 = vmatpush1.msra.mxu0 0.0
        %473 = vmatprep.subr.mxu0 0.0
        %474 = vmatpush1.msra.mxu0 0.0
        %475 = vmatprep.subr.mxu0 0.0
        %476 = vmatpush1.msra.mxu0 0.0
        %477 = vmatprep.subr.mxu0 0.0
        %478 = vmatpush1.msra.mxu0 0.0
        %479 = vmatprep.subr.mxu0 0.0
        %480 = vmatpush1.msra.mxu0 0.0
        %481 = vmatprep.subr.mxu0 0.0
        %482 = vmatpush1.msra.mxu0 0.0
        %483 = vmatprep.subr.mxu0 0.0
        %484 = vmatpush1.msra.mxu0 0.0
        %485 = vmatprep.mubr.f32.mxu0 0.0
        %486 = vmatmul.mubr.f32.gmra.mrb[0].mxu0 %v326
        %v487 = vpop.f32.mrb[0].mxu0
        %v488 = vadd.f32 %v317, %v487
        %v489 = vpop.f32.mrb[0].mxu0
        %v490 = vadd.f32 %v321, %v489
        %491 = vmatprep.mubr.f32.mxu0 0.0
        %492 = vmatmul.mubr.f32.gmra.mrb[0].mxu0 %v329
        %v493 = vpop.f32.mrb[0].mxu0
        %v494 = vadd.f32 %v317, %v493
        %v495 = vpop.f32.mrb[0].mxu0
        %v496 = vadd.f32 %v321, %v495
        %497 = vmatprep.mubr.f32.mxu0 0.0
        %498 = vmatmul.mubr.f32.gmra.mrb[0].mxu0 %v332
        %v499 = vpop.f32.mrb[0].mxu0
        %v500 = vadd.f32 %v317, %v499
        %v501 = vpop.f32.mrb[0].mxu0
        %v502 = vadd.f32 %v321, %v501
        %503 = vmatprep.mubr.f32.mxu0 0.0
        %504 = vmatmul.mubr.f32.gmra.mrb[0].mxu0 %v335
        %v505 = vpop.f32.mrb[0].mxu0
        %v506 = vadd.f32 %v317, %v505
        %v507 = vpop.f32.mrb[0].mxu0
        %v508 = vadd.f32 %v321, %v507
        %509 = vmatprep.mubr.f32.mxu0 0.0
        %510 = vmatmul.mubr.f32.gmra.mrb[0].mxu0 %v338
        %v511 = vpop.f32.mrb[0].mxu0
        %v512 = vadd.f32 %v317, %v511
        %v513 = vpop.f32.mrb[0].mxu0
        %v514 = vadd.f32 %v321, %v513
        %515 = vmatprep.mubr.f32.mxu0 0.0
        %516 = vmatmul.mubr.f32.gmra.mrb[0].mxu0 %v341
        %v517 = vpop.f32.mrb[0].mxu0
        %v518 = vadd.f32 %v317, %v517
        %v519 = vpop.f32.mrb[0].mxu0
        %v520 = vadd.f32 %v321, %v519
        %521 = vmatprep.mubr.f32.mxu0 0.0
        %522 = vmatmul.mubr.f32.gmra.mrb[0].mxu0 %v344
        %v523 = vpop.f32.mrb[0].mxu0
        %v524 = vadd.f32 %v317, %v523
        %v525 = vpop.f32.mrb[0].mxu0
        %v526 = vadd.f32 %v321, %v525
        %527 = vmatprep.mubr.f32.mxu0 0.0
        %528 = vmatmul.mubr.f32.gmra.mrb[0].mxu0 %v347
        %v529 = vpop.f32.mrb[0].mxu0
        %v530 = vadd.f32 %v317, %v529
        %v531 = vpop.f32.mrb[0].mxu0
        %v532 = vadd.f32 %v321, %v531
        %533 = vmatprep.mubr.f32.mxu0 0.0
        %534 = vmatmul.mubr.f32.gmra.mrb[0].mxu0 %v350
        %v535 = vpop.f32.mrb[0].mxu0
        %v536 = vadd.f32 %v317, %v535
        %v537 = vpop.f32.mrb[0].mxu0
        %v538 = vadd.f32 %v321, %v537
        %539 = vmatprep.mubr.f32.mxu0 0.0
        %540 = vmatmul.mubr.f32.gmra.mrb[0].mxu0 %v353
        %v541 = vpop.f32.mrb[0].mxu0
        %v542 = vadd.f32 %v317, %v541
        %v543 = vpop.f32.mrb[0].mxu0
        %v544 = vadd.f32 %v321, %v543
        %545 = vmatprep.mubr.f32.mxu0 0.0
        %546 = vmatmul.mubr.f32.gmra.mrb[0].mxu0 %v356
        %v547 = vpop.f32.mrb[0].mxu0
        %v548 = vadd.f32 %v317, %v547
        %v549 = vpop.f32.mrb[0].mxu0
        %v550 = vadd.f32 %v321, %v549
        %551 = vmatprep.mubr.f32.mxu0 0.0
        %552 = vmatmul.mubr.f32.gmra.mrb[0].mxu0 %v359
        %v553 = vpop.f32.mrb[0].mxu0
        %v554 = vadd.f32 %v317, %v553
        %v555 = vpop.f32.mrb[0].mxu0
        %v556 = vadd.f32 %v321, %v555
        %557 = vmatprep.mubr.f32.mxu0 0.0
        %558 = vmatmul.mubr.f32.gmra.mrb[0].mxu0 %v362
        %v559 = vpop.f32.mrb[0].mxu0
        %v560 = vadd.f32 %v317, %v559
        %v561 = vpop.f32.mrb[0].mxu0
        %v562 = vadd.f32 %v321, %v561
        %563 = vmatprep.mubr.f32.mxu0 0.0
        %564 = vmatmul.mubr.f32.gmra.mrb[0].mxu0 %v365
        %v565 = vpop.f32.mrb[0].mxu0
        %v566 = vadd.f32 %v317, %v565
        %v567 = vpop.f32.mrb[0].mxu0
        %v568 = vadd.f32 %v321, %v567
        %569 = vmatprep.mubr.f32.mxu0 0.0
        %570 = vmatmul.mubr.f32.gmra.mrb[0].mxu0 %v368
        %v571 = vpop.f32.mrb[0].mxu0
        %v572 = vadd.f32 %v317, %v571
        %v573 = vpop.f32.mrb[0].mxu0
        %v574 = vadd.f32 %v321, %v573
        %575 = vmatprep.mubr.f32.mxu0 0.0
        %576 = vmatmul.mubr.f32.gmra.mrb[0].mxu0 %v371
        %v577 = vpop.f32.mrb[0].mxu0
        %v578 = vadd.f32 %v317, %v577
        %v579 = vpop.f32.mrb[0].mxu0
        %v580 = vadd.f32 %v321, %v579
        %581 = vmatprep.mubr.f32.mxu0 0.0
        %582 = vmatmul.mubr.f32.gmra.mrb[0].mxu0 %v374
        %v583 = vpop.f32.mrb[0].mxu0
        %v584 = vadd.f32 %v317, %v583
        %v585 = vpop.f32.mrb[0].mxu0
        %v586 = vadd.f32 %v321, %v585
        %587 = vmatprep.mubr.f32.mxu0 0.0
        %588 = vmatmul.mubr.f32.gmra.mrb[0].mxu0 %v377
        %v589 = vpop.f32.mrb[0].mxu0
        %v590 = vadd.f32 %v317, %v589
        %v591 = vpop.f32.mrb[0].mxu0
        %v592 = vadd.f32 %v321, %v591
        %593 = vmatprep.mubr.f32.mxu0 0.0
        %594 = vmatmul.mubr.f32.gmra.mrb[0].mxu0 %v380
        %v595 = vpop.f32.mrb[0].mxu0
        %v596 = vadd.f32 %v317, %v595
        %v597 = vpop.f32.mrb[0].mxu0
        %v598 = vadd.f32 %v321, %v597
        %599 = vmatprep.mubr.f32.mxu0 0.0
        %600 = vmatmul.mubr.f32.gmra.mrb[0].mxu0 %v383
        %v601 = vpop.f32.mrb[0].mxu0
        %v602 = vadd.f32 %v317, %v601
        %v603 = vpop.f32.mrb[0].mxu0
        %v604 = vadd.f32 %v321, %v603
        %605 = vmatprep.mubr.f32.mxu0 0.0
        %606 = vmatmul.mubr.f32.gmra.mrb[0].mxu0 %v386
        %v607 = vpop.f32.mrb[0].mxu0
        %v608 = vadd.f32 %v317, %v607
        %v609 = vpop.f32.mrb[0].mxu0
        %v610 = vadd.f32 %v321, %v609
        %611 = vmatprep.mubr.f32.mxu0 0.0
        %612 = vmatmul.mubr.f32.gmra.mrb[0].mxu0 %v389
        %v613 = vpop.f32.mrb[0].mxu0
        %v614 = vadd.f32 %v317, %v613
        %v615 = vpop.f32.mrb[0].mxu0
        %v616 = vadd.f32 %v321, %v615
        %617 = vmatprep.mubr.f32.mxu0 0.0
        %618 = vmatmul.mubr.f32.gmra.mrb[0].mxu0 %v392
        %v619 = vpop.f32.mrb[0].mxu0
        %v620 = vadd.f32 %v317, %v619
        %v621 = vpop.f32.mrb[0].mxu0
        %v622 = vadd.f32 %v321, %v621
        %623 = vmatprep.mubr.f32.mxu0 0.0
        %624 = vmatmul.mubr.f32.gmra.mrb[0].mxu0 %v395
        %v625 = vpop.f32.mrb[0].mxu0
        %v626 = vadd.f32 %v317, %v625
        %v627 = vpop.f32.mrb[0].mxu0
        %v628 = vadd.f32 %v321, %v627
        %629 = vmatprep.mubr.f32.mxu0 0.0
        %630 = vmatmul.mubr.f32.gmra.mrb[0].mxu0 %v398
        %v631 = vpop.f32.mrb[0].mxu0
        %v632 = vadd.f32 %v317, %v631
        %v633 = vpop.f32.mrb[0].mxu0
        %v634 = vadd.f32 %v321, %v633
        %635 = vmatprep.mubr.f32.mxu0 0.0
        %636 = vmatmul.mubr.f32.gmra.mrb[0].mxu0 %v401
        %v637 = vpop.f32.mrb[0].mxu0
        %v638 = vadd.f32 %v317, %v637
        %v639 = vpop.f32.mrb[0].mxu0
        %v640 = vadd.f32 %v321, %v639
        %641 = vmatprep.mubr.f32.mxu0 0.0
        %642 = vmatmul.mubr.f32.gmra.mrb[0].mxu0 %v404
        %v643 = vpop.f32.mrb[0].mxu0
        %v644 = vadd.f32 %v317, %v643
        %v645 = vpop.f32.mrb[0].mxu0
        %v646 = vadd.f32 %v321, %v645
        %647 = vmatprep.mubr.f32.mxu0 0.0
        %648 = vmatmul.mubr.f32.gmra.mrb[0].mxu0 %v407
        %v649 = vpop.f32.mrb[0].mxu0
        %v650 = vadd.f32 %v317, %v649
        %v651 = vpop.f32.mrb[0].mxu0
        %v652 = vadd.f32 %v321, %v651
        %653 = vmatprep.mubr.f32.mxu0 0.0
        %654 = vmatmul.mubr.f32.gmra.mrb[0].mxu0 %v410
        %v655 = vpop.f32.mrb[0].mxu0
        %v656 = vadd.f32 %v317, %v655
        %v657 = vpop.f32.mrb[0].mxu0
        %v658 = vadd.f32 %v321, %v657
        %659 = vmatprep.mubr.f32.mxu0 0.0
        %660 = vmatmul.mubr.f32.gmra.mrb[0].mxu0 %v413
        %v661 = vpop.f32.mrb[0].mxu0
        %v662 = vadd.f32 %v317, %v661
        %v663 = vpop.f32.mrb[0].mxu0
        %v664 = vadd.f32 %v321, %v663
        %665 = vmatprep.mubr.f32.mxu0 0.0
        %666 = vmatmul.mubr.f32.gmra.mrb[0].mxu0 %v416
        %v667 = vpop.f32.mrb[0].mxu0
        %v668 = vadd.f32 %v317, %v667
        %v669 = vpop.f32.mrb[0].mxu0
        %v670 = vadd.f32 %v321, %v669
        %671 = vmatprep.mubr.f32.mxu0 0.0
        %672 = vmatmul.mubr.f32.gmra.mrb[0].mxu0 %v419
        %v673 = vpop.f32.mrb[0].mxu0
        %v674 = vadd.f32 %v317, %v673
        %v675 = vpop.f32.mrb[0].mxu0
        %v676 = vadd.f32 %v321, %v675
        %677 = vdwg.mxu0
        %v678 = vld [vmem:[%s2] sm:$0xff]
        %v679 = vld [vmem:[%s2 + $0x8] sm:$0xff]
        %v680 = vld [vmem:[%s2 + $0x10] sm:$0xff]
        %v681 = vld [vmem:[%s2 + $0x18] sm:$0xff]
        %682 = vmatprep.subr.mxu0 %v679
        %683 = vmatpush1.msra.mxu0 %v678
        %684 = vmatprep.subr.mxu0 %v681
        %685 = vmatpush1.msra.mxu0 %v680
        %686 = vmatprep.subr.mxu0 0.0
        %687 = vmatpush1.msra.mxu0 0.0
        %688 = vmatprep.subr.mxu0 0.0
        %689 = vmatpush1.msra.mxu0 0.0
        %690 = vmatprep.subr.mxu0 0.0
        %691 = vmatpush1.msra.mxu0 0.0
        %692 = vmatprep.subr.mxu0 0.0
        %693 = vmatpush1.msra.mxu0 0.0
        %694 = vmatprep.subr.mxu0 0.0
        %695 = vmatpush1.msra.mxu0 0.0
        %696 = vmatprep.subr.mxu0 0.0
        %697 = vmatpush1.msra.mxu0 0.0
        %698 = vmatprep.subr.mxu0 0.0
        %699 = vmatpush1.msra.mxu0 0.0
        %700 = vmatprep.subr.mxu0 0.0
        %701 = vmatpush1.msra.mxu0 0.0
        %702 = vmatprep.subr.mxu0 0.0
        %703 = vmatpush1.msra.mxu0 0.0
        %704 = vmatprep.subr.mxu0 0.0
        %705 = vmatpush1.msra.mxu0 0.0
        %706 = vmatprep.subr.mxu0 0.0
        %707 = vmatpush1.msra.mxu0 0.0
        %708 = vmatprep.subr.mxu0 0.0
        %709 = vmatpush1.msra.mxu0 0.0
        %710 = vmatprep.subr.mxu0 0.0
        %711 = vmatpush1.msra.mxu0 0.0
        %712 = vmatprep.subr.mxu0 0.0
        %713 = vmatpush1.msra.mxu0 0.0
        %714 = vmatprep.subr.mxu0 0.0
        %715 = vmatpush1.msra.mxu0 0.0
        %716 = vmatprep.subr.mxu0 0.0
        %717 = vmatpush1.msra.mxu0 0.0
        %718 = vmatprep.subr.mxu0 0.0
        %719 = vmatpush1.msra.mxu0 0.0
        %720 = vmatprep.subr.mxu0 0.0
        %721 = vmatpush1.msra.mxu0 0.0
        %722 = vmatprep.subr.mxu0 0.0
        %723 = vmatpush1.msra.mxu0 0.0
        %724 = vmatprep.subr.mxu0 0.0
        %725 = vmatpush1.msra.mxu0 0.0
        %726 = vmatprep.subr.mxu0 0.0
        %727 = vmatpush1.msra.mxu0 0.0
        %728 = vmatprep.subr.mxu0 0.0
        %729 = vmatpush1.msra.mxu0 0.0
        %730 = vmatprep.subr.mxu0 0.0
        %731 = vmatpush1.msra.mxu0 0.0
        %732 = vmatprep.subr.mxu0 0.0
        %733 = vmatpush1.msra.mxu0 0.0
        %734 = vmatprep.subr.mxu0 0.0
        %735 = vmatpush1.msra.mxu0 0.0
        %736 = vmatprep.subr.mxu0 0.0
        %737 = vmatpush1.msra.mxu0 0.0
        %738 = vmatprep.subr.mxu0 0.0
        %739 = vmatpush1.msra.mxu0 0.0
        %740 = vmatprep.subr.mxu0 0.0
        %741 = vmatpush1.msra.mxu0 0.0
        %742 = vmatprep.subr.mxu0 0.0
        %743 = vmatpush1.msra.mxu0 0.0
        %744 = vmatprep.subr.mxu0 0.0
        %745 = vmatpush1.msra.mxu0 0.0
        %746 = vmatprep.mubr.f32.mxu0 0.0
        %747 = vmatmul.mubr.f32.gmra.mrb[0].mxu0 %v326
        %v748 = vpop.f32.mrb[0].mxu0
        %v749 = vadd.f32 0.0, %v748
        %v750 = vpop.f32.mrb[0].mxu0
        %v751 = vadd.f32 0.0, %v750
        %752 = vmatprep.mubr.f32.mxu0 0.0
        %753 = vmatmul.mubr.f32.gmra.mrb[0].mxu0 %v329
        %v754 = vpop.f32.mrb[0].mxu0
        %v755 = vadd.f32 0.0, %v754
        %v756 = vpop.f32.mrb[0].mxu0
        %v757 = vadd.f32 0.0, %v756
        %758 = vmatprep.mubr.f32.mxu0 0.0
        %759 = vmatmul.mubr.f32.gmra.mrb[0].mxu0 %v332
        %v760 = vpop.f32.mrb[0].mxu0
        %v761 = vadd.f32 0.0, %v760
        %v762 = vpop.f32.mrb[0].mxu0
        %v763 = vadd.f32 0.0, %v762
        %764 = vmatprep.mubr.f32.mxu0 0.0
        %765 = vmatmul.mubr.f32.gmra.mrb[0].mxu0 %v335
        %v766 = vpop.f32.mrb[0].mxu0
        %v767 = vadd.f32 0.0, %v766
        %v768 = vpop.f32.mrb[0].mxu0
        %v769 = vadd.f32 0.0, %v768
        %770 = vmatprep.mubr.f32.mxu0 0.0
        %771 = vmatmul.mubr.f32.gmra.mrb[0].mxu0 %v338
        %v772 = vpop.f32.mrb[0].mxu0
        %v773 = vadd.f32 0.0, %v772
        %v774 = vpop.f32.mrb[0].mxu0
        %v775 = vadd.f32 0.0, %v774
        %776 = vmatprep.mubr.f32.mxu0 0.0
        %777 = vmatmul.mubr.f32.gmra.mrb[0].mxu0 %v341
        %v778 = vpop.f32.mrb[0].mxu0
        %v779 = vadd.f32 0.0, %v778
        %v780 = vpop.f32.mrb[0].mxu0
        %v781 = vadd.f32 0.0, %v780
        %782 = vmatprep.mubr.f32.mxu0 0.0
        %783 = vmatmul.mubr.f32.gmra.mrb[0].mxu0 %v344
        %v784 = vpop.f32.mrb[0].mxu0
        %v785 = vadd.f32 0.0, %v784
        %v786 = vpop.f32.mrb[0].mxu0
        %v787 = vadd.f32 0.0, %v786
        %788 = vmatprep.mubr.f32.mxu0 0.0
        %789 = vmatmul.mubr.f32.gmra.mrb[0].mxu0 %v347
        %v790 = vpop.f32.mrb[0].mxu0
        %v791 = vadd.f32 0.0, %v790
        %v792 = vpop.f32.mrb[0].mxu0
        %v793 = vadd.f32 0.0, %v792
        %794 = vmatprep.mubr.f32.mxu0 0.0
        %795 = vmatmul.mubr.f32.gmra.mrb[0].mxu0 %v350
        %v796 = vpop.f32.mrb[0].mxu0
        %v797 = vadd.f32 0.0, %v796
        %v798 = vpop.f32.mrb[0].mxu0
        %v799 = vadd.f32 0.0, %v798
        %800 = vmatprep.mubr.f32.mxu0 0.0
        %801 = vmatmul.mubr.f32.gmra.mrb[0].mxu0 %v353
        %v802 = vpop.f32.mrb[0].mxu0
        %v803 = vadd.f32 0.0, %v802
        %v804 = vpop.f32.mrb[0].mxu0
        %v805 = vadd.f32 0.0, %v804
        %806 = vmatprep.mubr.f32.mxu0 0.0
        %807 = vmatmul.mubr.f32.gmra.mrb[0].mxu0 %v356
        %v808 = vpop.f32.mrb[0].mxu0
        %v809 = vadd.f32 0.0, %v808
        %v810 = vpop.f32.mrb[0].mxu0
        %v811 = vadd.f32 0.0, %v810
        %812 = vmatprep.mubr.f32.mxu0 0.0
        %813 = vmatmul.mubr.f32.gmra.mrb[0].mxu0 %v359
        %v814 = vpop.f32.mrb[0].mxu0
        %v815 = vadd.f32 0.0, %v814
        %v816 = vpop.f32.mrb[0].mxu0
        %v817 = vadd.f32 0.0, %v816
        %818 = vmatprep.mubr.f32.mxu0 0.0
        %819 = vmatmul.mubr.f32.gmra.mrb[0].mxu0 %v362
        %v820 = vpop.f32.mrb[0].mxu0
        %v821 = vadd.f32 0.0, %v820
        %v822 = vpop.f32.mrb[0].mxu0
        %v823 = vadd.f32 0.0, %v822
        %824 = vmatprep.mubr.f32.mxu0 0.0
        %825 = vmatmul.mubr.f32.gmra.mrb[0].mxu0 %v365
        %v826 = vpop.f32.mrb[0].mxu0
        %v827 = vadd.f32 0.0, %v826
        %v828 = vpop.f32.mrb[0].mxu0
        %v829 = vadd.f32 0.0, %v828
        %830 = vmatprep.mubr.f32.mxu0 0.0
        %831 = vmatmul.mubr.f32.gmra.mrb[0].mxu0 %v368
        %v832 = vpop.f32.mrb[0].mxu0
        %v833 = vadd.f32 0.0, %v832
        %v834 = vpop.f32.mrb[0].mxu0
        %v835 = vadd.f32 0.0, %v834
        %836 = vmatprep.mubr.f32.mxu0 0.0
        %837 = vmatmul.mubr.f32.gmra.mrb[0].mxu0 %v371
        %v838 = vpop.f32.mrb[0].mxu0
        %v839 = vadd.f32 0.0, %v838
        %v840 = vpop.f32.mrb[0].mxu0
        %v841 = vadd.f32 0.0, %v840
        %842 = vmatprep.mubr.f32.mxu0 0.0
        %843 = vmatmul.mubr.f32.gmra.mrb[0].mxu0 %v374
        %v844 = vpop.f32.mrb[0].mxu0
        %v845 = vadd.f32 0.0, %v844
        %v846 = vpop.f32.mrb[0].mxu0
        %v847 = vadd.f32 0.0, %v846
        %848 = vmatprep.mubr.f32.mxu0 0.0
        %849 = vmatmul.mubr.f32.gmra.mrb[0].mxu0 %v377
        %v850 = vpop.f32.mrb[0].mxu0
        %v851 = vadd.f32 0.0, %v850
        %v852 = vpop.f32.mrb[0].mxu0
        %v853 = vadd.f32 0.0, %v852
        %854 = vmatprep.mubr.f32.mxu0 0.0
        %855 = vmatmul.mubr.f32.gmra.mrb[0].mxu0 %v380
        %v856 = vpop.f32.mrb[0].mxu0
        %v857 = vadd.f32 0.0, %v856
        %v858 = vpop.f32.mrb[0].mxu0
        %v859 = vadd.f32 0.0, %v858
        %860 = vmatprep.mubr.f32.mxu0 0.0
        %861 = vmatmul.mubr.f32.gmra.mrb[0].mxu0 %v383
        %v862 = vpop.f32.mrb[0].mxu0
        %v863 = vadd.f32 0.0, %v862
        %v864 = vpop.f32.mrb[0].mxu0
        %v865 = vadd.f32 0.0, %v864
        %866 = vmatprep.mubr.f32.mxu0 0.0
        %867 = vmatmul.mubr.f32.gmra.mrb[0].mxu0 %v386
        %v868 = vpop.f32.mrb[0].mxu0
        %v869 = vadd.f32 0.0, %v868
        %v870 = vpop.f32.mrb[0].mxu0
        %v871 = vadd.f32 0.0, %v870
        %872 = vmatprep.mubr.f32.mxu0 0.0
        %873 = vmatmul.mubr.f32.gmra.mrb[0].mxu0 %v389
        %v874 = vpop.f32.mrb[0].mxu0
        %v875 = vadd.f32 0.0, %v874
        %v876 = vpop.f32.mrb[0].mxu0
        %v877 = vadd.f32 0.0, %v876
        %878 = vmatprep.mubr.f32.mxu0 0.0
        %879 = vmatmul.mubr.f32.gmra.mrb[0].mxu0 %v392
        %v880 = vpop.f32.mrb[0].mxu0
        %v881 = vadd.f32 0.0, %v880
        %v882 = vpop.f32.mrb[0].mxu0
        %v883 = vadd.f32 0.0, %v882
        %884 = vmatprep.mubr.f32.mxu0 0.0
        %885 = vmatmul.mubr.f32.gmra.mrb[0].mxu0 %v395
        %v886 = vpop.f32.mrb[0].mxu0
        %v887 = vadd.f32 0.0, %v886
        %v888 = vpop.f32.mrb[0].mxu0
        %v889 = vadd.f32 0.0, %v888
        %890 = vmatprep.mubr.f32.mxu0 0.0
        %891 = vmatmul.mubr.f32.gmra.mrb[0].mxu0 %v398
        %v892 = vpop.f32.mrb[0].mxu0
        %v893 = vadd.f32 0.0, %v892
        %v894 = vpop.f32.mrb[0].mxu0
        %v895 = vadd.f32 0.0, %v894
        %896 = vmatprep.mubr.f32.mxu0 0.0
        %897 = vmatmul.mubr.f32.gmra.mrb[0].mxu0 %v401
        %v898 = vpop.f32.mrb[0].mxu0
        %v899 = vadd.f32 0.0, %v898
        %v900 = vpop.f32.mrb[0].mxu0
        %v901 = vadd.f32 0.0, %v900
        %902 = vmatprep.mubr.f32.mxu0 0.0
        %903 = vmatmul.mubr.f32.gmra.mrb[0].mxu0 %v404
        %v904 = vpop.f32.mrb[0].mxu0
        %v905 = vadd.f32 0.0, %v904
        %v906 = vpop.f32.mrb[0].mxu0
        %v907 = vadd.f32 0.0, %v906
        %908 = vmatprep.mubr.f32.mxu0 0.0
        %909 = vmatmul.mubr.f32.gmra.mrb[0].mxu0 %v407
        %v910 = vpop.f32.mrb[0].mxu0
        %v911 = vadd.f32 0.0, %v910
        %v912 = vpop.f32.mrb[0].mxu0
        %v913 = vadd.f32 0.0, %v912
        %914 = vmatprep.mubr.f32.mxu0 0.0
        %915 = vmatmul.mubr.f32.gmra.mrb[0].mxu0 %v410
        %v916 = vpop.f32.mrb[0].mxu0
        %v917 = vadd.f32 0.0, %v916
        %v918 = vpop.f32.mrb[0].mxu0
        %v919 = vadd.f32 0.0, %v918
        %920 = vmatprep.mubr.f32.mxu0 0.0
        %921 = vmatmul.mubr.f32.gmra.mrb[0].mxu0 %v413
        %v922 = vpop.f32.mrb[0].mxu0
        %v923 = vadd.f32 0.0, %v922
        %v924 = vpop.f32.mrb[0].mxu0
        %v925 = vadd.f32 0.0, %v924
        %926 = vmatprep.mubr.f32.mxu0 0.0
        %927 = vmatmul.mubr.f32.gmra.mrb[0].mxu0 %v416
        %v928 = vpop.f32.mrb[0].mxu0
        %v929 = vadd.f32 0.0, %v928
        %v930 = vpop.f32.mrb[0].mxu0
        %v931 = vadd.f32 0.0, %v930
        %932 = vmatprep.mubr.f32.mxu0 0.0
        %933 = vmatmul.mubr.f32.gmra.mrb[0].mxu0 %v419
        %v934 = vpop.f32.mrb[0].mxu0
        %v935 = vadd.f32 0.0, %v934
        %v936 = vpop.f32.mrb[0].mxu0
        %v937 = vadd.f32 0.0, %v936
        %938 = vdwg.mxu0
        %v939 = vrot.slane %v749, 1
        %v940 = vrot.slane %v755, 1
        %v941 = vrot.slane %v761, 1
        %v942 = vrot.slane %v767, 1
        %v943 = vrot.slane %v773, 1
        %v944 = vrot.slane %v779, 1
        %v945 = vrot.slane %v785, 1
        %v946 = vrot.slane %v791, 1
        %v947 = vrot.slane %v797, 1
        %v948 = vrot.slane %v803, 1
        %v949 = vrot.slane %v809, 1
        %v950 = vrot.slane %v815, 1
        %v951 = vrot.slane %v821, 1
        %v952 = vrot.slane %v827, 1
        %v953 = vrot.slane %v833, 1
        %v954 = vrot.slane %v839, 1
        %v955 = vrot.slane %v845, 1
        %v956 = vrot.slane %v851, 1
        %v957 = vrot.slane %v857, 1
        %v958 = vrot.slane %v863, 1
        %v959 = vrot.slane %v869, 1
        %v960 = vrot.slane %v875, 1
        %v961 = vrot.slane %v881, 1
        %v962 = vrot.slane %v887, 1
        %v963 = vrot.slane %v893, 1
        %v964 = vrot.slane %v899, 1
        %v965 = vrot.slane %v905, 1
        %v966 = vrot.slane %v911, 1
        %v967 = vrot.slane %v917, 1
        %v968 = vrot.slane %v923, 1
        %v969 = vrot.slane %v929, 1
        %v970 = vrot.slane %v935, 1
        %v971 = vlaneseq
        %v972 = vshrl.u32 %v971, 7
        %vm973 = vcmp.lt.s32.totalorder %v972, 7
        %v974 = vsel %vm973, %v969, %v970
        %v975 = vsel %vm973, %v968, %v969
        %v976 = vsel %vm973, %v967, %v968
        %v977 = vsel %vm973, %v966, %v967
        %v978 = vsel %vm973, %v965, %v966
        %v979 = vsel %vm973, %v964, %v965
        %v980 = vsel %vm973, %v963, %v964
        %v981 = vsel %vm973, %v962, %v963
        %v982 = vsel %vm973, %v961, %v962
        %v983 = vsel %vm973, %v960, %v961
        %v984 = vsel %vm973, %v959, %v960
        %v985 = vsel %vm973, %v958, %v959
        %v986 = vsel %vm973, %v957, %v958
        %v987 = vsel %vm973, %v956, %v957
        %v988 = vsel %vm973, %v955, %v956
        %v989 = vsel %vm973, %v954, %v955
        %v990 = vsel %vm973, %v953, %v954
        %v991 = vsel %vm973, %v952, %v953
        %v992 = vsel %vm973, %v951, %v952
        %v993 = vsel %vm973, %v950, %v951
        %v994 = vsel %vm973, %v949, %v950
        %v995 = vsel %vm973, %v948, %v949
        %v996 = vsel %vm973, %v947, %v948
        %v997 = vsel %vm973, %v946, %v947
        %v998 = vsel %vm973, %v945, %v946
        %v999 = vsel %vm973, %v944, %v945
        %v1000 = vsel %vm973, %v943, %v944
        %v1001 = vsel %vm973, %v942, %v943
        %v1002 = vsel %vm973, %v941, %v942
        %v1003 = vsel %vm973, %v940, %v941
        %v1004 = vsel %vm973, %v939, %v940
        %v1005 = vsel %vm973, %v970, %v939
        %v1006 = vadd.f32 %v488, %v1004
        %v1007 = vadd.f32 %v494, %v1003
        %v1008 = vadd.f32 %v500, %v1002
        %v1009 = vadd.f32 %v506, %v1001
        %v1010 = vadd.f32 %v512, %v1000
        %v1011 = vadd.f32 %v518, %v999
        %v1012 = vadd.f32 %v524, %v998
        %v1013 = vadd.f32 %v530, %v997
        %v1014 = vadd.f32 %v536, %v996
        %v1015 = vadd.f32 %v542, %v995
        %v1016 = vadd.f32 %v548, %v994
        %v1017 = vadd.f32 %v554, %v993
        %v1018 = vadd.f32 %v560, %v992
        %v1019 = vadd.f32 %v566, %v991
        %v1020 = vadd.f32 %v572, %v990
        %v1021 = vadd.f32 %v578, %v989
        %v1022 = vadd.f32 %v584, %v988
        %v1023 = vadd.f32 %v590, %v987
        %v1024 = vadd.f32 %v596, %v986
        %v1025 = vadd.f32 %v602, %v985
        %v1026 = vadd.f32 %v608, %v984
        %v1027 = vadd.f32 %v614, %v983
        %v1028 = vadd.f32 %v620, %v982
        %v1029 = vadd.f32 %v626, %v981
        %v1030 = vadd.f32 %v632, %v980
        %v1031 = vadd.f32 %v638, %v979
        %v1032 = vadd.f32 %v644, %v978
        %v1033 = vadd.f32 %v650, %v977
        %v1034 = vadd.f32 %v656, %v976
        %v1035 = vadd.f32 %v662, %v975
        %v1036 = vadd.f32 %v668, %v974
        %v1037 = vadd.f32 %v674, %v1005
        %v1038 = vmax.f32 %v1006, 0.0
        %v1039 = vmax.f32 %v1007, 0.0
        %v1040 = vmax.f32 %v1008, 0.0
        %v1041 = vmax.f32 %v1009, 0.0
        %v1042 = vmax.f32 %v1010, 0.0
        %v1043 = vmax.f32 %v1011, 0.0
        %v1044 = vmax.f32 %v1012, 0.0
        %v1045 = vmax.f32 %v1013, 0.0
        %v1046 = vmax.f32 %v1014, 0.0
        %v1047 = vmax.f32 %v1015, 0.0
        %v1048 = vmax.f32 %v1016, 0.0
        %v1049 = vmax.f32 %v1017, 0.0
        %v1050 = vmax.f32 %v1018, 0.0
        %v1051 = vmax.f32 %v1019, 0.0
        %v1052 = vmax.f32 %v1020, 0.0
        %v1053 = vmax.f32 %v1021, 0.0
        %v1054 = vmax.f32 %v1022, 0.0
        %v1055 = vmax.f32 %v1023, 0.0
        %v1056 = vmax.f32 %v1024, 0.0
        %v1057 = vmax.f32 %v1025, 0.0
        %v1058 = vmax.f32 %v1026, 0.0
        %v1059 = vmax.f32 %v1027, 0.0
        %v1060 = vmax.f32 %v1028, 0.0
        %v1061 = vmax.f32 %v1029, 0.0
        %v1062 = vmax.f32 %v1030, 0.0
        %v1063 = vmax.f32 %v1031, 0.0
        %v1064 = vmax.f32 %v1032, 0.0
        %v1065 = vmax.f32 %v1033, 0.0
        %v1066 = vmax.f32 %v1034, 0.0
        %v1067 = vmax.f32 %v1035, 0.0
        %v1068 = vmax.f32 %v1036, 0.0
        %v1069 = vmax.f32 %v1037, 0.0
        %v1070 = vrot.slane %v751, 4
        %v1071 = vrot.slane %v757, 4
        %v1072 = vrot.slane %v763, 4
        %v1073 = vrot.slane %v769, 4
        %v1074 = vrot.slane %v775, 4
        %v1075 = vrot.slane %v781, 4
        %v1076 = vrot.slane %v787, 4
        %v1077 = vrot.slane %v793, 4
        %v1078 = vrot.slane %v799, 4
        %v1079 = vrot.slane %v805, 4
        %v1080 = vrot.slane %v811, 4
        %v1081 = vrot.slane %v817, 4
        %v1082 = vrot.slane %v823, 4
        %v1083 = vrot.slane %v829, 4
        %v1084 = vrot.slane %v835, 4
        %v1085 = vrot.slane %v841, 4
        %v1086 = vrot.slane %v847, 4
        %v1087 = vrot.slane %v853, 4
        %v1088 = vrot.slane %v859, 4
        %v1089 = vrot.slane %v865, 4
        %v1090 = vrot.slane %v871, 4
        %v1091 = vrot.slane %v877, 4
        %v1092 = vrot.slane %v883, 4
        %v1093 = vrot.slane %v889, 4
        %v1094 = vrot.slane %v895, 4
        %v1095 = vrot.slane %v901, 4
        %v1096 = vrot.slane %v907, 4
        %v1097 = vrot.slane %v913, 4
        %v1098 = vrot.slane %v919, 4
        %v1099 = vrot.slane %v925, 4
        %v1100 = vrot.slane %v931, 4
        %v1101 = vrot.slane %v937, 4
        %vm1102 = vcmp.lt.s32.totalorder %v972, 4
        %v1103 = vsel %vm1102, %v1100, %v1101
        %v1104 = vsel %vm1102, %v1099, %v1100
        %v1105 = vsel %vm1102, %v1098, %v1099
        %v1106 = vsel %vm1102, %v1097, %v1098
        %v1107 = vsel %vm1102, %v1096, %v1097
        %v1108 = vsel %vm1102, %v1095, %v1096
        %v1109 = vsel %vm1102, %v1094, %v1095
        %v1110 = vsel %vm1102, %v1093, %v1094
        %v1111 = vsel %vm1102, %v1092, %v1093
        %v1112 = vsel %vm1102, %v1091, %v1092
        %v1113 = vsel %vm1102, %v1090, %v1091
        %v1114 = vsel %vm1102, %v1089, %v1090
        %v1115 = vsel %vm1102, %v1088, %v1089
        %v1116 = vsel %vm1102, %v1087, %v1088
        %v1117 = vsel %vm1102, %v1086, %v1087
        %v1118 = vsel %vm1102, %v1085, %v1086
        %v1119 = vsel %vm1102, %v1084, %v1085
        %v1120 = vsel %vm1102, %v1083, %v1084
        %v1121 = vsel %vm1102, %v1082, %v1083
        %v1122 = vsel %vm1102, %v1081, %v1082
        %v1123 = vsel %vm1102, %v1080, %v1081
        %v1124 = vsel %vm1102, %v1079, %v1080
        %v1125 = vsel %vm1102, %v1078, %v1079
        %v1126 = vsel %vm1102, %v1077, %v1078
        %v1127 = vsel %vm1102, %v1076, %v1077
        %v1128 = vsel %vm1102, %v1075, %v1076
        %v1129 = vsel %vm1102, %v1074, %v1075
        %v1130 = vsel %vm1102, %v1073, %v1074
        %v1131 = vsel %vm1102, %v1072, %v1073
        %v1132 = vsel %vm1102, %v1071, %v1072
        %v1133 = vsel %vm1102, %v1070, %v1071
        %v1134 = vsel %vm1102, %v1101, %v1070
        %v1135 = vadd.f32 %v490, %v1133
        %v1136 = vadd.f32 %v496, %v1132
        %v1137 = vadd.f32 %v502, %v1131
        %v1138 = vadd.f32 %v508, %v1130
        %v1139 = vadd.f32 %v514, %v1129
        %v1140 = vadd.f32 %v520, %v1128
        %v1141 = vadd.f32 %v526, %v1127
        %v1142 = vadd.f32 %v532, %v1126
        %v1143 = vadd.f32 %v538, %v1125
        %v1144 = vadd.f32 %v544, %v1124
        %v1145 = vadd.f32 %v550, %v1123
        %v1146 = vadd.f32 %v556, %v1122
        %v1147 = vadd.f32 %v562, %v1121
        %v1148 = vadd.f32 %v568, %v1120
        %v1149 = vadd.f32 %v574, %v1119
        %v1150 = vadd.f32 %v580, %v1118
        %v1151 = vadd.f32 %v586, %v1117
        %v1152 = vadd.f32 %v592, %v1116
        %v1153 = vadd.f32 %v598, %v1115
        %v1154 = vadd.f32 %v604, %v1114
        %v1155 = vadd.f32 %v610, %v1113
        %v1156 = vadd.f32 %v616, %v1112
        %v1157 = vadd.f32 %v622, %v1111
        %v1158 = vadd.f32 %v628, %v1110
        %v1159 = vadd.f32 %v634, %v1109
        %v1160 = vadd.f32 %v640, %v1108
        %v1161 = vadd.f32 %v646, %v1107
        %v1162 = vadd.f32 %v652, %v1106
        %v1163 = vadd.f32 %v658, %v1105
        %v1164 = vadd.f32 %v664, %v1104
        %v1165 = vadd.f32 %v670, %v1103
        %v1166 = vadd.f32 %v676, %v1134
        %v1167 = vmax.f32 %v1135, 0.0
        %v1168 = vmax.f32 %v1136, 0.0
        %v1169 = vmax.f32 %v1137, 0.0
        %v1170 = vmax.f32 %v1138, 0.0
        %v1171 = vmax.f32 %v1139, 0.0
        %v1172 = vmax.f32 %v1140, 0.0
        %v1173 = vmax.f32 %v1141, 0.0
        %v1174 = vmax.f32 %v1142, 0.0
        %v1175 = vmax.f32 %v1143, 0.0
        %v1176 = vmax.f32 %v1144, 0.0
        %v1177 = vmax.f32 %v1145, 0.0
        %v1178 = vmax.f32 %v1146, 0.0
        %v1179 = vmax.f32 %v1147, 0.0
        %v1180 = vmax.f32 %v1148, 0.0
        %v1181 = vmax.f32 %v1149, 0.0
        %v1182 = vmax.f32 %v1150, 0.0
        %v1183 = vmax.f32 %v1151, 0.0
        %v1184 = vmax.f32 %v1152, 0.0
        %v1185 = vmax.f32 %v1153, 0.0
        %v1186 = vmax.f32 %v1154, 0.0
        %v1187 = vmax.f32 %v1155, 0.0
        %v1188 = vmax.f32 %v1156, 0.0
        %v1189 = vmax.f32 %v1157, 0.0
        %v1190 = vmax.f32 %v1158, 0.0
        %v1191 = vmax.f32 %v1159, 0.0
        %v1192 = vmax.f32 %v1160, 0.0
        %v1193 = vmax.f32 %v1161, 0.0
        %v1194 = vmax.f32 %v1162, 0.0
        %v1195 = vmax.f32 %v1163, 0.0
        %v1196 = vmax.f32 %v1164, 0.0
        %v1197 = vmax.f32 %v1165, 0.0
        %v1198 = vmax.f32 %v1166, 0.0
        %v1199 = vld [vmem:[%s6] sm:$0x3]
        %v1200 = vld [vmem:[%s3] sm:$0xff]
        %v1201 = vld [vmem:[%s3 + $0x8] sm:$0xff]
        %v1202 = vld [vmem:[%s3 + $0x10] sm:$0xff]
        %v1203 = vld [vmem:[%s3 + $0x18] sm:$0xff]
        %v1204 = vld [vmem:[%s3 + $0x20] sm:$0xff]
        %v1205 = vld [vmem:[%s3 + $0x28] sm:$0xff]
        %v1206 = vld [vmem:[%s3 + $0x30] sm:$0xff]
        %v1207 = vld [vmem:[%s3 + $0x38] sm:$0xff]
        %v1208 = vld [vmem:[%s3 + $0x40] sm:$0xff]
        %v1209 = vld [vmem:[%s3 + $0x48] sm:$0xff]
        %v1210 = vld [vmem:[%s3 + $0x50] sm:$0xff]
        %v1211 = vld [vmem:[%s3 + $0x58] sm:$0xff]
        %v1212 = vld [vmem:[%s3 + $0x60] sm:$0xff]
        %v1213 = vld [vmem:[%s3 + $0x68] sm:$0xff]
        %v1214 = vld [vmem:[%s3 + $0x70] sm:$0xff]
        %v1215 = vld [vmem:[%s3 + $0x78] sm:$0xff]
        %v1216 = vld [vmem:[%s3 + $0x80] sm:$0xff]
        %v1217 = vld [vmem:[%s3 + $0x88] sm:$0xff]
        %v1218 = vld [vmem:[%s3 + $0x90] sm:$0xff]
        %v1219 = vld [vmem:[%s3 + $0x98] sm:$0xff]
        %v1220 = vld [vmem:[%s3 + $0xa0] sm:$0xff]
        %v1221 = vld [vmem:[%s3 + $0xa8] sm:$0xff]
        %v1222 = vld [vmem:[%s3 + $0xb0] sm:$0xff]
        %v1223 = vld [vmem:[%s3 + $0xb8] sm:$0xff]
        %v1224 = vld [vmem:[%s3 + $0xc0] sm:$0xff]
        %v1225 = vld [vmem:[%s3 + $0xc8] sm:$0xff]
        %v1226 = vld [vmem:[%s3 + $0xd0] sm:$0xff]
        %v1227 = vld [vmem:[%s3 + $0xd8] sm:$0xff]
        %v1228 = vld [vmem:[%s3 + $0xe0] sm:$0xff]
        %v1229 = vld [vmem:[%s3 + $0xe8] sm:$0xff]
        %v1230 = vld [vmem:[%s3 + $0xf0] sm:$0xff]
        %v1231 = vld [vmem:[%s3 + $0xf8] sm:$0xff]
        %v1233 = vlaneseq
        %v1234 = vshrl.u32 %v1233, 7
        %v1235 = vsub.s32 0, %v1234
        %v1236 = vrot.slane %v1199, %v1235
        %v1237 = vlaneseq
        %v1238 = vshrl.u32 %v1237, 7
        %v1239 = vsub.s32 1, %v1238
        %v1240 = vrot.slane %v1199, %v1239
        %1243 = vmatprep.subr.mxu0 %v1201
        %1244 = vmatpush1.msra.mxu0 %v1200
        %1245 = vmatprep.subr.mxu0 %v1203
        %1246 = vmatpush1.msra.mxu0 %v1202
        %1247 = vmatprep.subr.mxu0 %v1205
        %1248 = vmatpush1.msra.mxu0 %v1204
        %1249 = vmatprep.subr.mxu0 %v1207
        %1250 = vmatpush1.msra.mxu0 %v1206
        %1251 = vmatprep.subr.mxu0 %v1209
        %1252 = vmatpush1.msra.mxu0 %v1208
        %1253 = vmatprep.subr.mxu0 %v1211
        %1254 = vmatpush1.msra.mxu0 %v1210
        %1255 = vmatprep.subr.mxu0 %v1213
        %1256 = vmatpush1.msra.mxu0 %v1212
        %1257 = vmatprep.subr.mxu0 %v1215
        %1258 = vmatpush1.msra.mxu0 %v1214
        %1259 = vmatprep.subr.mxu0 %v1217
        %1260 = vmatpush1.msra.mxu0 %v1216
        %1261 = vmatprep.subr.mxu0 %v1219
        %1262 = vmatpush1.msra.mxu0 %v1218
        %1263 = vmatprep.subr.mxu0 %v1221
        %1264 = vmatpush1.msra.mxu0 %v1220
        %1265 = vmatprep.subr.mxu0 %v1223
        %1266 = vmatpush1.msra.mxu0 %v1222
        %1267 = vmatprep.subr.mxu0 %v1225
        %1268 = vmatpush1.msra.mxu0 %v1224
        %1269 = vmatprep.subr.mxu0 %v1227
        %1270 = vmatpush1.msra.mxu0 %v1226
        %1271 = vmatprep.subr.mxu0 %v1229
        %1272 = vmatpush1.msra.mxu0 %v1228
        %1273 = vmatprep.subr.mxu0 %v1231
        %1274 = vmatpush1.msra.mxu0 %v1230
        %1275 = vmatprep.subr.mxu0 0.0
        %1276 = vmatpush1.msra.mxu0 0.0
        %1277 = vmatprep.subr.mxu0 0.0
        %1278 = vmatpush1.msra.mxu0 0.0
        %1279 = vmatprep.subr.mxu0 0.0
        %1280 = vmatpush1.msra.mxu0 0.0
        %1281 = vmatprep.subr.mxu0 0.0
        %1282 = vmatpush1.msra.mxu0 0.0
        %1283 = vmatprep.subr.mxu0 0.0
        %1284 = vmatpush1.msra.mxu0 0.0
        %1285 = vmatprep.subr.mxu0 0.0
        %1286 = vmatpush1.msra.mxu0 0.0
        %1287 = vmatprep.subr.mxu0 0.0
        %1288 = vmatpush1.msra.mxu0 0.0
        %1289 = vmatprep.subr.mxu0 0.0
        %1290 = vmatpush1.msra.mxu0 0.0
        %1291 = vmatprep.subr.mxu0 0.0
        %1292 = vmatpush1.msra.mxu0 0.0
        %1293 = vmatprep.subr.mxu0 0.0
        %1294 = vmatpush1.msra.mxu0 0.0
        %1295 = vmatprep.subr.mxu0 0.0
        %1296 = vmatpush1.msra.mxu0 0.0
        %1297 = vmatprep.subr.mxu0 0.0
        %1298 = vmatpush1.msra.mxu0 0.0
        %1299 = vmatprep.subr.mxu0 0.0
        %1300 = vmatpush1.msra.mxu0 0.0
        %1301 = vmatprep.subr.mxu0 0.0
        %1302 = vmatpush1.msra.mxu0 0.0
        %1303 = vmatprep.subr.mxu0 0.0
        %1304 = vmatpush1.msra.mxu0 0.0
        %1305 = vmatprep.subr.mxu0 0.0
        %1306 = vmatpush1.msra.mxu0 0.0
        %1307 = vmatprep.mubr.f32.mxu0 0.0
        %1308 = vmatmul.mubr.f32.gmra.mrb[0].mxu0 %v1038
        %v1309 = vpop.f32.mrb[0].mxu0
        %v1310 = vadd.f32 %v1236, %v1309
        %v1311 = vpop.f32.mrb[0].mxu0
        %v1312 = vadd.f32 %v1240, %v1311
        %1313 = vmatprep.mubr.f32.mxu0 0.0
        %1314 = vmatmul.mubr.f32.gmra.mrb[0].mxu0 %v1039
        %v1315 = vpop.f32.mrb[0].mxu0
        %v1316 = vadd.f32 %v1236, %v1315
        %v1317 = vpop.f32.mrb[0].mxu0
        %v1318 = vadd.f32 %v1240, %v1317
        %1319 = vmatprep.mubr.f32.mxu0 0.0
        %1320 = vmatmul.mubr.f32.gmra.mrb[0].mxu0 %v1040
        %v1321 = vpop.f32.mrb[0].mxu0
        %v1322 = vadd.f32 %v1236, %v1321
        %v1323 = vpop.f32.mrb[0].mxu0
        %v1324 = vadd.f32 %v1240, %v1323
        %1325 = vmatprep.mubr.f32.mxu0 0.0
        %1326 = vmatmul.mubr.f32.gmra.mrb[0].mxu0 %v1041
        %v1327 = vpop.f32.mrb[0].mxu0
        %v1328 = vadd.f32 %v1236, %v1327
        %v1329 = vpop.f32.mrb[0].mxu0
        %v1330 = vadd.f32 %v1240, %v1329
        %1331 = vmatprep.mubr.f32.mxu0 0.0
        %1332 = vmatmul.mubr.f32.gmra.mrb[0].mxu0 %v1042
        %v1333 = vpop.f32.mrb[0].mxu0
        %v1334 = vadd.f32 %v1236, %v1333
        %v1335 = vpop.f32.mrb[0].mxu0
        %v1336 = vadd.f32 %v1240, %v1335
        %1337 = vmatprep.mubr.f32.mxu0 0.0
        %1338 = vmatmul.mubr.f32.gmra.mrb[0].mxu0 %v1043
        %v1339 = vpop.f32.mrb[0].mxu0
        %v1340 = vadd.f32 %v1236, %v1339
        %v1341 = vpop.f32.mrb[0].mxu0
        %v1342 = vadd.f32 %v1240, %v1341
        %1343 = vmatprep.mubr.f32.mxu0 0.0
        %1344 = vmatmul.mubr.f32.gmra.mrb[0].mxu0 %v1044
        %v1345 = vpop.f32.mrb[0].mxu0
        %v1346 = vadd.f32 %v1236, %v1345
        %v1347 = vpop.f32.mrb[0].mxu0
        %v1348 = vadd.f32 %v1240, %v1347
        %1349 = vmatprep.mubr.f32.mxu0 0.0
        %1350 = vmatmul.mubr.f32.gmra.mrb[0].mxu0 %v1045
        %v1351 = vpop.f32.mrb[0].mxu0
        %v1352 = vadd.f32 %v1236, %v1351
        %v1353 = vpop.f32.mrb[0].mxu0
        %v1354 = vadd.f32 %v1240, %v1353
        %1355 = vmatprep.mubr.f32.mxu0 0.0
        %1356 = vmatmul.mubr.f32.gmra.mrb[0].mxu0 %v1046
        %v1357 = vpop.f32.mrb[0].mxu0
        %v1358 = vadd.f32 %v1236, %v1357
        %v1359 = vpop.f32.mrb[0].mxu0
        %v1360 = vadd.f32 %v1240, %v1359
        %1361 = vmatprep.mubr.f32.mxu0 0.0
        %1362 = vmatmul.mubr.f32.gmra.mrb[0].mxu0 %v1047
        %v1363 = vpop.f32.mrb[0].mxu0
        %v1364 = vadd.f32 %v1236, %v1363
        %v1365 = vpop.f32.mrb[0].mxu0
        %v1366 = vadd.f32 %v1240, %v1365
        %1367 = vmatprep.mubr.f32.mxu0 0.0
        %1368 = vmatmul.mubr.f32.gmra.mrb[0].mxu0 %v1048
        %v1369 = vpop.f32.mrb[0].mxu0
        %v1370 = vadd.f32 %v1236, %v1369
        %v1371 = vpop.f32.mrb[0].mxu0
        %v1372 = vadd.f32 %v1240, %v1371
        %1373 = vmatprep.mubr.f32.mxu0 0.0
        %1374 = vmatmul.mubr.f32.gmra.mrb[0].mxu0 %v1049
        %v1375 = vpop.f32.mrb[0].mxu0
        %v1376 = vadd.f32 %v1236, %v1375
        %v1377 = vpop.f32.mrb[0].mxu0
        %v1378 = vadd.f32 %v1240, %v1377
        %1379 = vmatprep.mubr.f32.mxu0 0.0
        %1380 = vmatmul.mubr.f32.gmra.mrb[0].mxu0 %v1050
        %v1381 = vpop.f32.mrb[0].mxu0
        %v1382 = vadd.f32 %v1236, %v1381
        %v1383 = vpop.f32.mrb[0].mxu0
        %v1384 = vadd.f32 %v1240, %v1383
        %1385 = vmatprep.mubr.f32.mxu0 0.0
        %1386 = vmatmul.mubr.f32.gmra.mrb[0].mxu0 %v1051
        %v1387 = vpop.f32.mrb[0].mxu0
        %v1388 = vadd.f32 %v1236, %v1387
        %v1389 = vpop.f32.mrb[0].mxu0
        %v1390 = vadd.f32 %v1240, %v1389
        %1391 = vmatprep.mubr.f32.mxu0 0.0
        %1392 = vmatmul.mubr.f32.gmra.mrb[0].mxu0 %v1052
        %v1393 = vpop.f32.mrb[0].mxu0
        %v1394 = vadd.f32 %v1236, %v1393
        %v1395 = vpop.f32.mrb[0].mxu0
        %v1396 = vadd.f32 %v1240, %v1395
        %1397 = vmatprep.mubr.f32.mxu0 0.0
        %1398 = vmatmul.mubr.f32.gmra.mrb[0].mxu0 %v1053
        %v1399 = vpop.f32.mrb[0].mxu0
        %v1400 = vadd.f32 %v1236, %v1399
        %v1401 = vpop.f32.mrb[0].mxu0
        %v1402 = vadd.f32 %v1240, %v1401
        %1403 = vmatprep.mubr.f32.mxu0 0.0
        %1404 = vmatmul.mubr.f32.gmra.mrb[0].mxu0 %v1054
        %v1405 = vpop.f32.mrb[0].mxu0
        %v1406 = vadd.f32 %v1236, %v1405
        %v1407 = vpop.f32.mrb[0].mxu0
        %v1408 = vadd.f32 %v1240, %v1407
        %1409 = vmatprep.mubr.f32.mxu0 0.0
        %1410 = vmatmul.mubr.f32.gmra.mrb[0].mxu0 %v1055
        %v1411 = vpop.f32.mrb[0].mxu0
        %v1412 = vadd.f32 %v1236, %v1411
        %v1413 = vpop.f32.mrb[0].mxu0
        %v1414 = vadd.f32 %v1240, %v1413
        %1415 = vmatprep.mubr.f32.mxu0 0.0
        %1416 = vmatmul.mubr.f32.gmra.mrb[0].mxu0 %v1056
        %v1417 = vpop.f32.mrb[0].mxu0
        %v1418 = vadd.f32 %v1236, %v1417
        %v1419 = vpop.f32.mrb[0].mxu0
        %v1420 = vadd.f32 %v1240, %v1419
        %1421 = vmatprep.mubr.f32.mxu0 0.0
        %1422 = vmatmul.mubr.f32.gmra.mrb[0].mxu0 %v1057
        %v1423 = vpop.f32.mrb[0].mxu0
        %v1424 = vadd.f32 %v1236, %v1423
        %v1425 = vpop.f32.mrb[0].mxu0
        %v1426 = vadd.f32 %v1240, %v1425
        %1427 = vmatprep.mubr.f32.mxu0 0.0
        %1428 = vmatmul.mubr.f32.gmra.mrb[0].mxu0 %v1058
        %v1429 = vpop.f32.mrb[0].mxu0
        %v1430 = vadd.f32 %v1236, %v1429
        %v1431 = vpop.f32.mrb[0].mxu0
        %v1432 = vadd.f32 %v1240, %v1431
        %1433 = vmatprep.mubr.f32.mxu0 0.0
        %1434 = vmatmul.mubr.f32.gmra.mrb[0].mxu0 %v1059
        %v1435 = vpop.f32.mrb[0].mxu0
        %v1436 = vadd.f32 %v1236, %v1435
        %v1437 = vpop.f32.mrb[0].mxu0
        %v1438 = vadd.f32 %v1240, %v1437
        %1439 = vmatprep.mubr.f32.mxu0 0.0
        %1440 = vmatmul.mubr.f32.gmra.mrb[0].mxu0 %v1060
        %v1441 = vpop.f32.mrb[0].mxu0
        %v1442 = vadd.f32 %v1236, %v1441
        %v1443 = vpop.f32.mrb[0].mxu0
        %v1444 = vadd.f32 %v1240, %v1443
        %1445 = vmatprep.mubr.f32.mxu0 0.0
        %1446 = vmatmul.mubr.f32.gmra.mrb[0].mxu0 %v1061
        %v1447 = vpop.f32.mrb[0].mxu0
        %v1448 = vadd.f32 %v1236, %v1447
        %v1449 = vpop.f32.mrb[0].mxu0
        %v1450 = vadd.f32 %v1240, %v1449
        %1451 = vmatprep.mubr.f32.mxu0 0.0
        %1452 = vmatmul.mubr.f32.gmra.mrb[0].mxu0 %v1062
        %v1453 = vpop.f32.mrb[0].mxu0
        %v1454 = vadd.f32 %v1236, %v1453
        %v1455 = vpop.f32.mrb[0].mxu0
        %v1456 = vadd.f32 %v1240, %v1455
        %1457 = vmatprep.mubr.f32.mxu0 0.0
        %1458 = vmatmul.mubr.f32.gmra.mrb[0].mxu0 %v1063
        %v1459 = vpop.f32.mrb[0].mxu0
        %v1460 = vadd.f32 %v1236, %v1459
        %v1461 = vpop.f32.mrb[0].mxu0
        %v1462 = vadd.f32 %v1240, %v1461
        %1463 = vmatprep.mubr.f32.mxu0 0.0
        %1464 = vmatmul.mubr.f32.gmra.mrb[0].mxu0 %v1064
        %v1465 = vpop.f32.mrb[0].mxu0
        %v1466 = vadd.f32 %v1236, %v1465
        %v1467 = vpop.f32.mrb[0].mxu0
        %v1468 = vadd.f32 %v1240, %v1467
        %1469 = vmatprep.mubr.f32.mxu0 0.0
        %1470 = vmatmul.mubr.f32.gmra.mrb[0].mxu0 %v1065
        %v1471 = vpop.f32.mrb[0].mxu0
        %v1472 = vadd.f32 %v1236, %v1471
        %v1473 = vpop.f32.mrb[0].mxu0
        %v1474 = vadd.f32 %v1240, %v1473
        %1475 = vmatprep.mubr.f32.mxu0 0.0
        %1476 = vmatmul.mubr.f32.gmra.mrb[0].mxu0 %v1066
        %v1477 = vpop.f32.mrb[0].mxu0
        %v1478 = vadd.f32 %v1236, %v1477
        %v1479 = vpop.f32.mrb[0].mxu0
        %v1480 = vadd.f32 %v1240, %v1479
        %1481 = vmatprep.mubr.f32.mxu0 0.0
        %1482 = vmatmul.mubr.f32.gmra.mrb[0].mxu0 %v1067
        %v1483 = vpop.f32.mrb[0].mxu0
        %v1484 = vadd.f32 %v1236, %v1483
        %v1485 = vpop.f32.mrb[0].mxu0
        %v1486 = vadd.f32 %v1240, %v1485
        %1487 = vmatprep.mubr.f32.mxu0 0.0
        %1488 = vmatmul.mubr.f32.gmra.mrb[0].mxu0 %v1068
        %v1489 = vpop.f32.mrb[0].mxu0
        %v1490 = vadd.f32 %v1236, %v1489
        %v1491 = vpop.f32.mrb[0].mxu0
        %v1492 = vadd.f32 %v1240, %v1491
        %1493 = vmatprep.mubr.f32.mxu0 0.0
        %1494 = vmatmul.mubr.f32.gmra.mrb[0].mxu0 %v1069
        %v1495 = vpop.f32.mrb[0].mxu0
        %v1496 = vadd.f32 %v1236, %v1495
        %v1497 = vpop.f32.mrb[0].mxu0
        %v1498 = vadd.f32 %v1240, %v1497
        %1499 = vdwg.mxu0
        %v1500 = vld [vmem:[%s4] sm:$0xff]
        %v1501 = vld [vmem:[%s4 + $0x8] sm:$0xff]
        %v1502 = vld [vmem:[%s4 + $0x10] sm:$0xff]
        %v1503 = vld [vmem:[%s4 + $0x18] sm:$0xff]
        %v1504 = vld [vmem:[%s4 + $0x20] sm:$0xff]
        %v1505 = vld [vmem:[%s4 + $0x28] sm:$0xff]
        %v1506 = vld [vmem:[%s4 + $0x30] sm:$0xff]
        %v1507 = vld [vmem:[%s4 + $0x38] sm:$0xff]
        %v1508 = vld [vmem:[%s4 + $0x40] sm:$0xff]
        %v1509 = vld [vmem:[%s4 + $0x48] sm:$0xff]
        %v1510 = vld [vmem:[%s4 + $0x50] sm:$0xff]
        %v1511 = vld [vmem:[%s4 + $0x58] sm:$0xff]
        %v1512 = vld [vmem:[%s4 + $0x60] sm:$0xff]
        %v1513 = vld [vmem:[%s4 + $0x68] sm:$0xff]
        %v1514 = vld [vmem:[%s4 + $0x70] sm:$0xff]
        %v1515 = vld [vmem:[%s4 + $0x78] sm:$0xff]
        %v1516 = vld [vmem:[%s4 + $0x80] sm:$0xff]
        %v1517 = vld [vmem:[%s4 + $0x88] sm:$0xff]
        %v1518 = vld [vmem:[%s4 + $0x90] sm:$0xff]
        %v1519 = vld [vmem:[%s4 + $0x98] sm:$0xff]
        %v1520 = vld [vmem:[%s4 + $0xa0] sm:$0xff]
        %v1521 = vld [vmem:[%s4 + $0xa8] sm:$0xff]
        %v1522 = vld [vmem:[%s4 + $0xb0] sm:$0xff]
        %v1523 = vld [vmem:[%s4 + $0xb8] sm:$0xff]
        %v1524 = vld [vmem:[%s4 + $0xc0] sm:$0xff]
        %v1525 = vld [vmem:[%s4 + $0xc8] sm:$0xff]
        %v1526 = vld [vmem:[%s4 + $0xd0] sm:$0xff]
        %v1527 = vld [vmem:[%s4 + $0xd8] sm:$0xff]
        %v1528 = vld [vmem:[%s4 + $0xe0] sm:$0xff]
        %v1529 = vld [vmem:[%s4 + $0xe8] sm:$0xff]
        %v1530 = vld [vmem:[%s4 + $0xf0] sm:$0xff]
        %v1531 = vld [vmem:[%s4 + $0xf8] sm:$0xff]
        %1532 = vmatprep.subr.mxu0 %v1501
        %1533 = vmatpush1.msra.mxu0 %v1500
        %1534 = vmatprep.subr.mxu0 %v1503
        %1535 = vmatpush1.msra.mxu0 %v1502
        %1536 = vmatprep.subr.mxu0 %v1505
        %1537 = vmatpush1.msra.mxu0 %v1504
        %1538 = vmatprep.subr.mxu0 %v1507
        %1539 = vmatpush1.msra.mxu0 %v1506
        %1540 = vmatprep.subr.mxu0 %v1509
        %1541 = vmatpush1.msra.mxu0 %v1508
        %1542 = vmatprep.subr.mxu0 %v1511
        %1543 = vmatpush1.msra.mxu0 %v1510
        %1544 = vmatprep.subr.mxu0 %v1513
        %1545 = vmatpush1.msra.mxu0 %v1512
        %1546 = vmatprep.subr.mxu0 %v1515
        %1547 = vmatpush1.msra.mxu0 %v1514
        %1548 = vmatprep.subr.mxu0 %v1517
        %1549 = vmatpush1.msra.mxu0 %v1516
        %1550 = vmatprep.subr.mxu0 %v1519
        %1551 = vmatpush1.msra.mxu0 %v1518
        %1552 = vmatprep.subr.mxu0 %v1521
        %1553 = vmatpush1.msra.mxu0 %v1520
        %1554 = vmatprep.subr.mxu0 %v1523
        %1555 = vmatpush1.msra.mxu0 %v1522
        %1556 = vmatprep.subr.mxu0 %v1525
        %1557 = vmatpush1.msra.mxu0 %v1524
        %1558 = vmatprep.subr.mxu0 %v1527
        %1559 = vmatpush1.msra.mxu0 %v1526
        %1560 = vmatprep.subr.mxu0 %v1529
        %1561 = vmatpush1.msra.mxu0 %v1528
        %1562 = vmatprep.subr.mxu0 %v1531
        %1563 = vmatpush1.msra.mxu0 %v1530
        %1564 = vmatprep.subr.mxu0 0.0
        %1565 = vmatpush1.msra.mxu0 0.0
        %1566 = vmatprep.subr.mxu0 0.0
        %1567 = vmatpush1.msra.mxu0 0.0
        %1568 = vmatprep.subr.mxu0 0.0
        %1569 = vmatpush1.msra.mxu0 0.0
        %1570 = vmatprep.subr.mxu0 0.0
        %1571 = vmatpush1.msra.mxu0 0.0
        %1572 = vmatprep.subr.mxu0 0.0
        %1573 = vmatpush1.msra.mxu0 0.0
        %1574 = vmatprep.subr.mxu0 0.0
        %1575 = vmatpush1.msra.mxu0 0.0
        %1576 = vmatprep.subr.mxu0 0.0
        %1577 = vmatpush1.msra.mxu0 0.0
        %1578 = vmatprep.subr.mxu0 0.0
        %1579 = vmatpush1.msra.mxu0 0.0
        %1580 = vmatprep.subr.mxu0 0.0
        %1581 = vmatpush1.msra.mxu0 0.0
        %1582 = vmatprep.subr.mxu0 0.0
        %1583 = vmatpush1.msra.mxu0 0.0
        %1584 = vmatprep.subr.mxu0 0.0
        %1585 = vmatpush1.msra.mxu0 0.0
        %1586 = vmatprep.subr.mxu0 0.0
        %1587 = vmatpush1.msra.mxu0 0.0
        %1588 = vmatprep.subr.mxu0 0.0
        %1589 = vmatpush1.msra.mxu0 0.0
        %1590 = vmatprep.subr.mxu0 0.0
        %1591 = vmatpush1.msra.mxu0 0.0
        %1592 = vmatprep.subr.mxu0 0.0
        %1593 = vmatpush1.msra.mxu0 0.0
        %1594 = vmatprep.subr.mxu0 0.0
        %1595 = vmatpush1.msra.mxu0 0.0
        %1596 = vmatprep.mubr.f32.mxu0 0.0
        %1597 = vmatmul.mubr.f32.gmra.mrb[0].mxu0 %v1038
        %v1598 = vpop.f32.mrb[0].mxu0
        %v1599 = vadd.f32 0.0, %v1598
        %v1600 = vpop.f32.mrb[0].mxu0
        %v1601 = vadd.f32 0.0, %v1600
        %1602 = vmatprep.mubr.f32.mxu0 0.0
        %1603 = vmatmul.mubr.f32.gmra.mrb[0].mxu0 %v1039
        %v1604 = vpop.f32.mrb[0].mxu0
        %v1605 = vadd.f32 0.0, %v1604
        %v1606 = vpop.f32.mrb[0].mxu0
        %v1607 = vadd.f32 0.0, %v1606
        %1608 = vmatprep.mubr.f32.mxu0 0.0
        %1609 = vmatmul.mubr.f32.gmra.mrb[0].mxu0 %v1040
        %v1610 = vpop.f32.mrb[0].mxu0
        %v1611 = vadd.f32 0.0, %v1610
        %v1612 = vpop.f32.mrb[0].mxu0
        %v1613 = vadd.f32 0.0, %v1612
        %1614 = vmatprep.mubr.f32.mxu0 0.0
        %1615 = vmatmul.mubr.f32.gmra.mrb[0].mxu0 %v1041
        %v1616 = vpop.f32.mrb[0].mxu0
        %v1617 = vadd.f32 0.0, %v1616
        %v1618 = vpop.f32.mrb[0].mxu0
        %v1619 = vadd.f32 0.0, %v1618
        %1620 = vmatprep.mubr.f32.mxu0 0.0
        %1621 = vmatmul.mubr.f32.gmra.mrb[0].mxu0 %v1042
        %v1622 = vpop.f32.mrb[0].mxu0
        %v1623 = vadd.f32 0.0, %v1622
        %v1624 = vpop.f32.mrb[0].mxu0
        %v1625 = vadd.f32 0.0, %v1624
        %1626 = vmatprep.mubr.f32.mxu0 0.0
        %1627 = vmatmul.mubr.f32.gmra.mrb[0].mxu0 %v1043
        %v1628 = vpop.f32.mrb[0].mxu0
        %v1629 = vadd.f32 0.0, %v1628
        %v1630 = vpop.f32.mrb[0].mxu0
        %v1631 = vadd.f32 0.0, %v1630
        %1632 = vmatprep.mubr.f32.mxu0 0.0
        %1633 = vmatmul.mubr.f32.gmra.mrb[0].mxu0 %v1044
        %v1634 = vpop.f32.mrb[0].mxu0
        %v1635 = vadd.f32 0.0, %v1634
        %v1636 = vpop.f32.mrb[0].mxu0
        %v1637 = vadd.f32 0.0, %v1636
        %1638 = vmatprep.mubr.f32.mxu0 0.0
        %1639 = vmatmul.mubr.f32.gmra.mrb[0].mxu0 %v1045
        %v1640 = vpop.f32.mrb[0].mxu0
        %v1641 = vadd.f32 0.0, %v1640
        %v1642 = vpop.f32.mrb[0].mxu0
        %v1643 = vadd.f32 0.0, %v1642
        %1644 = vmatprep.mubr.f32.mxu0 0.0
        %1645 = vmatmul.mubr.f32.gmra.mrb[0].mxu0 %v1046
        %v1646 = vpop.f32.mrb[0].mxu0
        %v1647 = vadd.f32 0.0, %v1646
        %v1648 = vpop.f32.mrb[0].mxu0
        %v1649 = vadd.f32 0.0, %v1648
        %1650 = vmatprep.mubr.f32.mxu0 0.0
        %1651 = vmatmul.mubr.f32.gmra.mrb[0].mxu0 %v1047
        %v1652 = vpop.f32.mrb[0].mxu0
        %v1653 = vadd.f32 0.0, %v1652
        %v1654 = vpop.f32.mrb[0].mxu0
        %v1655 = vadd.f32 0.0, %v1654
        %1656 = vmatprep.mubr.f32.mxu0 0.0
        %1657 = vmatmul.mubr.f32.gmra.mrb[0].mxu0 %v1048
        %v1658 = vpop.f32.mrb[0].mxu0
        %v1659 = vadd.f32 0.0, %v1658
        %v1660 = vpop.f32.mrb[0].mxu0
        %v1661 = vadd.f32 0.0, %v1660
        %1662 = vmatprep.mubr.f32.mxu0 0.0
        %1663 = vmatmul.mubr.f32.gmra.mrb[0].mxu0 %v1049
        %v1664 = vpop.f32.mrb[0].mxu0
        %v1665 = vadd.f32 0.0, %v1664
        %v1666 = vpop.f32.mrb[0].mxu0
        %v1667 = vadd.f32 0.0, %v1666
        %1668 = vmatprep.mubr.f32.mxu0 0.0
        %1669 = vmatmul.mubr.f32.gmra.mrb[0].mxu0 %v1050
        %v1670 = vpop.f32.mrb[0].mxu0
        %v1671 = vadd.f32 0.0, %v1670
        %v1672 = vpop.f32.mrb[0].mxu0
        %v1673 = vadd.f32 0.0, %v1672
        %1674 = vmatprep.mubr.f32.mxu0 0.0
        %1675 = vmatmul.mubr.f32.gmra.mrb[0].mxu0 %v1051
        %v1676 = vpop.f32.mrb[0].mxu0
        %v1677 = vadd.f32 0.0, %v1676
        %v1678 = vpop.f32.mrb[0].mxu0
        %v1679 = vadd.f32 0.0, %v1678
        %1680 = vmatprep.mubr.f32.mxu0 0.0
        %1681 = vmatmul.mubr.f32.gmra.mrb[0].mxu0 %v1052
        %v1682 = vpop.f32.mrb[0].mxu0
        %v1683 = vadd.f32 0.0, %v1682
        %v1684 = vpop.f32.mrb[0].mxu0
        %v1685 = vadd.f32 0.0, %v1684
        %1686 = vmatprep.mubr.f32.mxu0 0.0
        %1687 = vmatmul.mubr.f32.gmra.mrb[0].mxu0 %v1053
        %v1688 = vpop.f32.mrb[0].mxu0
        %v1689 = vadd.f32 0.0, %v1688
        %v1690 = vpop.f32.mrb[0].mxu0
        %v1691 = vadd.f32 0.0, %v1690
        %1692 = vmatprep.mubr.f32.mxu0 0.0
        %1693 = vmatmul.mubr.f32.gmra.mrb[0].mxu0 %v1054
        %v1694 = vpop.f32.mrb[0].mxu0
        %v1695 = vadd.f32 0.0, %v1694
        %v1696 = vpop.f32.mrb[0].mxu0
        %v1697 = vadd.f32 0.0, %v1696
        %1698 = vmatprep.mubr.f32.mxu0 0.0
        %1699 = vmatmul.mubr.f32.gmra.mrb[0].mxu0 %v1055
        %v1700 = vpop.f32.mrb[0].mxu0
        %v1701 = vadd.f32 0.0, %v1700
        %v1702 = vpop.f32.mrb[0].mxu0
        %v1703 = vadd.f32 0.0, %v1702
        %1704 = vmatprep.mubr.f32.mxu0 0.0
        %1705 = vmatmul.mubr.f32.gmra.mrb[0].mxu0 %v1056
        %v1706 = vpop.f32.mrb[0].mxu0
        %v1707 = vadd.f32 0.0, %v1706
        %v1708 = vpop.f32.mrb[0].mxu0
        %v1709 = vadd.f32 0.0, %v1708
        %1710 = vmatprep.mubr.f32.mxu0 0.0
        %1711 = vmatmul.mubr.f32.gmra.mrb[0].mxu0 %v1057
        %v1712 = vpop.f32.mrb[0].mxu0
        %v1713 = vadd.f32 0.0, %v1712
        %v1714 = vpop.f32.mrb[0].mxu0
        %v1715 = vadd.f32 0.0, %v1714
        %1716 = vmatprep.mubr.f32.mxu0 0.0
        %1717 = vmatmul.mubr.f32.gmra.mrb[0].mxu0 %v1058
        %v1718 = vpop.f32.mrb[0].mxu0
        %v1719 = vadd.f32 0.0, %v1718
        %v1720 = vpop.f32.mrb[0].mxu0
        %v1721 = vadd.f32 0.0, %v1720
        %1722 = vmatprep.mubr.f32.mxu0 0.0
        %1723 = vmatmul.mubr.f32.gmra.mrb[0].mxu0 %v1059
        %v1724 = vpop.f32.mrb[0].mxu0
        %v1725 = vadd.f32 0.0, %v1724
        %v1726 = vpop.f32.mrb[0].mxu0
        %v1727 = vadd.f32 0.0, %v1726
        %1728 = vmatprep.mubr.f32.mxu0 0.0
        %1729 = vmatmul.mubr.f32.gmra.mrb[0].mxu0 %v1060
        %v1730 = vpop.f32.mrb[0].mxu0
        %v1731 = vadd.f32 0.0, %v1730
        %v1732 = vpop.f32.mrb[0].mxu0
        %v1733 = vadd.f32 0.0, %v1732
        %1734 = vmatprep.mubr.f32.mxu0 0.0
        %1735 = vmatmul.mubr.f32.gmra.mrb[0].mxu0 %v1061
        %v1736 = vpop.f32.mrb[0].mxu0
        %v1737 = vadd.f32 0.0, %v1736
        %v1738 = vpop.f32.mrb[0].mxu0
        %v1739 = vadd.f32 0.0, %v1738
        %1740 = vmatprep.mubr.f32.mxu0 0.0
        %1741 = vmatmul.mubr.f32.gmra.mrb[0].mxu0 %v1062
        %v1742 = vpop.f32.mrb[0].mxu0
        %v1743 = vadd.f32 0.0, %v1742
        %v1744 = vpop.f32.mrb[0].mxu0
        %v1745 = vadd.f32 0.0, %v1744
        %1746 = vmatprep.mubr.f32.mxu0 0.0
        %1747 = vmatmul.mubr.f32.gmra.mrb[0].mxu0 %v1063
        %v1748 = vpop.f32.mrb[0].mxu0
        %v1749 = vadd.f32 0.0, %v1748
        %v1750 = vpop.f32.mrb[0].mxu0
        %v1751 = vadd.f32 0.0, %v1750
        %1752 = vmatprep.mubr.f32.mxu0 0.0
        %1753 = vmatmul.mubr.f32.gmra.mrb[0].mxu0 %v1064
        %v1754 = vpop.f32.mrb[0].mxu0
        %v1755 = vadd.f32 0.0, %v1754
        %v1756 = vpop.f32.mrb[0].mxu0
        %v1757 = vadd.f32 0.0, %v1756
        %1758 = vmatprep.mubr.f32.mxu0 0.0
        %1759 = vmatmul.mubr.f32.gmra.mrb[0].mxu0 %v1065
        %v1760 = vpop.f32.mrb[0].mxu0
        %v1761 = vadd.f32 0.0, %v1760
        %v1762 = vpop.f32.mrb[0].mxu0
        %v1763 = vadd.f32 0.0, %v1762
        %1764 = vmatprep.mubr.f32.mxu0 0.0
        %1765 = vmatmul.mubr.f32.gmra.mrb[0].mxu0 %v1066
        %v1766 = vpop.f32.mrb[0].mxu0
        %v1767 = vadd.f32 0.0, %v1766
        %v1768 = vpop.f32.mrb[0].mxu0
        %v1769 = vadd.f32 0.0, %v1768
        %1770 = vmatprep.mubr.f32.mxu0 0.0
        %1771 = vmatmul.mubr.f32.gmra.mrb[0].mxu0 %v1067
        %v1772 = vpop.f32.mrb[0].mxu0
        %v1773 = vadd.f32 0.0, %v1772
        %v1774 = vpop.f32.mrb[0].mxu0
        %v1775 = vadd.f32 0.0, %v1774
        %1776 = vmatprep.mubr.f32.mxu0 0.0
        %1777 = vmatmul.mubr.f32.gmra.mrb[0].mxu0 %v1068
        %v1778 = vpop.f32.mrb[0].mxu0
        %v1779 = vadd.f32 0.0, %v1778
        %v1780 = vpop.f32.mrb[0].mxu0
        %v1781 = vadd.f32 0.0, %v1780
        %1782 = vmatprep.mubr.f32.mxu0 0.0
        %1783 = vmatmul.mubr.f32.gmra.mrb[0].mxu0 %v1069
        %v1784 = vpop.f32.mrb[0].mxu0
        %v1785 = vadd.f32 0.0, %v1784
        %v1786 = vpop.f32.mrb[0].mxu0
        %v1787 = vadd.f32 0.0, %v1786
        %1788 = vdwg.mxu0
        %1789 = vmatprep.subr.mxu0 %v1201
        %1790 = vmatpush1.msra.mxu0 %v1200
        %1791 = vmatprep.subr.mxu0 %v1203
        %1792 = vmatpush1.msra.mxu0 %v1202
        %1793 = vmatprep.subr.mxu0 %v1205
        %1794 = vmatpush1.msra.mxu0 %v1204
        %1795 = vmatprep.subr.mxu0 %v1207
        %1796 = vmatpush1.msra.mxu0 %v1206
        %1797 = vmatprep.subr.mxu0 %v1209
        %1798 = vmatpush1.msra.mxu0 %v1208
        %1799 = vmatprep.subr.mxu0 %v1211
        %1800 = vmatpush1.msra.mxu0 %v1210
        %1801 = vmatprep.subr.mxu0 %v1213
        %1802 = vmatpush1.msra.mxu0 %v1212
        %1803 = vmatprep.subr.mxu0 %v1215
        %1804 = vmatpush1.msra.mxu0 %v1214
        %1805 = vmatprep.subr.mxu0 %v1217
        %1806 = vmatpush1.msra.mxu0 %v1216
        %1807 = vmatprep.subr.mxu0 %v1219
        %1808 = vmatpush1.msra.mxu0 %v1218
        %1809 = vmatprep.subr.mxu0 %v1221
        %1810 = vmatpush1.msra.mxu0 %v1220
        %1811 = vmatprep.subr.mxu0 %v1223
        %1812 = vmatpush1.msra.mxu0 %v1222
        %1813 = vmatprep.subr.mxu0 %v1225
        %1814 = vmatpush1.msra.mxu0 %v1224
        %1815 = vmatprep.subr.mxu0 %v1227
        %1816 = vmatpush1.msra.mxu0 %v1226
        %1817 = vmatprep.subr.mxu0 %v1229
        %1818 = vmatpush1.msra.mxu0 %v1228
        %1819 = vmatprep.subr.mxu0 %v1231
        %1820 = vmatpush1.msra.mxu0 %v1230
        %1821 = vmatprep.subr.mxu0 0.0
        %1822 = vmatpush1.msra.mxu0 0.0
        %1823 = vmatprep.subr.mxu0 0.0
        %1824 = vmatpush1.msra.mxu0 0.0
        %1825 = vmatprep.subr.mxu0 0.0
        %1826 = vmatpush1.msra.mxu0 0.0
        %1827 = vmatprep.subr.mxu0 0.0
        %1828 = vmatpush1.msra.mxu0 0.0
        %1829 = vmatprep.subr.mxu0 0.0
        %1830 = vmatpush1.msra.mxu0 0.0
        %1831 = vmatprep.subr.mxu0 0.0
        %1832 = vmatpush1.msra.mxu0 0.0
        %1833 = vmatprep.subr.mxu0 0.0
        %1834 = vmatpush1.msra.mxu0 0.0
        %1835 = vmatprep.subr.mxu0 0.0
        %1836 = vmatpush1.msra.mxu0 0.0
        %1837 = vmatprep.subr.mxu0 0.0
        %1838 = vmatpush1.msra.mxu0 0.0
        %1839 = vmatprep.subr.mxu0 0.0
        %1840 = vmatpush1.msra.mxu0 0.0
        %1841 = vmatprep.subr.mxu0 0.0
        %1842 = vmatpush1.msra.mxu0 0.0
        %1843 = vmatprep.subr.mxu0 0.0
        %1844 = vmatpush1.msra.mxu0 0.0
        %1845 = vmatprep.subr.mxu0 0.0
        %1846 = vmatpush1.msra.mxu0 0.0
        %1847 = vmatprep.subr.mxu0 0.0
        %1848 = vmatpush1.msra.mxu0 0.0
        %1849 = vmatprep.subr.mxu0 0.0
        %1850 = vmatpush1.msra.mxu0 0.0
        %1851 = vmatprep.subr.mxu0 0.0
        %1852 = vmatpush1.msra.mxu0 0.0
        %1853 = vmatprep.mubr.f32.mxu0 0.0
        %1854 = vmatmul.mubr.f32.gmra.mrb[0].mxu0 %v1167
        %v1855 = vpop.f32.mrb[0].mxu0
        %v1856 = vadd.f32 %v1236, %v1855
        %v1857 = vpop.f32.mrb[0].mxu0
        %v1858 = vadd.f32 %v1240, %v1857
        %1859 = vmatprep.mubr.f32.mxu0 0.0
        %1860 = vmatmul.mubr.f32.gmra.mrb[0].mxu0 %v1168
        %v1861 = vpop.f32.mrb[0].mxu0
        %v1862 = vadd.f32 %v1236, %v1861
        %v1863 = vpop.f32.mrb[0].mxu0
        %v1864 = vadd.f32 %v1240, %v1863
        %1865 = vmatprep.mubr.f32.mxu0 0.0
        %1866 = vmatmul.mubr.f32.gmra.mrb[0].mxu0 %v1169
        %v1867 = vpop.f32.mrb[0].mxu0
        %v1868 = vadd.f32 %v1236, %v1867
        %v1869 = vpop.f32.mrb[0].mxu0
        %v1870 = vadd.f32 %v1240, %v1869
        %1871 = vmatprep.mubr.f32.mxu0 0.0
        %1872 = vmatmul.mubr.f32.gmra.mrb[0].mxu0 %v1170
        %v1873 = vpop.f32.mrb[0].mxu0
        %v1874 = vadd.f32 %v1236, %v1873
        %v1875 = vpop.f32.mrb[0].mxu0
        %v1876 = vadd.f32 %v1240, %v1875
        %1877 = vmatprep.mubr.f32.mxu0 0.0
        %1878 = vmatmul.mubr.f32.gmra.mrb[0].mxu0 %v1171
        %v1879 = vpop.f32.mrb[0].mxu0
        %v1880 = vadd.f32 %v1236, %v1879
        %v1881 = vpop.f32.mrb[0].mxu0
        %v1882 = vadd.f32 %v1240, %v1881
        %1883 = vmatprep.mubr.f32.mxu0 0.0
        %1884 = vmatmul.mubr.f32.gmra.mrb[0].mxu0 %v1172
        %v1885 = vpop.f32.mrb[0].mxu0
        %v1886 = vadd.f32 %v1236, %v1885
        %v1887 = vpop.f32.mrb[0].mxu0
        %v1888 = vadd.f32 %v1240, %v1887
        %1889 = vmatprep.mubr.f32.mxu0 0.0
        %1890 = vmatmul.mubr.f32.gmra.mrb[0].mxu0 %v1173
        %v1891 = vpop.f32.mrb[0].mxu0
        %v1892 = vadd.f32 %v1236, %v1891
        %v1893 = vpop.f32.mrb[0].mxu0
        %v1894 = vadd.f32 %v1240, %v1893
        %1895 = vmatprep.mubr.f32.mxu0 0.0
        %1896 = vmatmul.mubr.f32.gmra.mrb[0].mxu0 %v1174
        %v1897 = vpop.f32.mrb[0].mxu0
        %v1898 = vadd.f32 %v1236, %v1897
        %v1899 = vpop.f32.mrb[0].mxu0
        %v1900 = vadd.f32 %v1240, %v1899
        %1901 = vmatprep.mubr.f32.mxu0 0.0
        %1902 = vmatmul.mubr.f32.gmra.mrb[0].mxu0 %v1175
        %v1903 = vpop.f32.mrb[0].mxu0
        %v1904 = vadd.f32 %v1236, %v1903
        %v1905 = vpop.f32.mrb[0].mxu0
        %v1906 = vadd.f32 %v1240, %v1905
        %1907 = vmatprep.mubr.f32.mxu0 0.0
        %1908 = vmatmul.mubr.f32.gmra.mrb[0].mxu0 %v1176
        %v1909 = vpop.f32.mrb[0].mxu0
        %v1910 = vadd.f32 %v1236, %v1909
        %v1911 = vpop.f32.mrb[0].mxu0
        %v1912 = vadd.f32 %v1240, %v1911
        %1913 = vmatprep.mubr.f32.mxu0 0.0
        %1914 = vmatmul.mubr.f32.gmra.mrb[0].mxu0 %v1177
        %v1915 = vpop.f32.mrb[0].mxu0
        %v1916 = vadd.f32 %v1236, %v1915
        %v1917 = vpop.f32.mrb[0].mxu0
        %v1918 = vadd.f32 %v1240, %v1917
        %1919 = vmatprep.mubr.f32.mxu0 0.0
        %1920 = vmatmul.mubr.f32.gmra.mrb[0].mxu0 %v1178
        %v1921 = vpop.f32.mrb[0].mxu0
        %v1922 = vadd.f32 %v1236, %v1921
        %v1923 = vpop.f32.mrb[0].mxu0
        %v1924 = vadd.f32 %v1240, %v1923
        %1925 = vmatprep.mubr.f32.mxu0 0.0
        %1926 = vmatmul.mubr.f32.gmra.mrb[0].mxu0 %v1179
        %v1927 = vpop.f32.mrb[0].mxu0
        %v1928 = vadd.f32 %v1236, %v1927
        %v1929 = vpop.f32.mrb[0].mxu0
        %v1930 = vadd.f32 %v1240, %v1929
        %1931 = vmatprep.mubr.f32.mxu0 0.0
        %1932 = vmatmul.mubr.f32.gmra.mrb[0].mxu0 %v1180
        %v1933 = vpop.f32.mrb[0].mxu0
        %v1934 = vadd.f32 %v1236, %v1933
        %v1935 = vpop.f32.mrb[0].mxu0
        %v1936 = vadd.f32 %v1240, %v1935
        %1937 = vmatprep.mubr.f32.mxu0 0.0
        %1938 = vmatmul.mubr.f32.gmra.mrb[0].mxu0 %v1181
        %v1939 = vpop.f32.mrb[0].mxu0
        %v1940 = vadd.f32 %v1236, %v1939
        %v1941 = vpop.f32.mrb[0].mxu0
        %v1942 = vadd.f32 %v1240, %v1941
        %1943 = vmatprep.mubr.f32.mxu0 0.0
        %1944 = vmatmul.mubr.f32.gmra.mrb[0].mxu0 %v1182
        %v1945 = vpop.f32.mrb[0].mxu0
        %v1946 = vadd.f32 %v1236, %v1945
        %v1947 = vpop.f32.mrb[0].mxu0
        %v1948 = vadd.f32 %v1240, %v1947
        %1949 = vmatprep.mubr.f32.mxu0 0.0
        %1950 = vmatmul.mubr.f32.gmra.mrb[0].mxu0 %v1183
        %v1951 = vpop.f32.mrb[0].mxu0
        %v1952 = vadd.f32 %v1236, %v1951
        %v1953 = vpop.f32.mrb[0].mxu0
        %v1954 = vadd.f32 %v1240, %v1953
        %1955 = vmatprep.mubr.f32.mxu0 0.0
        %1956 = vmatmul.mubr.f32.gmra.mrb[0].mxu0 %v1184
        %v1957 = vpop.f32.mrb[0].mxu0
        %v1958 = vadd.f32 %v1236, %v1957
        %v1959 = vpop.f32.mrb[0].mxu0
        %v1960 = vadd.f32 %v1240, %v1959
        %1961 = vmatprep.mubr.f32.mxu0 0.0
        %1962 = vmatmul.mubr.f32.gmra.mrb[0].mxu0 %v1185
        %v1963 = vpop.f32.mrb[0].mxu0
        %v1964 = vadd.f32 %v1236, %v1963
        %v1965 = vpop.f32.mrb[0].mxu0
        %v1966 = vadd.f32 %v1240, %v1965
        %1967 = vmatprep.mubr.f32.mxu0 0.0
        %1968 = vmatmul.mubr.f32.gmra.mrb[0].mxu0 %v1186
        %v1969 = vpop.f32.mrb[0].mxu0
        %v1970 = vadd.f32 %v1236, %v1969
        %v1971 = vpop.f32.mrb[0].mxu0
        %v1972 = vadd.f32 %v1240, %v1971
        %1973 = vmatprep.mubr.f32.mxu0 0.0
        %1974 = vmatmul.mubr.f32.gmra.mrb[0].mxu0 %v1187
        %v1975 = vpop.f32.mrb[0].mxu0
        %v1976 = vadd.f32 %v1236, %v1975
        %v1977 = vpop.f32.mrb[0].mxu0
        %v1978 = vadd.f32 %v1240, %v1977
        %1979 = vmatprep.mubr.f32.mxu0 0.0
        %1980 = vmatmul.mubr.f32.gmra.mrb[0].mxu0 %v1188
        %v1981 = vpop.f32.mrb[0].mxu0
        %v1982 = vadd.f32 %v1236, %v1981
        %v1983 = vpop.f32.mrb[0].mxu0
        %v1984 = vadd.f32 %v1240, %v1983
        %1985 = vmatprep.mubr.f32.mxu0 0.0
        %1986 = vmatmul.mubr.f32.gmra.mrb[0].mxu0 %v1189
        %v1987 = vpop.f32.mrb[0].mxu0
        %v1988 = vadd.f32 %v1236, %v1987
        %v1989 = vpop.f32.mrb[0].mxu0
        %v1990 = vadd.f32 %v1240, %v1989
        %1991 = vmatprep.mubr.f32.mxu0 0.0
        %1992 = vmatmul.mubr.f32.gmra.mrb[0].mxu0 %v1190
        %v1993 = vpop.f32.mrb[0].mxu0
        %v1994 = vadd.f32 %v1236, %v1993
        %v1995 = vpop.f32.mrb[0].mxu0
        %v1996 = vadd.f32 %v1240, %v1995
        %1997 = vmatprep.mubr.f32.mxu0 0.0
        %1998 = vmatmul.mubr.f32.gmra.mrb[0].mxu0 %v1191
        %v1999 = vpop.f32.mrb[0].mxu0
        %v2000 = vadd.f32 %v1236, %v1999
        %v2001 = vpop.f32.mrb[0].mxu0
        %v2002 = vadd.f32 %v1240, %v2001
        %2003 = vmatprep.mubr.f32.mxu0 0.0
        %2004 = vmatmul.mubr.f32.gmra.mrb[0].mxu0 %v1192
        %v2005 = vpop.f32.mrb[0].mxu0
        %v2006 = vadd.f32 %v1236, %v2005
        %v2007 = vpop.f32.mrb[0].mxu0
        %v2008 = vadd.f32 %v1240, %v2007
        %2009 = vmatprep.mubr.f32.mxu0 0.0
        %2010 = vmatmul.mubr.f32.gmra.mrb[0].mxu0 %v1193
        %v2011 = vpop.f32.mrb[0].mxu0
        %v2012 = vadd.f32 %v1236, %v2011
        %v2013 = vpop.f32.mrb[0].mxu0
        %v2014 = vadd.f32 %v1240, %v2013
        %2015 = vmatprep.mubr.f32.mxu0 0.0
        %2016 = vmatmul.mubr.f32.gmra.mrb[0].mxu0 %v1194
        %v2017 = vpop.f32.mrb[0].mxu0
        %v2018 = vadd.f32 %v1236, %v2017
        %v2019 = vpop.f32.mrb[0].mxu0
        %v2020 = vadd.f32 %v1240, %v2019
        %2021 = vmatprep.mubr.f32.mxu0 0.0
        %2022 = vmatmul.mubr.f32.gmra.mrb[0].mxu0 %v1195
        %v2023 = vpop.f32.mrb[0].mxu0
        %v2024 = vadd.f32 %v1236, %v2023
        %v2025 = vpop.f32.mrb[0].mxu0
        %v2026 = vadd.f32 %v1240, %v2025
        %2027 = vmatprep.mubr.f32.mxu0 0.0
        %2028 = vmatmul.mubr.f32.gmra.mrb[0].mxu0 %v1196
        %v2029 = vpop.f32.mrb[0].mxu0
        %v2030 = vadd.f32 %v1236, %v2029
        %v2031 = vpop.f32.mrb[0].mxu0
        %v2032 = vadd.f32 %v1240, %v2031
        %2033 = vmatprep.mubr.f32.mxu0 0.0
        %2034 = vmatmul.mubr.f32.gmra.mrb[0].mxu0 %v1197
        %v2035 = vpop.f32.mrb[0].mxu0
        %v2036 = vadd.f32 %v1236, %v2035
        %v2037 = vpop.f32.mrb[0].mxu0
        %v2038 = vadd.f32 %v1240, %v2037
        %2039 = vmatprep.mubr.f32.mxu0 0.0
        %2040 = vmatmul.mubr.f32.gmra.mrb[0].mxu0 %v1198
        %v2041 = vpop.f32.mrb[0].mxu0
        %v2042 = vadd.f32 %v1236, %v2041
        %v2043 = vpop.f32.mrb[0].mxu0
        %v2044 = vadd.f32 %v1240, %v2043
        %2045 = vdwg.mxu0
        %2046 = vmatprep.subr.mxu0 %v1501
        %2047 = vmatpush1.msra.mxu0 %v1500
        %2048 = vmatprep.subr.mxu0 %v1503
        %2049 = vmatpush1.msra.mxu0 %v1502
        %2050 = vmatprep.subr.mxu0 %v1505
        %2051 = vmatpush1.msra.mxu0 %v1504
        %2052 = vmatprep.subr.mxu0 %v1507
        %2053 = vmatpush1.msra.mxu0 %v1506
        %2054 = vmatprep.subr.mxu0 %v1509
        %2055 = vmatpush1.msra.mxu0 %v1508
        %2056 = vmatprep.subr.mxu0 %v1511
        %2057 = vmatpush1.msra.mxu0 %v1510
        %2058 = vmatprep.subr.mxu0 %v1513
        %2059 = vmatpush1.msra.mxu0 %v1512
        %2060 = vmatprep.subr.mxu0 %v1515
        %2061 = vmatpush1.msra.mxu0 %v1514
        %2062 = vmatprep.subr.mxu0 %v1517
        %2063 = vmatpush1.msra.mxu0 %v1516
        %2064 = vmatprep.subr.mxu0 %v1519
        %2065 = vmatpush1.msra.mxu0 %v1518
        %2066 = vmatprep.subr.mxu0 %v1521
        %2067 = vmatpush1.msra.mxu0 %v1520
        %2068 = vmatprep.subr.mxu0 %v1523
        %2069 = vmatpush1.msra.mxu0 %v1522
        %2070 = vmatprep.subr.mxu0 %v1525
        %2071 = vmatpush1.msra.mxu0 %v1524
        %2072 = vmatprep.subr.mxu0 %v1527
        %2073 = vmatpush1.msra.mxu0 %v1526
        %2074 = vmatprep.subr.mxu0 %v1529
        %2075 = vmatpush1.msra.mxu0 %v1528
        %2076 = vmatprep.subr.mxu0 %v1531
        %2077 = vmatpush1.msra.mxu0 %v1530
        %2078 = vmatprep.subr.mxu0 0.0
        %2079 = vmatpush1.msra.mxu0 0.0
        %2080 = vmatprep.subr.mxu0 0.0
        %2081 = vmatpush1.msra.mxu0 0.0
        %2082 = vmatprep.subr.mxu0 0.0
        %2083 = vmatpush1.msra.mxu0 0.0
        %2084 = vmatprep.subr.mxu0 0.0
        %2085 = vmatpush1.msra.mxu0 0.0
        %2086 = vmatprep.subr.mxu0 0.0
        %2087 = vmatpush1.msra.mxu0 0.0
        %2088 = vmatprep.subr.mxu0 0.0
        %2089 = vmatpush1.msra.mxu0 0.0
        %2090 = vmatprep.subr.mxu0 0.0
        %2091 = vmatpush1.msra.mxu0 0.0
        %2092 = vmatprep.subr.mxu0 0.0
        %2093 = vmatpush1.msra.mxu0 0.0
        %2094 = vmatprep.subr.mxu0 0.0
        %2095 = vmatpush1.msra.mxu0 0.0
        %2096 = vmatprep.subr.mxu0 0.0
        %2097 = vmatpush1.msra.mxu0 0.0
        %2098 = vmatprep.subr.mxu0 0.0
        %2099 = vmatpush1.msra.mxu0 0.0
        %2100 = vmatprep.subr.mxu0 0.0
        %2101 = vmatpush1.msra.mxu0 0.0
        %2102 = vmatprep.subr.mxu0 0.0
        %2103 = vmatpush1.msra.mxu0 0.0
        %2104 = vmatprep.subr.mxu0 0.0
        %2105 = vmatpush1.msra.mxu0 0.0
        %2106 = vmatprep.subr.mxu0 0.0
        %2107 = vmatpush1.msra.mxu0 0.0
        %2108 = vmatprep.subr.mxu0 0.0
        %2109 = vmatpush1.msra.mxu0 0.0
        %2110 = vmatprep.mubr.f32.mxu0 0.0
        %2111 = vmatmul.mubr.f32.gmra.mrb[0].mxu0 %v1167
        %v2112 = vpop.f32.mrb[0].mxu0
        %v2113 = vadd.f32 0.0, %v2112
        %v2114 = vpop.f32.mrb[0].mxu0
        %v2115 = vadd.f32 0.0, %v2114
        %2116 = vmatprep.mubr.f32.mxu0 0.0
        %2117 = vmatmul.mubr.f32.gmra.mrb[0].mxu0 %v1168
        %v2118 = vpop.f32.mrb[0].mxu0
        %v2119 = vadd.f32 0.0, %v2118
        %v2120 = vpop.f32.mrb[0].mxu0
        %v2121 = vadd.f32 0.0, %v2120
        %2122 = vmatprep.mubr.f32.mxu0 0.0
        %2123 = vmatmul.mubr.f32.gmra.mrb[0].mxu0 %v1169
        %v2124 = vpop.f32.mrb[0].mxu0
        %v2125 = vadd.f32 0.0, %v2124
        %v2126 = vpop.f32.mrb[0].mxu0
        %v2127 = vadd.f32 0.0, %v2126
        %2128 = vmatprep.mubr.f32.mxu0 0.0
        %2129 = vmatmul.mubr.f32.gmra.mrb[0].mxu0 %v1170
        %v2130 = vpop.f32.mrb[0].mxu0
        %v2131 = vadd.f32 0.0, %v2130
        %v2132 = vpop.f32.mrb[0].mxu0
        %v2133 = vadd.f32 0.0, %v2132
        %2134 = vmatprep.mubr.f32.mxu0 0.0
        %2135 = vmatmul.mubr.f32.gmra.mrb[0].mxu0 %v1171
        %v2136 = vpop.f32.mrb[0].mxu0
        %v2137 = vadd.f32 0.0, %v2136
        %v2138 = vpop.f32.mrb[0].mxu0
        %v2139 = vadd.f32 0.0, %v2138
        %2140 = vmatprep.mubr.f32.mxu0 0.0
        %2141 = vmatmul.mubr.f32.gmra.mrb[0].mxu0 %v1172
        %v2142 = vpop.f32.mrb[0].mxu0
        %v2143 = vadd.f32 0.0, %v2142
        %v2144 = vpop.f32.mrb[0].mxu0
        %v2145 = vadd.f32 0.0, %v2144
        %2146 = vmatprep.mubr.f32.mxu0 0.0
        %2147 = vmatmul.mubr.f32.gmra.mrb[0].mxu0 %v1173
        %v2148 = vpop.f32.mrb[0].mxu0
        %v2149 = vadd.f32 0.0, %v2148
        %v2150 = vpop.f32.mrb[0].mxu0
        %v2151 = vadd.f32 0.0, %v2150
        %2152 = vmatprep.mubr.f32.mxu0 0.0
        %2153 = vmatmul.mubr.f32.gmra.mrb[0].mxu0 %v1174
        %v2154 = vpop.f32.mrb[0].mxu0
        %v2155 = vadd.f32 0.0, %v2154
        %v2156 = vpop.f32.mrb[0].mxu0
        %v2157 = vadd.f32 0.0, %v2156
        %2158 = vmatprep.mubr.f32.mxu0 0.0
        %2159 = vmatmul.mubr.f32.gmra.mrb[0].mxu0 %v1175
        %v2160 = vpop.f32.mrb[0].mxu0
        %v2161 = vadd.f32 0.0, %v2160
        %v2162 = vpop.f32.mrb[0].mxu0
        %v2163 = vadd.f32 0.0, %v2162
        %2164 = vmatprep.mubr.f32.mxu0 0.0
        %2165 = vmatmul.mubr.f32.gmra.mrb[0].mxu0 %v1176
        %v2166 = vpop.f32.mrb[0].mxu0
        %v2167 = vadd.f32 0.0, %v2166
        %v2168 = vpop.f32.mrb[0].mxu0
        %v2169 = vadd.f32 0.0, %v2168
        %2170 = vmatprep.mubr.f32.mxu0 0.0
        %2171 = vmatmul.mubr.f32.gmra.mrb[0].mxu0 %v1177
        %v2172 = vpop.f32.mrb[0].mxu0
        %v2173 = vadd.f32 0.0, %v2172
        %v2174 = vpop.f32.mrb[0].mxu0
        %v2175 = vadd.f32 0.0, %v2174
        %2176 = vmatprep.mubr.f32.mxu0 0.0
        %2177 = vmatmul.mubr.f32.gmra.mrb[0].mxu0 %v1178
        %v2178 = vpop.f32.mrb[0].mxu0
        %v2179 = vadd.f32 0.0, %v2178
        %v2180 = vpop.f32.mrb[0].mxu0
        %v2181 = vadd.f32 0.0, %v2180
        %2182 = vmatprep.mubr.f32.mxu0 0.0
        %2183 = vmatmul.mubr.f32.gmra.mrb[0].mxu0 %v1179
        %v2184 = vpop.f32.mrb[0].mxu0
        %v2185 = vadd.f32 0.0, %v2184
        %v2186 = vpop.f32.mrb[0].mxu0
        %v2187 = vadd.f32 0.0, %v2186
        %2188 = vmatprep.mubr.f32.mxu0 0.0
        %2189 = vmatmul.mubr.f32.gmra.mrb[0].mxu0 %v1180
        %v2190 = vpop.f32.mrb[0].mxu0
        %v2191 = vadd.f32 0.0, %v2190
        %v2192 = vpop.f32.mrb[0].mxu0
        %v2193 = vadd.f32 0.0, %v2192
        %2194 = vmatprep.mubr.f32.mxu0 0.0
        %2195 = vmatmul.mubr.f32.gmra.mrb[0].mxu0 %v1181
        %v2196 = vpop.f32.mrb[0].mxu0
        %v2197 = vadd.f32 0.0, %v2196
        %v2198 = vpop.f32.mrb[0].mxu0
        %v2199 = vadd.f32 0.0, %v2198
        %2200 = vmatprep.mubr.f32.mxu0 0.0
        %2201 = vmatmul.mubr.f32.gmra.mrb[0].mxu0 %v1182
        %v2202 = vpop.f32.mrb[0].mxu0
        %v2203 = vadd.f32 0.0, %v2202
        %v2204 = vpop.f32.mrb[0].mxu0
        %v2205 = vadd.f32 0.0, %v2204
        %2206 = vmatprep.mubr.f32.mxu0 0.0
        %2207 = vmatmul.mubr.f32.gmra.mrb[0].mxu0 %v1183
        %v2208 = vpop.f32.mrb[0].mxu0
        %v2209 = vadd.f32 0.0, %v2208
        %v2210 = vpop.f32.mrb[0].mxu0
        %v2211 = vadd.f32 0.0, %v2210
        %2212 = vmatprep.mubr.f32.mxu0 0.0
        %2213 = vmatmul.mubr.f32.gmra.mrb[0].mxu0 %v1184
        %v2214 = vpop.f32.mrb[0].mxu0
        %v2215 = vadd.f32 0.0, %v2214
        %v2216 = vpop.f32.mrb[0].mxu0
        %v2217 = vadd.f32 0.0, %v2216
        %2218 = vmatprep.mubr.f32.mxu0 0.0
        %2219 = vmatmul.mubr.f32.gmra.mrb[0].mxu0 %v1185
        %v2220 = vpop.f32.mrb[0].mxu0
        %v2221 = vadd.f32 0.0, %v2220
        %v2222 = vpop.f32.mrb[0].mxu0
        %v2223 = vadd.f32 0.0, %v2222
        %2224 = vmatprep.mubr.f32.mxu0 0.0
        %2225 = vmatmul.mubr.f32.gmra.mrb[0].mxu0 %v1186
        %v2226 = vpop.f32.mrb[0].mxu0
        %v2227 = vadd.f32 0.0, %v2226
        %v2228 = vpop.f32.mrb[0].mxu0
        %v2229 = vadd.f32 0.0, %v2228
        %2230 = vmatprep.mubr.f32.mxu0 0.0
        %2231 = vmatmul.mubr.f32.gmra.mrb[0].mxu0 %v1187
        %v2232 = vpop.f32.mrb[0].mxu0
        %v2233 = vadd.f32 0.0, %v2232
        %v2234 = vpop.f32.mrb[0].mxu0
        %v2235 = vadd.f32 0.0, %v2234
        %2236 = vmatprep.mubr.f32.mxu0 0.0
        %2237 = vmatmul.mubr.f32.gmra.mrb[0].mxu0 %v1188
        %v2238 = vpop.f32.mrb[0].mxu0
        %v2239 = vadd.f32 0.0, %v2238
        %v2240 = vpop.f32.mrb[0].mxu0
        %v2241 = vadd.f32 0.0, %v2240
        %2242 = vmatprep.mubr.f32.mxu0 0.0
        %2243 = vmatmul.mubr.f32.gmra.mrb[0].mxu0 %v1189
        %v2244 = vpop.f32.mrb[0].mxu0
        %v2245 = vadd.f32 0.0, %v2244
        %v2246 = vpop.f32.mrb[0].mxu0
        %v2247 = vadd.f32 0.0, %v2246
        %2248 = vmatprep.mubr.f32.mxu0 0.0
        %2249 = vmatmul.mubr.f32.gmra.mrb[0].mxu0 %v1190
        %v2250 = vpop.f32.mrb[0].mxu0
        %v2251 = vadd.f32 0.0, %v2250
        %v2252 = vpop.f32.mrb[0].mxu0
        %v2253 = vadd.f32 0.0, %v2252
        %2254 = vmatprep.mubr.f32.mxu0 0.0
        %2255 = vmatmul.mubr.f32.gmra.mrb[0].mxu0 %v1191
        %v2256 = vpop.f32.mrb[0].mxu0
        %v2257 = vadd.f32 0.0, %v2256
        %v2258 = vpop.f32.mrb[0].mxu0
        %v2259 = vadd.f32 0.0, %v2258
        %2260 = vmatprep.mubr.f32.mxu0 0.0
        %2261 = vmatmul.mubr.f32.gmra.mrb[0].mxu0 %v1192
        %v2262 = vpop.f32.mrb[0].mxu0
        %v2263 = vadd.f32 0.0, %v2262
        %v2264 = vpop.f32.mrb[0].mxu0
        %v2265 = vadd.f32 0.0, %v2264
        %2266 = vmatprep.mubr.f32.mxu0 0.0
        %2267 = vmatmul.mubr.f32.gmra.mrb[0].mxu0 %v1193
        %v2268 = vpop.f32.mrb[0].mxu0
        %v2269 = vadd.f32 0.0, %v2268
        %v2270 = vpop.f32.mrb[0].mxu0
        %v2271 = vadd.f32 0.0, %v2270
        %2272 = vmatprep.mubr.f32.mxu0 0.0
        %2273 = vmatmul.mubr.f32.gmra.mrb[0].mxu0 %v1194
        %v2274 = vpop.f32.mrb[0].mxu0
        %v2275 = vadd.f32 0.0, %v2274
        %v2276 = vpop.f32.mrb[0].mxu0
        %v2277 = vadd.f32 0.0, %v2276
        %2278 = vmatprep.mubr.f32.mxu0 0.0
        %2279 = vmatmul.mubr.f32.gmra.mrb[0].mxu0 %v1195
        %v2280 = vpop.f32.mrb[0].mxu0
        %v2281 = vadd.f32 0.0, %v2280
        %v2282 = vpop.f32.mrb[0].mxu0
        %v2283 = vadd.f32 0.0, %v2282
        %2284 = vmatprep.mubr.f32.mxu0 0.0
        %2285 = vmatmul.mubr.f32.gmra.mrb[0].mxu0 %v1196
        %v2286 = vpop.f32.mrb[0].mxu0
        %v2287 = vadd.f32 0.0, %v2286
        %v2288 = vpop.f32.mrb[0].mxu0
        %v2289 = vadd.f32 0.0, %v2288
        %2290 = vmatprep.mubr.f32.mxu0 0.0
        %2291 = vmatmul.mubr.f32.gmra.mrb[0].mxu0 %v1197
        %v2292 = vpop.f32.mrb[0].mxu0
        %v2293 = vadd.f32 0.0, %v2292
        %v2294 = vpop.f32.mrb[0].mxu0
        %v2295 = vadd.f32 0.0, %v2294
        %2296 = vmatprep.mubr.f32.mxu0 0.0
        %2297 = vmatmul.mubr.f32.gmra.mrb[0].mxu0 %v1198
        %v2298 = vpop.f32.mrb[0].mxu0
        %v2299 = vadd.f32 0.0, %v2298
        %v2300 = vpop.f32.mrb[0].mxu0
        %v2301 = vadd.f32 0.0, %v2300
        %2302 = vdwg.mxu0
        %v2303 = vrot.slane %v1599, 1
        %v2304 = vrot.slane %v1605, 1
        %v2305 = vrot.slane %v1611, 1
        %v2306 = vrot.slane %v1617, 1
        %v2307 = vrot.slane %v1623, 1
        %v2308 = vrot.slane %v1629, 1
        %v2309 = vrot.slane %v1635, 1
        %v2310 = vrot.slane %v1641, 1
        %v2311 = vrot.slane %v1647, 1
        %v2312 = vrot.slane %v1653, 1
        %v2313 = vrot.slane %v1659, 1
        %v2314 = vrot.slane %v1665, 1
        %v2315 = vrot.slane %v1671, 1
        %v2316 = vrot.slane %v1677, 1
        %v2317 = vrot.slane %v1683, 1
        %v2318 = vrot.slane %v1689, 1
        %v2319 = vrot.slane %v1695, 1
        %v2320 = vrot.slane %v1701, 1
        %v2321 = vrot.slane %v1707, 1
        %v2322 = vrot.slane %v1713, 1
        %v2323 = vrot.slane %v1719, 1
        %v2324 = vrot.slane %v1725, 1
        %v2325 = vrot.slane %v1731, 1
        %v2326 = vrot.slane %v1737, 1
        %v2327 = vrot.slane %v1743, 1
        %v2328 = vrot.slane %v1749, 1
        %v2329 = vrot.slane %v1755, 1
        %v2330 = vrot.slane %v1761, 1
        %v2331 = vrot.slane %v1767, 1
        %v2332 = vrot.slane %v1773, 1
        %v2333 = vrot.slane %v1779, 1
        %v2334 = vrot.slane %v1785, 1
        %v2335 = vsel %vm973, %v2333, %v2334
        %v2336 = vsel %vm973, %v2332, %v2333
        %v2337 = vsel %vm973, %v2331, %v2332
        %v2338 = vsel %vm973, %v2330, %v2331
        %v2339 = vsel %vm973, %v2329, %v2330
        %v2340 = vsel %vm973, %v2328, %v2329
        %v2341 = vsel %vm973, %v2327, %v2328
        %v2342 = vsel %vm973, %v2326, %v2327
        %v2343 = vsel %vm973, %v2325, %v2326
        %v2344 = vsel %vm973, %v2324, %v2325
        %v2345 = vsel %vm973, %v2323, %v2324
        %v2346 = vsel %vm973, %v2322, %v2323
        %v2347 = vsel %vm973, %v2321, %v2322
        %v2348 = vsel %vm973, %v2320, %v2321
        %v2349 = vsel %vm973, %v2319, %v2320
        %v2350 = vsel %vm973, %v2318, %v2319
        %v2351 = vsel %vm973, %v2317, %v2318
        %v2352 = vsel %vm973, %v2316, %v2317
        %v2353 = vsel %vm973, %v2315, %v2316
        %v2354 = vsel %vm973, %v2314, %v2315
        %v2355 = vsel %vm973, %v2313, %v2314
        %v2356 = vsel %vm973, %v2312, %v2313
        %v2357 = vsel %vm973, %v2311, %v2312
        %v2358 = vsel %vm973, %v2310, %v2311
        %v2359 = vsel %vm973, %v2309, %v2310
        %v2360 = vsel %vm973, %v2308, %v2309
        %v2361 = vsel %vm973, %v2307, %v2308
        %v2362 = vsel %vm973, %v2306, %v2307
        %v2363 = vsel %vm973, %v2305, %v2306
        %v2364 = vsel %vm973, %v2304, %v2305
        %v2365 = vsel %vm973, %v2303, %v2304
        %v2366 = vsel %vm973, %v2334, %v2303
        %v2367 = vadd.f32 %v1310, %v2365
        %v2368 = vadd.f32 %v1316, %v2364
        %v2369 = vadd.f32 %v1322, %v2363
        %v2370 = vadd.f32 %v1328, %v2362
        %v2371 = vadd.f32 %v1334, %v2361
        %v2372 = vadd.f32 %v1340, %v2360
        %v2373 = vadd.f32 %v1346, %v2359
        %v2374 = vadd.f32 %v1352, %v2358
        %v2375 = vadd.f32 %v1358, %v2357
        %v2376 = vadd.f32 %v1364, %v2356
        %v2377 = vadd.f32 %v1370, %v2355
        %v2378 = vadd.f32 %v1376, %v2354
        %v2379 = vadd.f32 %v1382, %v2353
        %v2380 = vadd.f32 %v1388, %v2352
        %v2381 = vadd.f32 %v1394, %v2351
        %v2382 = vadd.f32 %v1400, %v2350
        %v2383 = vadd.f32 %v1406, %v2349
        %v2384 = vadd.f32 %v1412, %v2348
        %v2385 = vadd.f32 %v1418, %v2347
        %v2386 = vadd.f32 %v1424, %v2346
        %v2387 = vadd.f32 %v1430, %v2345
        %v2388 = vadd.f32 %v1436, %v2344
        %v2389 = vadd.f32 %v1442, %v2343
        %v2390 = vadd.f32 %v1448, %v2342
        %v2391 = vadd.f32 %v1454, %v2341
        %v2392 = vadd.f32 %v1460, %v2340
        %v2393 = vadd.f32 %v1466, %v2339
        %v2394 = vadd.f32 %v1472, %v2338
        %v2395 = vadd.f32 %v1478, %v2337
        %v2396 = vadd.f32 %v1484, %v2336
        %v2397 = vadd.f32 %v1490, %v2335
        %v2398 = vadd.f32 %v1496, %v2366
        %v2399 = vmax.f32 %v2367, 0.0
        %v2400 = vmax.f32 %v2368, 0.0
        %v2401 = vmax.f32 %v2369, 0.0
        %v2402 = vmax.f32 %v2370, 0.0
        %v2403 = vmax.f32 %v2371, 0.0
        %v2404 = vmax.f32 %v2372, 0.0
        %v2405 = vmax.f32 %v2373, 0.0
        %v2406 = vmax.f32 %v2374, 0.0
        %v2407 = vmax.f32 %v2375, 0.0
        %v2408 = vmax.f32 %v2376, 0.0
        %v2409 = vmax.f32 %v2377, 0.0
        %v2410 = vmax.f32 %v2378, 0.0
        %v2411 = vmax.f32 %v2379, 0.0
        %v2412 = vmax.f32 %v2380, 0.0
        %v2413 = vmax.f32 %v2381, 0.0
        %v2414 = vmax.f32 %v2382, 0.0
        %v2415 = vmax.f32 %v2383, 0.0
        %v2416 = vmax.f32 %v2384, 0.0
        %v2417 = vmax.f32 %v2385, 0.0
        %v2418 = vmax.f32 %v2386, 0.0
        %v2419 = vmax.f32 %v2387, 0.0
        %v2420 = vmax.f32 %v2388, 0.0
        %v2421 = vmax.f32 %v2389, 0.0
        %v2422 = vmax.f32 %v2390, 0.0
        %v2423 = vmax.f32 %v2391, 0.0
        %v2424 = vmax.f32 %v2392, 0.0
        %v2425 = vmax.f32 %v2393, 0.0
        %v2426 = vmax.f32 %v2394, 0.0
        %v2427 = vmax.f32 %v2395, 0.0
        %v2428 = vmax.f32 %v2396, 0.0
        %v2429 = vmax.f32 %v2397, 0.0
        %v2430 = vmax.f32 %v2398, 0.0
        %v2431 = vrot.slane %v1601, 4
        %v2432 = vrot.slane %v1607, 4
        %v2433 = vrot.slane %v1613, 4
        %v2434 = vrot.slane %v1619, 4
        %v2435 = vrot.slane %v1625, 4
        %v2436 = vrot.slane %v1631, 4
        %v2437 = vrot.slane %v1637, 4
        %v2438 = vrot.slane %v1643, 4
        %v2439 = vrot.slane %v1649, 4
        %v2440 = vrot.slane %v1655, 4
        %v2441 = vrot.slane %v1661, 4
        %v2442 = vrot.slane %v1667, 4
        %v2443 = vrot.slane %v1673, 4
        %v2444 = vrot.slane %v1679, 4
        %v2445 = vrot.slane %v1685, 4
        %v2446 = vrot.slane %v1691, 4
        %v2447 = vrot.slane %v1697, 4
        %v2448 = vrot.slane %v1703, 4
        %v2449 = vrot.slane %v1709, 4
        %v2450 = vrot.slane %v1715, 4
        %v2451 = vrot.slane %v1721, 4
        %v2452 = vrot.slane %v1727, 4
        %v2453 = vrot.slane %v1733, 4
        %v2454 = vrot.slane %v1739, 4
        %v2455 = vrot.slane %v1745, 4
        %v2456 = vrot.slane %v1751, 4
        %v2457 = vrot.slane %v1757, 4
        %v2458 = vrot.slane %v1763, 4
        %v2459 = vrot.slane %v1769, 4
        %v2460 = vrot.slane %v1775, 4
        %v2461 = vrot.slane %v1781, 4
        %v2462 = vrot.slane %v1787, 4
        %v2463 = vsel %vm1102, %v2461, %v2462
        %v2464 = vsel %vm1102, %v2460, %v2461
        %v2465 = vsel %vm1102, %v2459, %v2460
        %v2466 = vsel %vm1102, %v2458, %v2459
        %v2467 = vsel %vm1102, %v2457, %v2458
        %v2468 = vsel %vm1102, %v2456, %v2457
        %v2469 = vsel %vm1102, %v2455, %v2456
        %v2470 = vsel %vm1102, %v2454, %v2455
        %v2471 = vsel %vm1102, %v2453, %v2454
        %v2472 = vsel %vm1102, %v2452, %v2453
        %v2473 = vsel %vm1102, %v2451, %v2452
        %v2474 = vsel %vm1102, %v2450, %v2451
        %v2475 = vsel %vm1102, %v2449, %v2450
        %v2476 = vsel %vm1102, %v2448, %v2449
        %v2477 = vsel %vm1102, %v2447, %v2448
        %v2478 = vsel %vm1102, %v2446, %v2447
        %v2479 = vsel %vm1102, %v2445, %v2446
        %v2480 = vsel %vm1102, %v2444, %v2445
        %v2481 = vsel %vm1102, %v2443, %v2444
        %v2482 = vsel %vm1102, %v2442, %v2443
        %v2483 = vsel %vm1102, %v2441, %v2442
        %v2484 = vsel %vm1102, %v2440, %v2441
        %v2485 = vsel %vm1102, %v2439, %v2440
        %v2486 = vsel %vm1102, %v2438, %v2439
        %v2487 = vsel %vm1102, %v2437, %v2438
        %v2488 = vsel %vm1102, %v2436, %v2437
        %v2489 = vsel %vm1102, %v2435, %v2436
        %v2490 = vsel %vm1102, %v2434, %v2435
        %v2491 = vsel %vm1102, %v2433, %v2434
        %v2492 = vsel %vm1102, %v2432, %v2433
        %v2493 = vsel %vm1102, %v2431, %v2432
        %v2494 = vsel %vm1102, %v2462, %v2431
        %v2495 = vadd.f32 %v1312, %v2493
        %v2496 = vadd.f32 %v1318, %v2492
        %v2497 = vadd.f32 %v1324, %v2491
        %v2498 = vadd.f32 %v1330, %v2490
        %v2499 = vadd.f32 %v1336, %v2489
        %v2500 = vadd.f32 %v1342, %v2488
        %v2501 = vadd.f32 %v1348, %v2487
        %v2502 = vadd.f32 %v1354, %v2486
        %v2503 = vadd.f32 %v1360, %v2485
        %v2504 = vadd.f32 %v1366, %v2484
        %v2505 = vadd.f32 %v1372, %v2483
        %v2506 = vadd.f32 %v1378, %v2482
        %v2507 = vadd.f32 %v1384, %v2481
        %v2508 = vadd.f32 %v1390, %v2480
        %v2509 = vadd.f32 %v1396, %v2479
        %v2510 = vadd.f32 %v1402, %v2478
        %v2511 = vadd.f32 %v1408, %v2477
        %v2512 = vadd.f32 %v1414, %v2476
        %v2513 = vadd.f32 %v1420, %v2475
        %v2514 = vadd.f32 %v1426, %v2474
        %v2515 = vadd.f32 %v1432, %v2473
        %v2516 = vadd.f32 %v1438, %v2472
        %v2517 = vadd.f32 %v1444, %v2471
        %v2518 = vadd.f32 %v1450, %v2470
        %v2519 = vadd.f32 %v1456, %v2469
        %v2520 = vadd.f32 %v1462, %v2468
        %v2521 = vadd.f32 %v1468, %v2467
        %v2522 = vadd.f32 %v1474, %v2466
        %v2523 = vadd.f32 %v1480, %v2465
        %v2524 = vadd.f32 %v1486, %v2464
        %v2525 = vadd.f32 %v1492, %v2463
        %v2526 = vadd.f32 %v1498, %v2494
        %v2527 = vmax.f32 %v2495, 0.0
        %v2528 = vmax.f32 %v2496, 0.0
        %v2529 = vmax.f32 %v2497, 0.0
        %v2530 = vmax.f32 %v2498, 0.0
        %v2531 = vmax.f32 %v2499, 0.0
        %v2532 = vmax.f32 %v2500, 0.0
        %v2533 = vmax.f32 %v2501, 0.0
        %v2534 = vmax.f32 %v2502, 0.0
        %v2535 = vmax.f32 %v2503, 0.0
        %v2536 = vmax.f32 %v2504, 0.0
        %v2537 = vmax.f32 %v2505, 0.0
        %v2538 = vmax.f32 %v2506, 0.0
        %v2539 = vmax.f32 %v2507, 0.0
        %v2540 = vmax.f32 %v2508, 0.0
        %v2541 = vmax.f32 %v2509, 0.0
        %v2542 = vmax.f32 %v2510, 0.0
        %v2543 = vmax.f32 %v2511, 0.0
        %v2544 = vmax.f32 %v2512, 0.0
        %v2545 = vmax.f32 %v2513, 0.0
        %v2546 = vmax.f32 %v2514, 0.0
        %v2547 = vmax.f32 %v2515, 0.0
        %v2548 = vmax.f32 %v2516, 0.0
        %v2549 = vmax.f32 %v2517, 0.0
        %v2550 = vmax.f32 %v2518, 0.0
        %v2551 = vmax.f32 %v2519, 0.0
        %v2552 = vmax.f32 %v2520, 0.0
        %v2553 = vmax.f32 %v2521, 0.0
        %v2554 = vmax.f32 %v2522, 0.0
        %v2555 = vmax.f32 %v2523, 0.0
        %v2556 = vmax.f32 %v2524, 0.0
        %v2557 = vmax.f32 %v2525, 0.0
        %v2558 = vmax.f32 %v2526, 0.0
        %v2559 = vrot.slane %v2113, 1
        %v2560 = vrot.slane %v2119, 1
        %v2561 = vrot.slane %v2125, 1
        %v2562 = vrot.slane %v2131, 1
        %v2563 = vrot.slane %v2137, 1
        %v2564 = vrot.slane %v2143, 1
        %v2565 = vrot.slane %v2149, 1
        %v2566 = vrot.slane %v2155, 1
        %v2567 = vrot.slane %v2161, 1
        %v2568 = vrot.slane %v2167, 1
        %v2569 = vrot.slane %v2173, 1
        %v2570 = vrot.slane %v2179, 1
        %v2571 = vrot.slane %v2185, 1
        %v2572 = vrot.slane %v2191, 1
        %v2573 = vrot.slane %v2197, 1
        %v2574 = vrot.slane %v2203, 1
        %v2575 = vrot.slane %v2209, 1
        %v2576 = vrot.slane %v2215, 1
        %v2577 = vrot.slane %v2221, 1
        %v2578 = vrot.slane %v2227, 1
        %v2579 = vrot.slane %v2233, 1
        %v2580 = vrot.slane %v2239, 1
        %v2581 = vrot.slane %v2245, 1
        %v2582 = vrot.slane %v2251, 1
        %v2583 = vrot.slane %v2257, 1
        %v2584 = vrot.slane %v2263, 1
        %v2585 = vrot.slane %v2269, 1
        %v2586 = vrot.slane %v2275, 1
        %v2587 = vrot.slane %v2281, 1
        %v2588 = vrot.slane %v2287, 1
        %v2589 = vrot.slane %v2293, 1
        %v2590 = vrot.slane %v2299, 1
        %v2591 = vsel %vm973, %v2589, %v2590
        %v2592 = vsel %vm973, %v2588, %v2589
        %v2593 = vsel %vm973, %v2587, %v2588
        %v2594 = vsel %vm973, %v2586, %v2587
        %v2595 = vsel %vm973, %v2585, %v2586
        %v2596 = vsel %vm973, %v2584, %v2585
        %v2597 = vsel %vm973, %v2583, %v2584
        %v2598 = vsel %vm973, %v2582, %v2583
        %v2599 = vsel %vm973, %v2581, %v2582
        %v2600 = vsel %vm973, %v2580, %v2581
        %v2601 = vsel %vm973, %v2579, %v2580
        %v2602 = vsel %vm973, %v2578, %v2579
        %v2603 = vsel %vm973, %v2577, %v2578
        %v2604 = vsel %vm973, %v2576, %v2577
        %v2605 = vsel %vm973, %v2575, %v2576
        %v2606 = vsel %vm973, %v2574, %v2575
        %v2607 = vsel %vm973, %v2573, %v2574
        %v2608 = vsel %vm973, %v2572, %v2573
        %v2609 = vsel %vm973, %v2571, %v2572
        %v2610 = vsel %vm973, %v2570, %v2571
        %v2611 = vsel %vm973, %v2569, %v2570
        %v2612 = vsel %vm973, %v2568, %v2569
        %v2613 = vsel %vm973, %v2567, %v2568
        %v2614 = vsel %vm973, %v2566, %v2567
        %v2615 = vsel %vm973, %v2565, %v2566
        %v2616 = vsel %vm973, %v2564, %v2565
        %v2617 = vsel %vm973, %v2563, %v2564
        %v2618 = vsel %vm973, %v2562, %v2563
        %v2619 = vsel %vm973, %v2561, %v2562
        %v2620 = vsel %vm973, %v2560, %v2561
        %v2621 = vsel %vm973, %v2559, %v2560
        %v2622 = vsel %vm973, %v2590, %v2559
        %v2623 = vadd.f32 %v1856, %v2621
        %v2624 = vadd.f32 %v1862, %v2620
        %v2625 = vadd.f32 %v1868, %v2619
        %v2626 = vadd.f32 %v1874, %v2618
        %v2627 = vadd.f32 %v1880, %v2617
        %v2628 = vadd.f32 %v1886, %v2616
        %v2629 = vadd.f32 %v1892, %v2615
        %v2630 = vadd.f32 %v1898, %v2614
        %v2631 = vadd.f32 %v1904, %v2613
        %v2632 = vadd.f32 %v1910, %v2612
        %v2633 = vadd.f32 %v1916, %v2611
        %v2634 = vadd.f32 %v1922, %v2610
        %v2635 = vadd.f32 %v1928, %v2609
        %v2636 = vadd.f32 %v1934, %v2608
        %v2637 = vadd.f32 %v1940, %v2607
        %v2638 = vadd.f32 %v1946, %v2606
        %v2639 = vadd.f32 %v1952, %v2605
        %v2640 = vadd.f32 %v1958, %v2604
        %v2641 = vadd.f32 %v1964, %v2603
        %v2642 = vadd.f32 %v1970, %v2602
        %v2643 = vadd.f32 %v1976, %v2601
        %v2644 = vadd.f32 %v1982, %v2600
        %v2645 = vadd.f32 %v1988, %v2599
        %v2646 = vadd.f32 %v1994, %v2598
        %v2647 = vadd.f32 %v2000, %v2597
        %v2648 = vadd.f32 %v2006, %v2596
        %v2649 = vadd.f32 %v2012, %v2595
        %v2650 = vadd.f32 %v2018, %v2594
        %v2651 = vadd.f32 %v2024, %v2593
        %v2652 = vadd.f32 %v2030, %v2592
        %v2653 = vadd.f32 %v2036, %v2591
        %v2654 = vadd.f32 %v2042, %v2622
        %v2655 = vmax.f32 %v2623, 0.0
        %v2656 = vmax.f32 %v2624, 0.0
        %v2657 = vmax.f32 %v2625, 0.0
        %v2658 = vmax.f32 %v2626, 0.0
        %v2659 = vmax.f32 %v2627, 0.0
        %v2660 = vmax.f32 %v2628, 0.0
        %v2661 = vmax.f32 %v2629, 0.0
        %v2662 = vmax.f32 %v2630, 0.0
        %v2663 = vmax.f32 %v2631, 0.0
        %v2664 = vmax.f32 %v2632, 0.0
        %v2665 = vmax.f32 %v2633, 0.0
        %v2666 = vmax.f32 %v2634, 0.0
        %v2667 = vmax.f32 %v2635, 0.0
        %v2668 = vmax.f32 %v2636, 0.0
        %v2669 = vmax.f32 %v2637, 0.0
        %v2670 = vmax.f32 %v2638, 0.0
        %v2671 = vmax.f32 %v2639, 0.0
        %v2672 = vmax.f32 %v2640, 0.0
        %v2673 = vmax.f32 %v2641, 0.0
        %v2674 = vmax.f32 %v2642, 0.0
        %v2675 = vmax.f32 %v2643, 0.0
        %v2676 = vmax.f32 %v2644, 0.0
        %v2677 = vmax.f32 %v2645, 0.0
        %v2678 = vmax.f32 %v2646, 0.0
        %v2679 = vmax.f32 %v2647, 0.0
        %v2680 = vmax.f32 %v2648, 0.0
        %v2681 = vmax.f32 %v2649, 0.0
        %v2682 = vmax.f32 %v2650, 0.0
        %v2683 = vmax.f32 %v2651, 0.0
        %v2684 = vmax.f32 %v2652, 0.0
        %v2685 = vmax.f32 %v2653, 0.0
        %v2686 = vmax.f32 %v2654, 0.0
        %v2687 = vrot.slane %v2115, 4
        %v2688 = vrot.slane %v2121, 4
        %v2689 = vrot.slane %v2127, 4
        %v2690 = vrot.slane %v2133, 4
        %v2691 = vrot.slane %v2139, 4
        %v2692 = vrot.slane %v2145, 4
        %v2693 = vrot.slane %v2151, 4
        %v2694 = vrot.slane %v2157, 4
        %v2695 = vrot.slane %v2163, 4
        %v2696 = vrot.slane %v2169, 4
        %v2697 = vrot.slane %v2175, 4
        %v2698 = vrot.slane %v2181, 4
        %v2699 = vrot.slane %v2187, 4
        %v2700 = vrot.slane %v2193, 4
        %v2701 = vrot.slane %v2199, 4
        %v2702 = vrot.slane %v2205, 4
        %v2703 = vrot.slane %v2211, 4
        %v2704 = vrot.slane %v2217, 4
        %v2705 = vrot.slane %v2223, 4
        %v2706 = vrot.slane %v2229, 4
        %v2707 = vrot.slane %v2235, 4
        %v2708 = vrot.slane %v2241, 4
        %v2709 = vrot.slane %v2247, 4
        %v2710 = vrot.slane %v2253, 4
        %v2711 = vrot.slane %v2259, 4
        %v2712 = vrot.slane %v2265, 4
        %v2713 = vrot.slane %v2271, 4
        %v2714 = vrot.slane %v2277, 4
        %v2715 = vrot.slane %v2283, 4
        %v2716 = vrot.slane %v2289, 4
        %v2717 = vrot.slane %v2295, 4
        %v2718 = vrot.slane %v2301, 4
        %v2719 = vsel %vm1102, %v2717, %v2718
        %v2720 = vsel %vm1102, %v2716, %v2717
        %v2721 = vsel %vm1102, %v2715, %v2716
        %v2722 = vsel %vm1102, %v2714, %v2715
        %v2723 = vsel %vm1102, %v2713, %v2714
        %v2724 = vsel %vm1102, %v2712, %v2713
        %v2725 = vsel %vm1102, %v2711, %v2712
        %v2726 = vsel %vm1102, %v2710, %v2711
        %v2727 = vsel %vm1102, %v2709, %v2710
        %v2728 = vsel %vm1102, %v2708, %v2709
        %v2729 = vsel %vm1102, %v2707, %v2708
        %v2730 = vsel %vm1102, %v2706, %v2707
        %v2731 = vsel %vm1102, %v2705, %v2706
        %v2732 = vsel %vm1102, %v2704, %v2705
        %v2733 = vsel %vm1102, %v2703, %v2704
        %v2734 = vsel %vm1102, %v2702, %v2703
        %v2735 = vsel %vm1102, %v2701, %v2702
        %v2736 = vsel %vm1102, %v2700, %v2701
        %v2737 = vsel %vm1102, %v2699, %v2700
        %v2738 = vsel %vm1102, %v2698, %v2699
        %v2739 = vsel %vm1102, %v2697, %v2698
        %v2740 = vsel %vm1102, %v2696, %v2697
        %v2741 = vsel %vm1102, %v2695, %v2696
        %v2742 = vsel %vm1102, %v2694, %v2695
        %v2743 = vsel %vm1102, %v2693, %v2694
        %v2744 = vsel %vm1102, %v2692, %v2693
        %v2745 = vsel %vm1102, %v2691, %v2692
        %v2746 = vsel %vm1102, %v2690, %v2691
        %v2747 = vsel %vm1102, %v2689, %v2690
        %v2748 = vsel %vm1102, %v2688, %v2689
        %v2749 = vsel %vm1102, %v2687, %v2688
        %v2750 = vsel %vm1102, %v2718, %v2687
        %v2751 = vadd.f32 %v1858, %v2749
        %v2752 = vadd.f32 %v1864, %v2748
        %v2753 = vadd.f32 %v1870, %v2747
        %v2754 = vadd.f32 %v1876, %v2746
        %v2755 = vadd.f32 %v1882, %v2745
        %v2756 = vadd.f32 %v1888, %v2744
        %v2757 = vadd.f32 %v1894, %v2743
        %v2758 = vadd.f32 %v1900, %v2742
        %v2759 = vadd.f32 %v1906, %v2741
        %v2760 = vadd.f32 %v1912, %v2740
        %v2761 = vadd.f32 %v1918, %v2739
        %v2762 = vadd.f32 %v1924, %v2738
        %v2763 = vadd.f32 %v1930, %v2737
        %v2764 = vadd.f32 %v1936, %v2736
        %v2765 = vadd.f32 %v1942, %v2735
        %v2766 = vadd.f32 %v1948, %v2734
        %v2767 = vadd.f32 %v1954, %v2733
        %v2768 = vadd.f32 %v1960, %v2732
        %v2769 = vadd.f32 %v1966, %v2731
        %v2770 = vadd.f32 %v1972, %v2730
        %v2771 = vadd.f32 %v1978, %v2729
        %v2772 = vadd.f32 %v1984, %v2728
        %v2773 = vadd.f32 %v1990, %v2727
        %v2774 = vadd.f32 %v1996, %v2726
        %v2775 = vadd.f32 %v2002, %v2725
        %v2776 = vadd.f32 %v2008, %v2724
        %v2777 = vadd.f32 %v2014, %v2723
        %v2778 = vadd.f32 %v2020, %v2722
        %v2779 = vadd.f32 %v2026, %v2721
        %v2780 = vadd.f32 %v2032, %v2720
        %v2781 = vadd.f32 %v2038, %v2719
        %v2782 = vadd.f32 %v2044, %v2750
        %v2783 = vmax.f32 %v2751, 0.0
        %v2784 = vmax.f32 %v2752, 0.0
        %v2785 = vmax.f32 %v2753, 0.0
        %v2786 = vmax.f32 %v2754, 0.0
        %v2787 = vmax.f32 %v2755, 0.0
        %v2788 = vmax.f32 %v2756, 0.0
        %v2789 = vmax.f32 %v2757, 0.0
        %v2790 = vmax.f32 %v2758, 0.0
        %v2791 = vmax.f32 %v2759, 0.0
        %v2792 = vmax.f32 %v2760, 0.0
        %v2793 = vmax.f32 %v2761, 0.0
        %v2794 = vmax.f32 %v2762, 0.0
        %v2795 = vmax.f32 %v2763, 0.0
        %v2796 = vmax.f32 %v2764, 0.0
        %v2797 = vmax.f32 %v2765, 0.0
        %v2798 = vmax.f32 %v2766, 0.0
        %v2799 = vmax.f32 %v2767, 0.0
        %v2800 = vmax.f32 %v2768, 0.0
        %v2801 = vmax.f32 %v2769, 0.0
        %v2802 = vmax.f32 %v2770, 0.0
        %v2803 = vmax.f32 %v2771, 0.0
        %v2804 = vmax.f32 %v2772, 0.0
        %v2805 = vmax.f32 %v2773, 0.0
        %v2806 = vmax.f32 %v2774, 0.0
        %v2807 = vmax.f32 %v2775, 0.0
        %v2808 = vmax.f32 %v2776, 0.0
        %v2809 = vmax.f32 %v2777, 0.0
        %v2810 = vmax.f32 %v2778, 0.0
        %v2811 = vmax.f32 %v2779, 0.0
        %v2812 = vmax.f32 %v2780, 0.0
        %v2813 = vmax.f32 %v2781, 0.0
        %v2814 = vmax.f32 %v2782, 0.0
        %2815 = vst [vmem:[%s268] sm:$0xff] %v1038
        %2816 = vst [vmem:[%s268 + $0x8] sm:$0xff] %v1039
        %2817 = vst [vmem:[%s268 + $0x10] sm:$0xff] %v1040
        %2818 = vst [vmem:[%s268 + $0x18] sm:$0xff] %v1041
        %2819 = vst [vmem:[%s268 + $0x20] sm:$0xff] %v1042
        %2820 = vst [vmem:[%s268 + $0x28] sm:$0xff] %v1043
        %2821 = vst [vmem:[%s268 + $0x30] sm:$0xff] %v1044
        %2822 = vst [vmem:[%s268 + $0x38] sm:$0xff] %v1045
        %2823 = vst [vmem:[%s268 + $0x40] sm:$0xff] %v1046
        %2824 = vst [vmem:[%s268 + $0x48] sm:$0xff] %v1047
        %2825 = vst [vmem:[%s268 + $0x50] sm:$0xff] %v1048
        %2826 = vst [vmem:[%s268 + $0x58] sm:$0xff] %v1049
        %2827 = vst [vmem:[%s268 + $0x60] sm:$0xff] %v1050
        %2828 = vst [vmem:[%s268 + $0x68] sm:$0xff] %v1051
        %2829 = vst [vmem:[%s268 + $0x70] sm:$0xff] %v1052
        %2830 = vst [vmem:[%s268 + $0x78] sm:$0xff] %v1053
        %2831 = vst [vmem:[%s268 + $0x80] sm:$0xff] %v1054
        %2832 = vst [vmem:[%s268 + $0x88] sm:$0xff] %v1055
        %2833 = vst [vmem:[%s268 + $0x90] sm:$0xff] %v1056
        %2834 = vst [vmem:[%s268 + $0x98] sm:$0xff] %v1057
        %2835 = vst [vmem:[%s268 + $0xa0] sm:$0xff] %v1058
        %2836 = vst [vmem:[%s268 + $0xa8] sm:$0xff] %v1059
        %2837 = vst [vmem:[%s268 + $0xb0] sm:$0xff] %v1060
        %2838 = vst [vmem:[%s268 + $0xb8] sm:$0xff] %v1061
        %2839 = vst [vmem:[%s268 + $0xc0] sm:$0xff] %v1062
        %2840 = vst [vmem:[%s268 + $0xc8] sm:$0xff] %v1063
        %2841 = vst [vmem:[%s268 + $0xd0] sm:$0xff] %v1064
        %2842 = vst [vmem:[%s268 + $0xd8] sm:$0xff] %v1065
        %2843 = vst [vmem:[%s268 + $0xe0] sm:$0xff] %v1066
        %2844 = vst [vmem:[%s268 + $0xe8] sm:$0xff] %v1067
        %2845 = vst [vmem:[%s268 + $0xf0] sm:$0xff] %v1068
        %2846 = vst [vmem:[%s268 + $0xf8] sm:$0xff] %v1069
        %s2847 = scalar_lea.vmem %s268, 256 [#allocation2]
        %2848 = vst [vmem:[%s2847] sm:$0xff] %v1167
        %2849 = vst [vmem:[%s2847 + $0x8] sm:$0xff] %v1168
        %2850 = vst [vmem:[%s2847 + $0x10] sm:$0xff] %v1169
        %2851 = vst [vmem:[%s2847 + $0x18] sm:$0xff] %v1170
        %2852 = vst [vmem:[%s2847 + $0x20] sm:$0xff] %v1171
        %2853 = vst [vmem:[%s2847 + $0x28] sm:$0xff] %v1172
        %2854 = vst [vmem:[%s2847 + $0x30] sm:$0xff] %v1173
        %2855 = vst [vmem:[%s2847 + $0x38] sm:$0xff] %v1174
        %2856 = vst [vmem:[%s2847 + $0x40] sm:$0xff] %v1175
        %2857 = vst [vmem:[%s2847 + $0x48] sm:$0xff] %v1176
        %2858 = vst [vmem:[%s2847 + $0x50] sm:$0xff] %v1177
        %2859 = vst [vmem:[%s2847 + $0x58] sm:$0xff] %v1178
        %2860 = vst [vmem:[%s2847 + $0x60] sm:$0xff] %v1179
        %2861 = vst [vmem:[%s2847 + $0x68] sm:$0xff] %v1180
        %2862 = vst [vmem:[%s2847 + $0x70] sm:$0xff] %v1181
        %2863 = vst [vmem:[%s2847 + $0x78] sm:$0xff] %v1182
        %2864 = vst [vmem:[%s2847 + $0x80] sm:$0xff] %v1183
        %2865 = vst [vmem:[%s2847 + $0x88] sm:$0xff] %v1184
        %2866 = vst [vmem:[%s2847 + $0x90] sm:$0xff] %v1185
        %2867 = vst [vmem:[%s2847 + $0x98] sm:$0xff] %v1186
        %2868 = vst [vmem:[%s2847 + $0xa0] sm:$0xff] %v1187
        %2869 = vst [vmem:[%s2847 + $0xa8] sm:$0xff] %v1188
        %2870 = vst [vmem:[%s2847 + $0xb0] sm:$0xff] %v1189
        %2871 = vst [vmem:[%s2847 + $0xb8] sm:$0xff] %v1190
        %2872 = vst [vmem:[%s2847 + $0xc0] sm:$0xff] %v1191
        %2873 = vst [vmem:[%s2847 + $0xc8] sm:$0xff] %v1192
        %2874 = vst [vmem:[%s2847 + $0xd0] sm:$0xff] %v1193
        %2875 = vst [vmem:[%s2847 + $0xd8] sm:$0xff] %v1194
        %2876 = vst [vmem:[%s2847 + $0xe0] sm:$0xff] %v1195
        %2877 = vst [vmem:[%s2847 + $0xe8] sm:$0xff] %v1196
        %2878 = vst [vmem:[%s2847 + $0xf0] sm:$0xff] %v1197
        %2879 = vst [vmem:[%s2847 + $0xf8] sm:$0xff] %v1198
        %s2880 = scalar_lea.vmem %s268, 512 [#allocation2]
        %2881 = vst [vmem:[%s2880] sm:$0xff] %v2399
        %2882 = vst [vmem:[%s2880 + $0x8] sm:$0xff] %v2400
        %2883 = vst [vmem:[%s2880 + $0x10] sm:$0xff] %v2401
        %2884 = vst [vmem:[%s2880 + $0x18] sm:$0xff] %v2402
        %2885 = vst [vmem:[%s2880 + $0x20] sm:$0xff] %v2403
        %2886 = vst [vmem:[%s2880 + $0x28] sm:$0xff] %v2404
        %2887 = vst [vmem:[%s2880 + $0x30] sm:$0xff] %v2405
        %2888 = vst [vmem:[%s2880 + $0x38] sm:$0xff] %v2406
        %2889 = vst [vmem:[%s2880 + $0x40] sm:$0xff] %v2407
        %2890 = vst [vmem:[%s2880 + $0x48] sm:$0xff] %v2408
        %2891 = vst [vmem:[%s2880 + $0x50] sm:$0xff] %v2409
        %2892 = vst [vmem:[%s2880 + $0x58] sm:$0xff] %v2410
        %2893 = vst [vmem:[%s2880 + $0x60] sm:$0xff] %v2411
        %2894 = vst [vmem:[%s2880 + $0x68] sm:$0xff] %v2412
        %2895 = vst [vmem:[%s2880 + $0x70] sm:$0xff] %v2413
        %2896 = vst [vmem:[%s2880 + $0x78] sm:$0xff] %v2414
        %2897 = vst [vmem:[%s2880 + $0x80] sm:$0xff] %v2415
        %2898 = vst [vmem:[%s2880 + $0x88] sm:$0xff] %v2416
        %2899 = vst [vmem:[%s2880 + $0x90] sm:$0xff] %v2417
        %2900 = vst [vmem:[%s2880 + $0x98] sm:$0xff] %v2418
        %2901 = vst [vmem:[%s2880 + $0xa0] sm:$0xff] %v2419
        %2902 = vst [vmem:[%s2880 + $0xa8] sm:$0xff] %v2420
        %2903 = vst [vmem:[%s2880 + $0xb0] sm:$0xff] %v2421
        %2904 = vst [vmem:[%s2880 + $0xb8] sm:$0xff] %v2422
        %2905 = vst [vmem:[%s2880 + $0xc0] sm:$0xff] %v2423
        %2906 = vst [vmem:[%s2880 + $0xc8] sm:$0xff] %v2424
        %2907 = vst [vmem:[%s2880 + $0xd0] sm:$0xff] %v2425
        %2908 = vst [vmem:[%s2880 + $0xd8] sm:$0xff] %v2426
        %2909 = vst [vmem:[%s2880 + $0xe0] sm:$0xff] %v2427
        %2910 = vst [vmem:[%s2880 + $0xe8] sm:$0xff] %v2428
        %2911 = vst [vmem:[%s2880 + $0xf0] sm:$0xff] %v2429
        %2912 = vst [vmem:[%s2880 + $0xf8] sm:$0xff] %v2430
        %s2913 = scalar_lea.vmem %s268, 768 [#allocation2]
        %2914 = vst [vmem:[%s2913] sm:$0xff] %v2527
        %2915 = vst [vmem:[%s2913 + $0x8] sm:$0xff] %v2528
        %2916 = vst [vmem:[%s2913 + $0x10] sm:$0xff] %v2529
        %2917 = vst [vmem:[%s2913 + $0x18] sm:$0xff] %v2530
        %2918 = vst [vmem:[%s2913 + $0x20] sm:$0xff] %v2531
        %2919 = vst [vmem:[%s2913 + $0x28] sm:$0xff] %v2532
        %2920 = vst [vmem:[%s2913 + $0x30] sm:$0xff] %v2533
        %2921 = vst [vmem:[%s2913 + $0x38] sm:$0xff] %v2534
        %2922 = vst [vmem:[%s2913 + $0x40] sm:$0xff] %v2535
        %2923 = vst [vmem:[%s2913 + $0x48] sm:$0xff] %v2536
        %2924 = vst [vmem:[%s2913 + $0x50] sm:$0xff] %v2537
        %2925 = vst [vmem:[%s2913 + $0x58] sm:$0xff] %v2538
        %2926 = vst [vmem:[%s2913 + $0x60] sm:$0xff] %v2539
        %2927 = vst [vmem:[%s2913 + $0x68] sm:$0xff] %v2540
        %2928 = vst [vmem:[%s2913 + $0x70] sm:$0xff] %v2541
        %2929 = vst [vmem:[%s2913 + $0x78] sm:$0xff] %v2542
        %2930 = vst [vmem:[%s2913 + $0x80] sm:$0xff] %v2543
        %2931 = vst [vmem:[%s2913 + $0x88] sm:$0xff] %v2544
        %2932 = vst [vmem:[%s2913 + $0x90] sm:$0xff] %v2545
        %2933 = vst [vmem:[%s2913 + $0x98] sm:$0xff] %v2546
        %2934 = vst [vmem:[%s2913 + $0xa0] sm:$0xff] %v2547
        %2935 = vst [vmem:[%s2913 + $0xa8] sm:$0xff] %v2548
        %2936 = vst [vmem:[%s2913 + $0xb0] sm:$0xff] %v2549
        %2937 = vst [vmem:[%s2913 + $0xb8] sm:$0xff] %v2550
        %2938 = vst [vmem:[%s2913 + $0xc0] sm:$0xff] %v2551
        %2939 = vst [vmem:[%s2913 + $0xc8] sm:$0xff] %v2552
        %2940 = vst [vmem:[%s2913 + $0xd0] sm:$0xff] %v2553
        %2941 = vst [vmem:[%s2913 + $0xd8] sm:$0xff] %v2554
        %2942 = vst [vmem:[%s2913 + $0xe0] sm:$0xff] %v2555
        %2943 = vst [vmem:[%s2913 + $0xe8] sm:$0xff] %v2556
        %2944 = vst [vmem:[%s2913 + $0xf0] sm:$0xff] %v2557
        %2945 = vst [vmem:[%s2913 + $0xf8] sm:$0xff] %v2558
        %s2946 = scalar_lea.vmem %s268, 1024 [#allocation2]
        %2947 = vst [vmem:[%s2946] sm:$0xff] %v2655
        %2948 = vst [vmem:[%s2946 + $0x8] sm:$0xff] %v2656
        %2949 = vst [vmem:[%s2946 + $0x10] sm:$0xff] %v2657
        %2950 = vst [vmem:[%s2946 + $0x18] sm:$0xff] %v2658
        %2951 = vst [vmem:[%s2946 + $0x20] sm:$0xff] %v2659
        %2952 = vst [vmem:[%s2946 + $0x28] sm:$0xff] %v2660
        %2953 = vst [vmem:[%s2946 + $0x30] sm:$0xff] %v2661
        %2954 = vst [vmem:[%s2946 + $0x38] sm:$0xff] %v2662
        %2955 = vst [vmem:[%s2946 + $0x40] sm:$0xff] %v2663
        %2956 = vst [vmem:[%s2946 + $0x48] sm:$0xff] %v2664
        %2957 = vst [vmem:[%s2946 + $0x50] sm:$0xff] %v2665
        %2958 = vst [vmem:[%s2946 + $0x58] sm:$0xff] %v2666
        %2959 = vst [vmem:[%s2946 + $0x60] sm:$0xff] %v2667
        %2960 = vst [vmem:[%s2946 + $0x68] sm:$0xff] %v2668
        %2961 = vst [vmem:[%s2946 + $0x70] sm:$0xff] %v2669
        %2962 = vst [vmem:[%s2946 + $0x78] sm:$0xff] %v2670
        %2963 = vst [vmem:[%s2946 + $0x80] sm:$0xff] %v2671
        %2964 = vst [vmem:[%s2946 + $0x88] sm:$0xff] %v2672
        %2965 = vst [vmem:[%s2946 + $0x90] sm:$0xff] %v2673
        %2966 = vst [vmem:[%s2946 + $0x98] sm:$0xff] %v2674
        %2967 = vst [vmem:[%s2946 + $0xa0] sm:$0xff] %v2675
        %2968 = vst [vmem:[%s2946 + $0xa8] sm:$0xff] %v2676
        %2969 = vst [vmem:[%s2946 + $0xb0] sm:$0xff] %v2677
        %2970 = vst [vmem:[%s2946 + $0xb8] sm:$0xff] %v2678
        %2971 = vst [vmem:[%s2946 + $0xc0] sm:$0xff] %v2679
        %2972 = vst [vmem:[%s2946 + $0xc8] sm:$0xff] %v2680
        %2973 = vst [vmem:[%s2946 + $0xd0] sm:$0xff] %v2681
        %2974 = vst [vmem:[%s2946 + $0xd8] sm:$0xff] %v2682
        %2975 = vst [vmem:[%s2946 + $0xe0] sm:$0xff] %v2683
        %2976 = vst [vmem:[%s2946 + $0xe8] sm:$0xff] %v2684
        %2977 = vst [vmem:[%s2946 + $0xf0] sm:$0xff] %v2685
        %2978 = vst [vmem:[%s2946 + $0xf8] sm:$0xff] %v2686
        %s2979 = scalar_lea.vmem %s268, 1280 [#allocation2]
        %2980 = vst [vmem:[%s2979] sm:$0xff] %v2783
        %2981 = vst [vmem:[%s2979 + $0x8] sm:$0xff] %v2784
        %2982 = vst [vmem:[%s2979 + $0x10] sm:$0xff] %v2785
        %2983 = vst [vmem:[%s2979 + $0x18] sm:$0xff] %v2786
        %2984 = vst [vmem:[%s2979 + $0x20] sm:$0xff] %v2787
        %2985 = vst [vmem:[%s2979 + $0x28] sm:$0xff] %v2788
        %2986 = vst [vmem:[%s2979 + $0x30] sm:$0xff] %v2789
        %2987 = vst [vmem:[%s2979 + $0x38] sm:$0xff] %v2790
        %2988 = vst [vmem:[%s2979 + $0x40] sm:$0xff] %v2791
        %2989 = vst [vmem:[%s2979 + $0x48] sm:$0xff] %v2792
        %2990 = vst [vmem:[%s2979 + $0x50] sm:$0xff] %v2793
        %2991 = vst [vmem:[%s2979 + $0x58] sm:$0xff] %v2794
        %2992 = vst [vmem:[%s2979 + $0x60] sm:$0xff] %v2795
        %2993 = vst [vmem:[%s2979 + $0x68] sm:$0xff] %v2796
        %2994 = vst [vmem:[%s2979 + $0x70] sm:$0xff] %v2797
        %2995 = vst [vmem:[%s2979 + $0x78] sm:$0xff] %v2798
        %2996 = vst [vmem:[%s2979 + $0x80] sm:$0xff] %v2799
        %2997 = vst [vmem:[%s2979 + $0x88] sm:$0xff] %v2800
        %2998 = vst [vmem:[%s2979 + $0x90] sm:$0xff] %v2801
        %2999 = vst [vmem:[%s2979 + $0x98] sm:$0xff] %v2802
        %3000 = vst [vmem:[%s2979 + $0xa0] sm:$0xff] %v2803
        %3001 = vst [vmem:[%s2979 + $0xa8] sm:$0xff] %v2804
        %3002 = vst [vmem:[%s2979 + $0xb0] sm:$0xff] %v2805
        %3003 = vst [vmem:[%s2979 + $0xb8] sm:$0xff] %v2806
        %3004 = vst [vmem:[%s2979 + $0xc0] sm:$0xff] %v2807
        %3005 = vst [vmem:[%s2979 + $0xc8] sm:$0xff] %v2808
        %3006 = vst [vmem:[%s2979 + $0xd0] sm:$0xff] %v2809
        %3007 = vst [vmem:[%s2979 + $0xd8] sm:$0xff] %v2810
        %3008 = vst [vmem:[%s2979 + $0xe0] sm:$0xff] %v2811
        %3009 = vst [vmem:[%s2979 + $0xe8] sm:$0xff] %v2812
        %3010 = vst [vmem:[%s2979 + $0xf0] sm:$0xff] %v2813
        %3011 = vst [vmem:[%s2979 + $0xf8] sm:$0xff] %v2814
        %s3012 = sand.u32 %s178, 1
        %s3013 = sand.u32 %s178, 1
        %s3014 = smul.addr %s3013, 1536
        %s3015 = scalar_lea.vmem [#allocation2], %s3014
        // Predicated region
        $region49: #{feature_extractor_forward.1} parent=47 // pred_check
          %p3016 = pneg %p188
        $region50: #{feature_extractor_forward.1} parent=47 // pred_check_branch
          %3018 = sbr.rel (%p3016) target = $region52
        $region51: #{feature_extractor_forward.1} parent=47 // pred_region
          %s3019 = smul.u32 32, %s18
          %s3020 = smul.addr %s3019, 8
          %s3021 = scalar_lea.vmem %s7, %s3020
          // Predicated region
          $region53: #{feature_extractor_forward.1} parent=51 // pred_check
            _
          $region54: #{feature_extractor_forward.1} parent=51 // pred_check_branch
            %3023 = sbr.rel (0) target = $region56
          $region55: #{feature_extractor_forward.1} parent=51 // pred_region
            // Predicated region
            $region57: #{feature_extractor_forward.1} parent=55 // pred_check
              _
            $region58: #{feature_extractor_forward.1} parent=55 // pred_check_branch
              %3025 = sbr.rel (0) target = $region60
            $region59: #{feature_extractor_forward.1} parent=55 // pred_region
              // Predicated region
              $region72: #{feature_extractor_forward.1} parent=59 // pred_check
                _
              $region73: #{feature_extractor_forward.1} parent=59 // pred_check_branch
                %3422 = sbr.rel (0) target = $region75
              $region74: #{feature_extractor_forward.1} parent=59 // pred_region
                loop: start=0, step=1, limit=1
                $region76: #{feature_extractor_forward.1} parent=74 // loop_pre_header
                  _
                $region77: #{feature_extractor_forward.1} parent=74 // loop_header
                  %s3424 = sphi 0, %s3428
                  %p3425 = scmp.ge.s32.totalorder %s3424, 1
                  %s3429 = sphi %s3015, %s3015
                  %s3430 = sphi %s3021, %s3021
                $region78: #{feature_extractor_forward.1} parent=74 // loop_header_branch
                  %3427 = sbr.rel (%p3425) target = $region82
                $region79: #{feature_extractor_forward.1} parent=74 // loop_body
                  %v3431 = vld [vmem:[%s3429] sm:$0xff]
                  %3432 = vst [vmem:[%s3430] sm:$0xff] %v3431
                  %v3433 = vld [vmem:[%s3429 + $0x8] sm:$0xff]
                  %3434 = vst [vmem:[%s3430 + $0x8] sm:$0xff] %v3433
                  %v3435 = vld [vmem:[%s3429 + $0x10] sm:$0xff]
                  %3436 = vst [vmem:[%s3430 + $0x10] sm:$0xff] %v3435
                  %v3437 = vld [vmem:[%s3429 + $0x18] sm:$0xff]
                  %3438 = vst [vmem:[%s3430 + $0x18] sm:$0xff] %v3437
                  %v3439 = vld [vmem:[%s3429 + $0x20] sm:$0xff]
                  %3440 = vst [vmem:[%s3430 + $0x20] sm:$0xff] %v3439
                  %v3441 = vld [vmem:[%s3429 + $0x28] sm:$0xff]
                  %3442 = vst [vmem:[%s3430 + $0x28] sm:$0xff] %v3441
                  %v3443 = vld [vmem:[%s3429 + $0x30] sm:$0xff]
                  %3444 = vst [vmem:[%s3430 + $0x30] sm:$0xff] %v3443
                  %v3445 = vld [vmem:[%s3429 + $0x38] sm:$0xff]
                  %3446 = vst [vmem:[%s3430 + $0x38] sm:$0xff] %v3445
                  %v3447 = vld [vmem:[%s3429 + $0x40] sm:$0xff]
                  %3448 = vst [vmem:[%s3430 + $0x40] sm:$0xff] %v3447
                  %v3449 = vld [vmem:[%s3429 + $0x48] sm:$0xff]
                  %3450 = vst [vmem:[%s3430 + $0x48] sm:$0xff] %v3449
                  %v3451 = vld [vmem:[%s3429 + $0x50] sm:$0xff]
                  %3452 = vst [vmem:[%s3430 + $0x50] sm:$0xff] %v3451
                  %v3453 = vld [vmem:[%s3429 + $0x58] sm:$0xff]
                  %3454 = vst [vmem:[%s3430 + $0x58] sm:$0xff] %v3453
                  %v3455 = vld [vmem:[%s3429 + $0x60] sm:$0xff]
                  %3456 = vst [vmem:[%s3430 + $0x60] sm:$0xff] %v3455
                  %v3457 = vld [vmem:[%s3429 + $0x68] sm:$0xff]
                  %3458 = vst [vmem:[%s3430 + $0x68] sm:$0xff] %v3457
                  %v3459 = vld [vmem:[%s3429 + $0x70] sm:$0xff]
                  %3460 = vst [vmem:[%s3430 + $0x70] sm:$0xff] %v3459
                  %v3461 = vld [vmem:[%s3429 + $0x78] sm:$0xff]
                  %3462 = vst [vmem:[%s3430 + $0x78] sm:$0xff] %v3461
                  %v3463 = vld [vmem:[%s3429 + $0x80] sm:$0xff]
                  %3464 = vst [vmem:[%s3430 + $0x80] sm:$0xff] %v3463
                  %v3465 = vld [vmem:[%s3429 + $0x88] sm:$0xff]
                  %3466 = vst [vmem:[%s3430 + $0x88] sm:$0xff] %v3465
                  %v3467 = vld [vmem:[%s3429 + $0x90] sm:$0xff]
                  %3468 = vst [vmem:[%s3430 + $0x90] sm:$0xff] %v3467
                  %v3469 = vld [vmem:[%s3429 + $0x98] sm:$0xff]
                  %3470 = vst [vmem:[%s3430 + $0x98] sm:$0xff] %v3469
                  %v3471 = vld [vmem:[%s3429 + $0xa0] sm:$0xff]
                  %3472 = vst [vmem:[%s3430 + $0xa0] sm:$0xff] %v3471
                  %v3473 = vld [vmem:[%s3429 + $0xa8] sm:$0xff]
                  %3474 = vst [vmem:[%s3430 + $0xa8] sm:$0xff] %v3473
                  %v3475 = vld [vmem:[%s3429 + $0xb0] sm:$0xff]
                  %3476 = vst [vmem:[%s3430 + $0xb0] sm:$0xff] %v3475
                  %v3477 = vld [vmem:[%s3429 + $0xb8] sm:$0xff]
                  %3478 = vst [vmem:[%s3430 + $0xb8] sm:$0xff] %v3477
                  %v3479 = vld [vmem:[%s3429 + $0xc0] sm:$0xff]
                  %3480 = vst [vmem:[%s3430 + $0xc0] sm:$0xff] %v3479
                  %v3481 = vld [vmem:[%s3429 + $0xc8] sm:$0xff]
                  %3482 = vst [vmem:[%s3430 + $0xc8] sm:$0xff] %v3481
                  %v3483 = vld [vmem:[%s3429 + $0xd0] sm:$0xff]
                  %3484 = vst [vmem:[%s3430 + $0xd0] sm:$0xff] %v3483
                  %v3485 = vld [vmem:[%s3429 + $0xd8] sm:$0xff]
                  %3486 = vst [vmem:[%s3430 + $0xd8] sm:$0xff] %v3485
                  %v3487 = vld [vmem:[%s3429 + $0xe0] sm:$0xff]
                  %3488 = vst [vmem:[%s3430 + $0xe0] sm:$0xff] %v3487
                  %v3489 = vld [vmem:[%s3429 + $0xe8] sm:$0xff]
                  %3490 = vst [vmem:[%s3430 + $0xe8] sm:$0xff] %v3489
                  %v3491 = vld [vmem:[%s3429 + $0xf0] sm:$0xff]
                  %3492 = vst [vmem:[%s3430 + $0xf0] sm:$0xff] %v3491
                  %v3493 = vld [vmem:[%s3429 + $0xf8] sm:$0xff]
                  %3494 = vst [vmem:[%s3430 + $0xf8] sm:$0xff] %v3493
                  %v3495 = vld [vmem:[%s3429 + $0x100] sm:$0xff]
                  %3496 = vst [vmem:[%s3430 + $0x200] sm:$0xff] %v3495
                  %v3497 = vld [vmem:[%s3429 + $0x108] sm:$0xff]
                  %3498 = vst [vmem:[%s3430 + $0x208] sm:$0xff] %v3497
                  %v3499 = vld [vmem:[%s3429 + $0x110] sm:$0xff]
                  %3500 = vst [vmem:[%s3430 + $0x210] sm:$0xff] %v3499
                  %v3501 = vld [vmem:[%s3429 + $0x118] sm:$0xff]
                  %3502 = vst [vmem:[%s3430 + $0x218] sm:$0xff] %v3501
                  %v3503 = vld [vmem:[%s3429 + $0x120] sm:$0xff]
                  %3504 = vst [vmem:[%s3430 + $0x220] sm:$0xff] %v3503
                  %v3505 = vld [vmem:[%s3429 + $0x128] sm:$0xff]
                  %3506 = vst [vmem:[%s3430 + $0x228] sm:$0xff] %v3505
                  %v3507 = vld [vmem:[%s3429 + $0x130] sm:$0xff]
                  %3508 = vst [vmem:[%s3430 + $0x230] sm:$0xff] %v3507
                  %v3509 = vld [vmem:[%s3429 + $0x138] sm:$0xff]
                  %3510 = vst [vmem:[%s3430 + $0x238] sm:$0xff] %v3509
                  %v3511 = vld [vmem:[%s3429 + $0x140] sm:$0xff]
                  %3512 = vst [vmem:[%s3430 + $0x240] sm:$0xff] %v3511
                  %v3513 = vld [vmem:[%s3429 + $0x148] sm:$0xff]
                  %3514 = vst [vmem:[%s3430 + $0x248] sm:$0xff] %v3513
                  %v3515 = vld [vmem:[%s3429 + $0x150] sm:$0xff]
                  %3516 = vst [vmem:[%s3430 + $0x250] sm:$0xff] %v3515
                  %v3517 = vld [vmem:[%s3429 + $0x158] sm:$0xff]
                  %3518 = vst [vmem:[%s3430 + $0x258] sm:$0xff] %v3517
                  %v3519 = vld [vmem:[%s3429 + $0x160] sm:$0xff]
                  %3520 = vst [vmem:[%s3430 + $0x260] sm:$0xff] %v3519
                  %v3521 = vld [vmem:[%s3429 + $0x168] sm:$0xff]
                  %3522 = vst [vmem:[%s3430 + $0x268] sm:$0xff] %v3521
                  %v3523 = vld [vmem:[%s3429 + $0x170] sm:$0xff]
                  %3524 = vst [vmem:[%s3430 + $0x270] sm:$0xff] %v3523
                  %v3525 = vld [vmem:[%s3429 + $0x178] sm:$0xff]
                  %3526 = vst [vmem:[%s3430 + $0x278] sm:$0xff] %v3525
                  %v3527 = vld [vmem:[%s3429 + $0x180] sm:$0xff]
                  %3528 = vst [vmem:[%s3430 + $0x280] sm:$0xff] %v3527
                  %v3529 = vld [vmem:[%s3429 + $0x188] sm:$0xff]
                  %3530 = vst [vmem:[%s3430 + $0x288] sm:$0xff] %v3529
                  %v3531 = vld [vmem:[%s3429 + $0x190] sm:$0xff]
                  %3532 = vst [vmem:[%s3430 + $0x290] sm:$0xff] %v3531
                  %v3533 = vld [vmem:[%s3429 + $0x198] sm:$0xff]
                  %3534 = vst [vmem:[%s3430 + $0x298] sm:$0xff] %v3533
                  %v3535 = vld [vmem:[%s3429 + $0x1a0] sm:$0xff]
                  %3536 = vst [vmem:[%s3430 + $0x2a0] sm:$0xff] %v3535
                  %v3537 = vld [vmem:[%s3429 + $0x1a8] sm:$0xff]
                  %3538 = vst [vmem:[%s3430 + $0x2a8] sm:$0xff] %v3537
                  %v3539 = vld [vmem:[%s3429 + $0x1b0] sm:$0xff]
                  %3540 = vst [vmem:[%s3430 + $0x2b0] sm:$0xff] %v3539
                  %v3541 = vld [vmem:[%s3429 + $0x1b8] sm:$0xff]
                  %3542 = vst [vmem:[%s3430 + $0x2b8] sm:$0xff] %v3541
                  %v3543 = vld [vmem:[%s3429 + $0x1c0] sm:$0xff]
                  %3544 = vst [vmem:[%s3430 + $0x2c0] sm:$0xff] %v3543
                  %v3545 = vld [vmem:[%s3429 + $0x1c8] sm:$0xff]
                  %3546 = vst [vmem:[%s3430 + $0x2c8] sm:$0xff] %v3545
                  %v3547 = vld [vmem:[%s3429 + $0x1d0] sm:$0xff]
                  %3548 = vst [vmem:[%s3430 + $0x2d0] sm:$0xff] %v3547
                  %v3549 = vld [vmem:[%s3429 + $0x1d8] sm:$0xff]
                  %3550 = vst [vmem:[%s3430 + $0x2d8] sm:$0xff] %v3549
                  %v3551 = vld [vmem:[%s3429 + $0x1e0] sm:$0xff]
                  %3552 = vst [vmem:[%s3430 + $0x2e0] sm:$0xff] %v3551
                  %v3553 = vld [vmem:[%s3429 + $0x1e8] sm:$0xff]
                  %3554 = vst [vmem:[%s3430 + $0x2e8] sm:$0xff] %v3553
                  %v3555 = vld [vmem:[%s3429 + $0x1f0] sm:$0xff]
                  %3556 = vst [vmem:[%s3430 + $0x2f0] sm:$0xff] %v3555
                  %v3557 = vld [vmem:[%s3429 + $0x1f8] sm:$0xff]
                  %3558 = vst [vmem:[%s3430 + $0x2f8] sm:$0xff] %v3557
                  %v3559 = vld [vmem:[%s3429 + $0x200] sm:$0xff]
                  %3560 = vst [vmem:[%s3430 + $0x400] sm:$0xff] %v3559
                  %v3561 = vld [vmem:[%s3429 + $0x208] sm:$0xff]
                  %3562 = vst [vmem:[%s3430 + $0x408] sm:$0xff] %v3561
                  %v3563 = vld [vmem:[%s3429 + $0x210] sm:$0xff]
                  %3564 = vst [vmem:[%s3430 + $0x410] sm:$0xff] %v3563
                  %v3565 = vld [vmem:[%s3429 + $0x218] sm:$0xff]
                  %3566 = vst [vmem:[%s3430 + $0x418] sm:$0xff] %v3565
                  %v3567 = vld [vmem:[%s3429 + $0x220] sm:$0xff]
                  %3568 = vst [vmem:[%s3430 + $0x420] sm:$0xff] %v3567
                  %v3569 = vld [vmem:[%s3429 + $0x228] sm:$0xff]
                  %3570 = vst [vmem:[%s3430 + $0x428] sm:$0xff] %v3569
                  %v3571 = vld [vmem:[%s3429 + $0x230] sm:$0xff]
                  %3572 = vst [vmem:[%s3430 + $0x430] sm:$0xff] %v3571
                  %v3573 = vld [vmem:[%s3429 + $0x238] sm:$0xff]
                  %3574 = vst [vmem:[%s3430 + $0x438] sm:$0xff] %v3573
                  %v3575 = vld [vmem:[%s3429 + $0x240] sm:$0xff]
                  %3576 = vst [vmem:[%s3430 + $0x440] sm:$0xff] %v3575
                  %v3577 = vld [vmem:[%s3429 + $0x248] sm:$0xff]
                  %3578 = vst [vmem:[%s3430 + $0x448] sm:$0xff] %v3577
                  %v3579 = vld [vmem:[%s3429 + $0x250] sm:$0xff]
                  %3580 = vst [vmem:[%s3430 + $0x450] sm:$0xff] %v3579
                  %v3581 = vld [vmem:[%s3429 + $0x258] sm:$0xff]
                  %3582 = vst [vmem:[%s3430 + $0x458] sm:$0xff] %v3581
                  %v3583 = vld [vmem:[%s3429 + $0x260] sm:$0xff]
                  %3584 = vst [vmem:[%s3430 + $0x460] sm:$0xff] %v3583
                  %v3585 = vld [vmem:[%s3429 + $0x268] sm:$0xff]
                  %3586 = vst [vmem:[%s3430 + $0x468] sm:$0xff] %v3585
                  %v3587 = vld [vmem:[%s3429 + $0x270] sm:$0xff]
                  %3588 = vst [vmem:[%s3430 + $0x470] sm:$0xff] %v3587
                  %v3589 = vld [vmem:[%s3429 + $0x278] sm:$0xff]
                  %3590 = vst [vmem:[%s3430 + $0x478] sm:$0xff] %v3589
                  %v3591 = vld [vmem:[%s3429 + $0x280] sm:$0xff]
                  %3592 = vst [vmem:[%s3430 + $0x480] sm:$0xff] %v3591
                  %v3593 = vld [vmem:[%s3429 + $0x288] sm:$0xff]
                  %3594 = vst [vmem:[%s3430 + $0x488] sm:$0xff] %v3593
                  %v3595 = vld [vmem:[%s3429 + $0x290] sm:$0xff]
                  %3596 = vst [vmem:[%s3430 + $0x490] sm:$0xff] %v3595
                  %v3597 = vld [vmem:[%s3429 + $0x298] sm:$0xff]
                  %3598 = vst [vmem:[%s3430 + $0x498] sm:$0xff] %v3597
                  %v3599 = vld [vmem:[%s3429 + $0x2a0] sm:$0xff]
                  %3600 = vst [vmem:[%s3430 + $0x4a0] sm:$0xff] %v3599
                  %v3601 = vld [vmem:[%s3429 + $0x2a8] sm:$0xff]
                  %3602 = vst [vmem:[%s3430 + $0x4a8] sm:$0xff] %v3601
                  %v3603 = vld [vmem:[%s3429 + $0x2b0] sm:$0xff]
                  %3604 = vst [vmem:[%s3430 + $0x4b0] sm:$0xff] %v3603
                  %v3605 = vld [vmem:[%s3429 + $0x2b8] sm:$0xff]
                  %3606 = vst [vmem:[%s3430 + $0x4b8] sm:$0xff] %v3605
                  %v3607 = vld [vmem:[%s3429 + $0x2c0] sm:$0xff]
                  %3608 = vst [vmem:[%s3430 + $0x4c0] sm:$0xff] %v3607
                  %v3609 = vld [vmem:[%s3429 + $0x2c8] sm:$0xff]
                  %3610 = vst [vmem:[%s3430 + $0x4c8] sm:$0xff] %v3609
                  %v3611 = vld [vmem:[%s3429 + $0x2d0] sm:$0xff]
                  %3612 = vst [vmem:[%s3430 + $0x4d0] sm:$0xff] %v3611
                  %v3613 = vld [vmem:[%s3429 + $0x2d8] sm:$0xff]
                  %3614 = vst [vmem:[%s3430 + $0x4d8] sm:$0xff] %v3613
                  %v3615 = vld [vmem:[%s3429 + $0x2e0] sm:$0xff]
                  %3616 = vst [vmem:[%s3430 + $0x4e0] sm:$0xff] %v3615
                  %v3617 = vld [vmem:[%s3429 + $0x2e8] sm:$0xff]
                  %3618 = vst [vmem:[%s3430 + $0x4e8] sm:$0xff] %v3617
                  %v3619 = vld [vmem:[%s3429 + $0x2f0] sm:$0xff]
                  %3620 = vst [vmem:[%s3430 + $0x4f0] sm:$0xff] %v3619
                  %v3621 = vld [vmem:[%s3429 + $0x2f8] sm:$0xff]
                  %3622 = vst [vmem:[%s3430 + $0x4f8] sm:$0xff] %v3621
                  %v3623 = vld [vmem:[%s3429 + $0x300] sm:$0xff]
                  %3624 = vst [vmem:[%s3430 + $0x600] sm:$0xff] %v3623
                  %v3625 = vld [vmem:[%s3429 + $0x308] sm:$0xff]
                  %3626 = vst [vmem:[%s3430 + $0x608] sm:$0xff] %v3625
                  %v3627 = vld [vmem:[%s3429 + $0x310] sm:$0xff]
                  %3628 = vst [vmem:[%s3430 + $0x610] sm:$0xff] %v3627
                  %v3629 = vld [vmem:[%s3429 + $0x318] sm:$0xff]
                  %3630 = vst [vmem:[%s3430 + $0x618] sm:$0xff] %v3629
                  %v3631 = vld [vmem:[%s3429 + $0x320] sm:$0xff]
                  %3632 = vst [vmem:[%s3430 + $0x620] sm:$0xff] %v3631
                  %v3633 = vld [vmem:[%s3429 + $0x328] sm:$0xff]
                  %3634 = vst [vmem:[%s3430 + $0x628] sm:$0xff] %v3633
                  %v3635 = vld [vmem:[%s3429 + $0x330] sm:$0xff]
                  %3636 = vst [vmem:[%s3430 + $0x630] sm:$0xff] %v3635
                  %v3637 = vld [vmem:[%s3429 + $0x338] sm:$0xff]
                  %3638 = vst [vmem:[%s3430 + $0x638] sm:$0xff] %v3637
                  %v3639 = vld [vmem:[%s3429 + $0x340] sm:$0xff]
                  %3640 = vst [vmem:[%s3430 + $0x640] sm:$0xff] %v3639
                  %v3641 = vld [vmem:[%s3429 + $0x348] sm:$0xff]
                  %3642 = vst [vmem:[%s3430 + $0x648] sm:$0xff] %v3641
                  %v3643 = vld [vmem:[%s3429 + $0x350] sm:$0xff]
                  %3644 = vst [vmem:[%s3430 + $0x650] sm:$0xff] %v3643
                  %v3645 = vld [vmem:[%s3429 + $0x358] sm:$0xff]
                  %3646 = vst [vmem:[%s3430 + $0x658] sm:$0xff] %v3645
                  %v3647 = vld [vmem:[%s3429 + $0x360] sm:$0xff]
                  %3648 = vst [vmem:[%s3430 + $0x660] sm:$0xff] %v3647
                  %v3649 = vld [vmem:[%s3429 + $0x368] sm:$0xff]
                  %3650 = vst [vmem:[%s3430 + $0x668] sm:$0xff] %v3649
                  %v3651 = vld [vmem:[%s3429 + $0x370] sm:$0xff]
                  %3652 = vst [vmem:[%s3430 + $0x670] sm:$0xff] %v3651
                  %v3653 = vld [vmem:[%s3429 + $0x378] sm:$0xff]
                  %3654 = vst [vmem:[%s3430 + $0x678] sm:$0xff] %v3653
                  %v3655 = vld [vmem:[%s3429 + $0x380] sm:$0xff]
                  %3656 = vst [vmem:[%s3430 + $0x680] sm:$0xff] %v3655
                  %v3657 = vld [vmem:[%s3429 + $0x388] sm:$0xff]
                  %3658 = vst [vmem:[%s3430 + $0x688] sm:$0xff] %v3657
                  %v3659 = vld [vmem:[%s3429 + $0x390] sm:$0xff]
                  %3660 = vst [vmem:[%s3430 + $0x690] sm:$0xff] %v3659
                  %v3661 = vld [vmem:[%s3429 + $0x398] sm:$0xff]
                  %3662 = vst [vmem:[%s3430 + $0x698] sm:$0xff] %v3661
                  %v3663 = vld [vmem:[%s3429 + $0x3a0] sm:$0xff]
                  %3664 = vst [vmem:[%s3430 + $0x6a0] sm:$0xff] %v3663
                  %v3665 = vld [vmem:[%s3429 + $0x3a8] sm:$0xff]
                  %3666 = vst [vmem:[%s3430 + $0x6a8] sm:$0xff] %v3665
                  %v3667 = vld [vmem:[%s3429 + $0x3b0] sm:$0xff]
                  %3668 = vst [vmem:[%s3430 + $0x6b0] sm:$0xff] %v3667
                  %v3669 = vld [vmem:[%s3429 + $0x3b8] sm:$0xff]
                  %3670 = vst [vmem:[%s3430 + $0x6b8] sm:$0xff] %v3669
                  %v3671 = vld [vmem:[%s3429 + $0x3c0] sm:$0xff]
                  %3672 = vst [vmem:[%s3430 + $0x6c0] sm:$0xff] %v3671
                  %v3673 = vld [vmem:[%s3429 + $0x3c8] sm:$0xff]
                  %3674 = vst [vmem:[%s3430 + $0x6c8] sm:$0xff] %v3673
                  %v3675 = vld [vmem:[%s3429 + $0x3d0] sm:$0xff]
                  %3676 = vst [vmem:[%s3430 + $0x6d0] sm:$0xff] %v3675
                  %v3677 = vld [vmem:[%s3429 + $0x3d8] sm:$0xff]
                  %3678 = vst [vmem:[%s3430 + $0x6d8] sm:$0xff] %v3677
                  %v3679 = vld [vmem:[%s3429 + $0x3e0] sm:$0xff]
                  %3680 = vst [vmem:[%s3430 + $0x6e0] sm:$0xff] %v3679
                  %v3681 = vld [vmem:[%s3429 + $0x3e8] sm:$0xff]
                  %3682 = vst [vmem:[%s3430 + $0x6e8] sm:$0xff] %v3681
                  %v3683 = vld [vmem:[%s3429 + $0x3f0] sm:$0xff]
                  %3684 = vst [vmem:[%s3430 + $0x6f0] sm:$0xff] %v3683
                  %v3685 = vld [vmem:[%s3429 + $0x3f8] sm:$0xff]
                  %3686 = vst [vmem:[%s3430 + $0x6f8] sm:$0xff] %v3685
                  %v3687 = vld [vmem:[%s3429 + $0x400] sm:$0xff]
                  %3688 = vst [vmem:[%s3430 + $0x800] sm:$0xff] %v3687
                  %v3689 = vld [vmem:[%s3429 + $0x408] sm:$0xff]
                  %3690 = vst [vmem:[%s3430 + $0x808] sm:$0xff] %v3689
                  %v3691 = vld [vmem:[%s3429 + $0x410] sm:$0xff]
                  %3692 = vst [vmem:[%s3430 + $0x810] sm:$0xff] %v3691
                  %v3693 = vld [vmem:[%s3429 + $0x418] sm:$0xff]
                  %3694 = vst [vmem:[%s3430 + $0x818] sm:$0xff] %v3693
                  %v3695 = vld [vmem:[%s3429 + $0x420] sm:$0xff]
                  %3696 = vst [vmem:[%s3430 + $0x820] sm:$0xff] %v3695
                  %v3697 = vld [vmem:[%s3429 + $0x428] sm:$0xff]
                  %3698 = vst [vmem:[%s3430 + $0x828] sm:$0xff] %v3697
                  %v3699 = vld [vmem:[%s3429 + $0x430] sm:$0xff]
                  %3700 = vst [vmem:[%s3430 + $0x830] sm:$0xff] %v3699
                  %v3701 = vld [vmem:[%s3429 + $0x438] sm:$0xff]
                  %3702 = vst [vmem:[%s3430 + $0x838] sm:$0xff] %v3701
                  %v3703 = vld [vmem:[%s3429 + $0x440] sm:$0xff]
                  %3704 = vst [vmem:[%s3430 + $0x840] sm:$0xff] %v3703
                  %v3705 = vld [vmem:[%s3429 + $0x448] sm:$0xff]
                  %3706 = vst [vmem:[%s3430 + $0x848] sm:$0xff] %v3705
                  %v3707 = vld [vmem:[%s3429 + $0x450] sm:$0xff]
                  %3708 = vst [vmem:[%s3430 + $0x850] sm:$0xff] %v3707
                  %v3709 = vld [vmem:[%s3429 + $0x458] sm:$0xff]
                  %3710 = vst [vmem:[%s3430 + $0x858] sm:$0xff] %v3709
                  %v3711 = vld [vmem:[%s3429 + $0x460] sm:$0xff]
                  %3712 = vst [vmem:[%s3430 + $0x860] sm:$0xff] %v3711
                  %v3713 = vld [vmem:[%s3429 + $0x468] sm:$0xff]
                  %3714 = vst [vmem:[%s3430 + $0x868] sm:$0xff] %v3713
                  %v3715 = vld [vmem:[%s3429 + $0x470] sm:$0xff]
                  %3716 = vst [vmem:[%s3430 + $0x870] sm:$0xff] %v3715
                  %v3717 = vld [vmem:[%s3429 + $0x478] sm:$0xff]
                  %3718 = vst [vmem:[%s3430 + $0x878] sm:$0xff] %v3717
                  %v3719 = vld [vmem:[%s3429 + $0x480] sm:$0xff]
                  %3720 = vst [vmem:[%s3430 + $0x880] sm:$0xff] %v3719
                  %v3721 = vld [vmem:[%s3429 + $0x488] sm:$0xff]
                  %3722 = vst [vmem:[%s3430 + $0x888] sm:$0xff] %v3721
                  %v3723 = vld [vmem:[%s3429 + $0x490] sm:$0xff]
                  %3724 = vst [vmem:[%s3430 + $0x890] sm:$0xff] %v3723
                  %v3725 = vld [vmem:[%s3429 + $0x498] sm:$0xff]
                  %3726 = vst [vmem:[%s3430 + $0x898] sm:$0xff] %v3725
                  %v3727 = vld [vmem:[%s3429 + $0x4a0] sm:$0xff]
                  %3728 = vst [vmem:[%s3430 + $0x8a0] sm:$0xff] %v3727
                  %v3729 = vld [vmem:[%s3429 + $0x4a8] sm:$0xff]
                  %3730 = vst [vmem:[%s3430 + $0x8a8] sm:$0xff] %v3729
                  %v3731 = vld [vmem:[%s3429 + $0x4b0] sm:$0xff]
                  %3732 = vst [vmem:[%s3430 + $0x8b0] sm:$0xff] %v3731
                  %v3733 = vld [vmem:[%s3429 + $0x4b8] sm:$0xff]
                  %3734 = vst [vmem:[%s3430 + $0x8b8] sm:$0xff] %v3733
                  %v3735 = vld [vmem:[%s3429 + $0x4c0] sm:$0xff]
                  %3736 = vst [vmem:[%s3430 + $0x8c0] sm:$0xff] %v3735
                  %v3737 = vld [vmem:[%s3429 + $0x4c8] sm:$0xff]
                  %3738 = vst [vmem:[%s3430 + $0x8c8] sm:$0xff] %v3737
                  %v3739 = vld [vmem:[%s3429 + $0x4d0] sm:$0xff]
                  %3740 = vst [vmem:[%s3430 + $0x8d0] sm:$0xff] %v3739
                  %v3741 = vld [vmem:[%s3429 + $0x4d8] sm:$0xff]
                  %3742 = vst [vmem:[%s3430 + $0x8d8] sm:$0xff] %v3741
                  %v3743 = vld [vmem:[%s3429 + $0x4e0] sm:$0xff]
                  %3744 = vst [vmem:[%s3430 + $0x8e0] sm:$0xff] %v3743
                  %v3745 = vld [vmem:[%s3429 + $0x4e8] sm:$0xff]
                  %3746 = vst [vmem:[%s3430 + $0x8e8] sm:$0xff] %v3745
                  %v3747 = vld [vmem:[%s3429 + $0x4f0] sm:$0xff]
                  %3748 = vst [vmem:[%s3430 + $0x8f0] sm:$0xff] %v3747
                  %v3749 = vld [vmem:[%s3429 + $0x4f8] sm:$0xff]
                  %3750 = vst [vmem:[%s3430 + $0x8f8] sm:$0xff] %v3749
                  %v3751 = vld [vmem:[%s3429 + $0x500] sm:$0xff]
                  %3752 = vst [vmem:[%s3430 + $0xa00] sm:$0xff] %v3751
                  %v3753 = vld [vmem:[%s3429 + $0x508] sm:$0xff]
                  %3754 = vst [vmem:[%s3430 + $0xa08] sm:$0xff] %v3753
                  %v3755 = vld [vmem:[%s3429 + $0x510] sm:$0xff]
                  %3756 = vst [vmem:[%s3430 + $0xa10] sm:$0xff] %v3755
                  %v3757 = vld [vmem:[%s3429 + $0x518] sm:$0xff]
                  %3758 = vst [vmem:[%s3430 + $0xa18] sm:$0xff] %v3757
                  %v3759 = vld [vmem:[%s3429 + $0x520] sm:$0xff]
                  %3760 = vst [vmem:[%s3430 + $0xa20] sm:$0xff] %v3759
                  %v3761 = vld [vmem:[%s3429 + $0x528] sm:$0xff]
                  %3762 = vst [vmem:[%s3430 + $0xa28] sm:$0xff] %v3761
                  %v3763 = vld [vmem:[%s3429 + $0x530] sm:$0xff]
                  %3764 = vst [vmem:[%s3430 + $0xa30] sm:$0xff] %v3763
                  %v3765 = vld [vmem:[%s3429 + $0x538] sm:$0xff]
                  %3766 = vst [vmem:[%s3430 + $0xa38] sm:$0xff] %v3765
                  %v3767 = vld [vmem:[%s3429 + $0x540] sm:$0xff]
                  %3768 = vst [vmem:[%s3430 + $0xa40] sm:$0xff] %v3767
                  %v3769 = vld [vmem:[%s3429 + $0x548] sm:$0xff]
                  %3770 = vst [vmem:[%s3430 + $0xa48] sm:$0xff] %v3769
                  %v3771 = vld [vmem:[%s3429 + $0x550] sm:$0xff]
                  %3772 = vst [vmem:[%s3430 + $0xa50] sm:$0xff] %v3771
                  %v3773 = vld [vmem:[%s3429 + $0x558] sm:$0xff]
                  %3774 = vst [vmem:[%s3430 + $0xa58] sm:$0xff] %v3773
                  %v3775 = vld [vmem:[%s3429 + $0x560] sm:$0xff]
                  %3776 = vst [vmem:[%s3430 + $0xa60] sm:$0xff] %v3775
                  %v3777 = vld [vmem:[%s3429 + $0x568] sm:$0xff]
                  %3778 = vst [vmem:[%s3430 + $0xa68] sm:$0xff] %v3777
                  %v3779 = vld [vmem:[%s3429 + $0x570] sm:$0xff]
                  %3780 = vst [vmem:[%s3430 + $0xa70] sm:$0xff] %v3779
                  %v3781 = vld [vmem:[%s3429 + $0x578] sm:$0xff]
                  %3782 = vst [vmem:[%s3430 + $0xa78] sm:$0xff] %v3781
                  %v3783 = vld [vmem:[%s3429 + $0x580] sm:$0xff]
                  %3784 = vst [vmem:[%s3430 + $0xa80] sm:$0xff] %v3783
                  %v3785 = vld [vmem:[%s3429 + $0x588] sm:$0xff]
                  %3786 = vst [vmem:[%s3430 + $0xa88] sm:$0xff] %v3785
                  %v3787 = vld [vmem:[%s3429 + $0x590] sm:$0xff]
                  %3788 = vst [vmem:[%s3430 + $0xa90] sm:$0xff] %v3787
                  %v3789 = vld [vmem:[%s3429 + $0x598] sm:$0xff]
                  %3790 = vst [vmem:[%s3430 + $0xa98] sm:$0xff] %v3789
                  %v3791 = vld [vmem:[%s3429 + $0x5a0] sm:$0xff]
                  %3792 = vst [vmem:[%s3430 + $0xaa0] sm:$0xff] %v3791
                  %v3793 = vld [vmem:[%s3429 + $0x5a8] sm:$0xff]
                  %3794 = vst [vmem:[%s3430 + $0xaa8] sm:$0xff] %v3793
                  %v3795 = vld [vmem:[%s3429 + $0x5b0] sm:$0xff]
                  %3796 = vst [vmem:[%s3430 + $0xab0] sm:$0xff] %v3795
                  %v3797 = vld [vmem:[%s3429 + $0x5b8] sm:$0xff]
                  %3798 = vst [vmem:[%s3430 + $0xab8] sm:$0xff] %v3797
                  %v3799 = vld [vmem:[%s3429 + $0x5c0] sm:$0xff]
                  %3800 = vst [vmem:[%s3430 + $0xac0] sm:$0xff] %v3799
                  %v3801 = vld [vmem:[%s3429 + $0x5c8] sm:$0xff]
                  %3802 = vst [vmem:[%s3430 + $0xac8] sm:$0xff] %v3801
                  %v3803 = vld [vmem:[%s3429 + $0x5d0] sm:$0xff]
                  %3804 = vst [vmem:[%s3430 + $0xad0] sm:$0xff] %v3803
                  %v3805 = vld [vmem:[%s3429 + $0x5d8] sm:$0xff]
                  %3806 = vst [vmem:[%s3430 + $0xad8] sm:$0xff] %v3805
                  %v3807 = vld [vmem:[%s3429 + $0x5e0] sm:$0xff]
                  %3808 = vst [vmem:[%s3430 + $0xae0] sm:$0xff] %v3807
                  %v3809 = vld [vmem:[%s3429 + $0x5e8] sm:$0xff]
                  %3810 = vst [vmem:[%s3430 + $0xae8] sm:$0xff] %v3809
                  %v3811 = vld [vmem:[%s3429 + $0x5f0] sm:$0xff]
                  %3812 = vst [vmem:[%s3430 + $0xaf0] sm:$0xff] %v3811
                  %v3813 = vld [vmem:[%s3429 + $0x5f8] sm:$0xff]
                  %3814 = vst [vmem:[%s3430 + $0xaf8] sm:$0xff] %v3813
                $region80: #{feature_extractor_forward.1} parent=74 // loop_footer
                  %s3428 = sadd.s32 1, %s3424
                $region81: #{feature_extractor_forward.1} parent=74 // loop_footer_branch
                  %3423 = sbr.rel target = $region77
                $region82: #{feature_extractor_forward.1} parent=74 // loop_exit
                  _
              $region75: #{feature_extractor_forward.1} parent=59 // pred_fallthru
                _
              // Predicated region
              $region83: #{feature_extractor_forward.1} parent=59 // pred_check
                _
              $region84: #{feature_extractor_forward.1} parent=59 // pred_check_branch
                %3816 = sbr.rel target = $region86
              $region85: #{feature_extractor_forward.1} parent=59 // pred_region
                _
              $region86: #{feature_extractor_forward.1} parent=59 // pred_fallthru
                _
            $region60: #{feature_extractor_forward.1} parent=55 // pred_fallthru
              _
            // Predicated region
            $region61: #{feature_extractor_forward.1} parent=55 // pred_check
              _
            $region62: #{feature_extractor_forward.1} parent=55 // pred_check_branch
              %3027 = sbr.rel target = $region64
            $region63: #{feature_extractor_forward.1} parent=55 // pred_region
              loop: start=0, step=1, limit=1
              $region65: #{feature_extractor_forward.1} parent=63 // loop_pre_header
                _
              $region66: #{feature_extractor_forward.1} parent=63 // loop_header
                %s3030 = sphi 0, %s3034
                %p3031 = scmp.ge.s32.totalorder %s3030, 1
                %s3035 = sphi %s3015, %s3015
                %s3036 = sphi %s3021, %s3021
              $region67: #{feature_extractor_forward.1} parent=63 // loop_header_branch
                %3033 = sbr.rel (%p3031) target = $region71
              $region68: #{feature_extractor_forward.1} parent=63 // loop_body
                %v3037 = vld [vmem:[%s3035] sm:$0xff]
                %3038 = vst [vmem:[%s3036] sm:$0xff] %v3037
                %v3039 = vld [vmem:[%s3035 + $0x8] sm:$0xff]
                %3040 = vst [vmem:[%s3036 + $0x8] sm:$0xff] %v3039
                %v3041 = vld [vmem:[%s3035 + $0x10] sm:$0xff]
                %3042 = vst [vmem:[%s3036 + $0x10] sm:$0xff] %v3041
                %v3043 = vld [vmem:[%s3035 + $0x18] sm:$0xff]
                %3044 = vst [vmem:[%s3036 + $0x18] sm:$0xff] %v3043
                %v3045 = vld [vmem:[%s3035 + $0x20] sm:$0xff]
                %3046 = vst [vmem:[%s3036 + $0x20] sm:$0xff] %v3045
                %v3047 = vld [vmem:[%s3035 + $0x28] sm:$0xff]
                %3048 = vst [vmem:[%s3036 + $0x28] sm:$0xff] %v3047
                %v3049 = vld [vmem:[%s3035 + $0x30] sm:$0xff]
                %3050 = vst [vmem:[%s3036 + $0x30] sm:$0xff] %v3049
                %v3051 = vld [vmem:[%s3035 + $0x38] sm:$0xff]
                %3052 = vst [vmem:[%s3036 + $0x38] sm:$0xff] %v3051
                %v3053 = vld [vmem:[%s3035 + $0x40] sm:$0xff]
                %3054 = vst [vmem:[%s3036 + $0x40] sm:$0xff] %v3053
                %v3055 = vld [vmem:[%s3035 + $0x48] sm:$0xff]
                %3056 = vst [vmem:[%s3036 + $0x48] sm:$0xff] %v3055
                %v3057 = vld [vmem:[%s3035 + $0x50] sm:$0xff]
                %3058 = vst [vmem:[%s3036 + $0x50] sm:$0xff] %v3057
                %v3059 = vld [vmem:[%s3035 + $0x58] sm:$0xff]
                %3060 = vst [vmem:[%s3036 + $0x58] sm:$0xff] %v3059
                %v3061 = vld [vmem:[%s3035 + $0x60] sm:$0xff]
                %3062 = vst [vmem:[%s3036 + $0x60] sm:$0xff] %v3061
                %v3063 = vld [vmem:[%s3035 + $0x68] sm:$0xff]
                %3064 = vst [vmem:[%s3036 + $0x68] sm:$0xff] %v3063
                %v3065 = vld [vmem:[%s3035 + $0x70] sm:$0xff]
                %3066 = vst [vmem:[%s3036 + $0x70] sm:$0xff] %v3065
                %v3067 = vld [vmem:[%s3035 + $0x78] sm:$0xff]
                %3068 = vst [vmem:[%s3036 + $0x78] sm:$0xff] %v3067
                %v3069 = vld [vmem:[%s3035 + $0x80] sm:$0xff]
                %3070 = vst [vmem:[%s3036 + $0x80] sm:$0xff] %v3069
                %v3071 = vld [vmem:[%s3035 + $0x88] sm:$0xff]
                %3072 = vst [vmem:[%s3036 + $0x88] sm:$0xff] %v3071
                %v3073 = vld [vmem:[%s3035 + $0x90] sm:$0xff]
                %3074 = vst [vmem:[%s3036 + $0x90] sm:$0xff] %v3073
                %v3075 = vld [vmem:[%s3035 + $0x98] sm:$0xff]
                %3076 = vst [vmem:[%s3036 + $0x98] sm:$0xff] %v3075
                %v3077 = vld [vmem:[%s3035 + $0xa0] sm:$0xff]
                %3078 = vst [vmem:[%s3036 + $0xa0] sm:$0xff] %v3077
                %v3079 = vld [vmem:[%s3035 + $0xa8] sm:$0xff]
                %3080 = vst [vmem:[%s3036 + $0xa8] sm:$0xff] %v3079
                %v3081 = vld [vmem:[%s3035 + $0xb0] sm:$0xff]
                %3082 = vst [vmem:[%s3036 + $0xb0] sm:$0xff] %v3081
                %v3083 = vld [vmem:[%s3035 + $0xb8] sm:$0xff]
                %3084 = vst [vmem:[%s3036 + $0xb8] sm:$0xff] %v3083
                %v3085 = vld [vmem:[%s3035 + $0xc0] sm:$0xff]
                %3086 = vst [vmem:[%s3036 + $0xc0] sm:$0xff] %v3085
                %v3087 = vld [vmem:[%s3035 + $0xc8] sm:$0xff]
                %3088 = vst [vmem:[%s3036 + $0xc8] sm:$0xff] %v3087
                %v3089 = vld [vmem:[%s3035 + $0xd0] sm:$0xff]
                %3090 = vst [vmem:[%s3036 + $0xd0] sm:$0xff] %v3089
                %v3091 = vld [vmem:[%s3035 + $0xd8] sm:$0xff]
                %3092 = vst [vmem:[%s3036 + $0xd8] sm:$0xff] %v3091
                %v3093 = vld [vmem:[%s3035 + $0xe0] sm:$0xff]
                %3094 = vst [vmem:[%s3036 + $0xe0] sm:$0xff] %v3093
                %v3095 = vld [vmem:[%s3035 + $0xe8] sm:$0xff]
                %3096 = vst [vmem:[%s3036 + $0xe8] sm:$0xff] %v3095
                %v3097 = vld [vmem:[%s3035 + $0xf0] sm:$0xff]
                %3098 = vst [vmem:[%s3036 + $0xf0] sm:$0xff] %v3097
                %v3099 = vld [vmem:[%s3035 + $0xf8] sm:$0xff]
                %3100 = vst [vmem:[%s3036 + $0xf8] sm:$0xff] %v3099
                %v3101 = vld [vmem:[%s3035 + $0x100] sm:$0xff]
                %3102 = vst [vmem:[%s3036 + $0x200] sm:$0xff] %v3101
                %v3103 = vld [vmem:[%s3035 + $0x108] sm:$0xff]
                %3104 = vst [vmem:[%s3036 + $0x208] sm:$0xff] %v3103
                %v3105 = vld [vmem:[%s3035 + $0x110] sm:$0xff]
                %3106 = vst [vmem:[%s3036 + $0x210] sm:$0xff] %v3105
                %v3107 = vld [vmem:[%s3035 + $0x118] sm:$0xff]
                %3108 = vst [vmem:[%s3036 + $0x218] sm:$0xff] %v3107
                %v3109 = vld [vmem:[%s3035 + $0x120] sm:$0xff]
                %3110 = vst [vmem:[%s3036 + $0x220] sm:$0xff] %v3109
                %v3111 = vld [vmem:[%s3035 + $0x128] sm:$0xff]
                %3112 = vst [vmem:[%s3036 + $0x228] sm:$0xff] %v3111
                %v3113 = vld [vmem:[%s3035 + $0x130] sm:$0xff]
                %3114 = vst [vmem:[%s3036 + $0x230] sm:$0xff] %v3113
                %v3115 = vld [vmem:[%s3035 + $0x138] sm:$0xff]
                %3116 = vst [vmem:[%s3036 + $0x238] sm:$0xff] %v3115
                %v3117 = vld [vmem:[%s3035 + $0x140] sm:$0xff]
                %3118 = vst [vmem:[%s3036 + $0x240] sm:$0xff] %v3117
                %v3119 = vld [vmem:[%s3035 + $0x148] sm:$0xff]
                %3120 = vst [vmem:[%s3036 + $0x248] sm:$0xff] %v3119
                %v3121 = vld [vmem:[%s3035 + $0x150] sm:$0xff]
                %3122 = vst [vmem:[%s3036 + $0x250] sm:$0xff] %v3121
                %v3123 = vld [vmem:[%s3035 + $0x158] sm:$0xff]
                %3124 = vst [vmem:[%s3036 + $0x258] sm:$0xff] %v3123
                %v3125 = vld [vmem:[%s3035 + $0x160] sm:$0xff]
                %3126 = vst [vmem:[%s3036 + $0x260] sm:$0xff] %v3125
                %v3127 = vld [vmem:[%s3035 + $0x168] sm:$0xff]
                %3128 = vst [vmem:[%s3036 + $0x268] sm:$0xff] %v3127
                %v3129 = vld [vmem:[%s3035 + $0x170] sm:$0xff]
                %3130 = vst [vmem:[%s3036 + $0x270] sm:$0xff] %v3129
                %v3131 = vld [vmem:[%s3035 + $0x178] sm:$0xff]
                %3132 = vst [vmem:[%s3036 + $0x278] sm:$0xff] %v3131
                %v3133 = vld [vmem:[%s3035 + $0x180] sm:$0xff]
                %3134 = vst [vmem:[%s3036 + $0x280] sm:$0xff] %v3133
                %v3135 = vld [vmem:[%s3035 + $0x188] sm:$0xff]
                %3136 = vst [vmem:[%s3036 + $0x288] sm:$0xff] %v3135
                %v3137 = vld [vmem:[%s3035 + $0x190] sm:$0xff]
                %3138 = vst [vmem:[%s3036 + $0x290] sm:$0xff] %v3137
                %v3139 = vld [vmem:[%s3035 + $0x198] sm:$0xff]
                %3140 = vst [vmem:[%s3036 + $0x298] sm:$0xff] %v3139
                %v3141 = vld [vmem:[%s3035 + $0x1a0] sm:$0xff]
                %3142 = vst [vmem:[%s3036 + $0x2a0] sm:$0xff] %v3141
                %v3143 = vld [vmem:[%s3035 + $0x1a8] sm:$0xff]
                %3144 = vst [vmem:[%s3036 + $0x2a8] sm:$0xff] %v3143
                %v3145 = vld [vmem:[%s3035 + $0x1b0] sm:$0xff]
                %3146 = vst [vmem:[%s3036 + $0x2b0] sm:$0xff] %v3145
                %v3147 = vld [vmem:[%s3035 + $0x1b8] sm:$0xff]
                %3148 = vst [vmem:[%s3036 + $0x2b8] sm:$0xff] %v3147
                %v3149 = vld [vmem:[%s3035 + $0x1c0] sm:$0xff]
                %3150 = vst [vmem:[%s3036 + $0x2c0] sm:$0xff] %v3149
                %v3151 = vld [vmem:[%s3035 + $0x1c8] sm:$0xff]
                %3152 = vst [vmem:[%s3036 + $0x2c8] sm:$0xff] %v3151
                %v3153 = vld [vmem:[%s3035 + $0x1d0] sm:$0xff]
                %3154 = vst [vmem:[%s3036 + $0x2d0] sm:$0xff] %v3153
                %v3155 = vld [vmem:[%s3035 + $0x1d8] sm:$0xff]
                %3156 = vst [vmem:[%s3036 + $0x2d8] sm:$0xff] %v3155
                %v3157 = vld [vmem:[%s3035 + $0x1e0] sm:$0xff]
                %3158 = vst [vmem:[%s3036 + $0x2e0] sm:$0xff] %v3157
                %v3159 = vld [vmem:[%s3035 + $0x1e8] sm:$0xff]
                %3160 = vst [vmem:[%s3036 + $0x2e8] sm:$0xff] %v3159
                %v3161 = vld [vmem:[%s3035 + $0x1f0] sm:$0xff]
                %3162 = vst [vmem:[%s3036 + $0x2f0] sm:$0xff] %v3161
                %v3163 = vld [vmem:[%s3035 + $0x1f8] sm:$0xff]
                %3164 = vst [vmem:[%s3036 + $0x2f8] sm:$0xff] %v3163
                %v3165 = vld [vmem:[%s3035 + $0x200] sm:$0xff]
                %3166 = vst [vmem:[%s3036 + $0x400] sm:$0xff] %v3165
                %v3167 = vld [vmem:[%s3035 + $0x208] sm:$0xff]
                %3168 = vst [vmem:[%s3036 + $0x408] sm:$0xff] %v3167
                %v3169 = vld [vmem:[%s3035 + $0x210] sm:$0xff]
                %3170 = vst [vmem:[%s3036 + $0x410] sm:$0xff] %v3169
                %v3171 = vld [vmem:[%s3035 + $0x218] sm:$0xff]
                %3172 = vst [vmem:[%s3036 + $0x418] sm:$0xff] %v3171
                %v3173 = vld [vmem:[%s3035 + $0x220] sm:$0xff]
                %3174 = vst [vmem:[%s3036 + $0x420] sm:$0xff] %v3173
                %v3175 = vld [vmem:[%s3035 + $0x228] sm:$0xff]
                %3176 = vst [vmem:[%s3036 + $0x428] sm:$0xff] %v3175
                %v3177 = vld [vmem:[%s3035 + $0x230] sm:$0xff]
                %3178 = vst [vmem:[%s3036 + $0x430] sm:$0xff] %v3177
                %v3179 = vld [vmem:[%s3035 + $0x238] sm:$0xff]
                %3180 = vst [vmem:[%s3036 + $0x438] sm:$0xff] %v3179
                %v3181 = vld [vmem:[%s3035 + $0x240] sm:$0xff]
                %3182 = vst [vmem:[%s3036 + $0x440] sm:$0xff] %v3181
                %v3183 = vld [vmem:[%s3035 + $0x248] sm:$0xff]
                %3184 = vst [vmem:[%s3036 + $0x448] sm:$0xff] %v3183
                %v3185 = vld [vmem:[%s3035 + $0x250] sm:$0xff]
                %3186 = vst [vmem:[%s3036 + $0x450] sm:$0xff] %v3185
                %v3187 = vld [vmem:[%s3035 + $0x258] sm:$0xff]
                %3188 = vst [vmem:[%s3036 + $0x458] sm:$0xff] %v3187
                %v3189 = vld [vmem:[%s3035 + $0x260] sm:$0xff]
                %3190 = vst [vmem:[%s3036 + $0x460] sm:$0xff] %v3189
                %v3191 = vld [vmem:[%s3035 + $0x268] sm:$0xff]
                %3192 = vst [vmem:[%s3036 + $0x468] sm:$0xff] %v3191
                %v3193 = vld [vmem:[%s3035 + $0x270] sm:$0xff]
                %3194 = vst [vmem:[%s3036 + $0x470] sm:$0xff] %v3193
                %v3195 = vld [vmem:[%s3035 + $0x278] sm:$0xff]
                %3196 = vst [vmem:[%s3036 + $0x478] sm:$0xff] %v3195
                %v3197 = vld [vmem:[%s3035 + $0x280] sm:$0xff]
                %3198 = vst [vmem:[%s3036 + $0x480] sm:$0xff] %v3197
                %v3199 = vld [vmem:[%s3035 + $0x288] sm:$0xff]
                %3200 = vst [vmem:[%s3036 + $0x488] sm:$0xff] %v3199
                %v3201 = vld [vmem:[%s3035 + $0x290] sm:$0xff]
                %3202 = vst [vmem:[%s3036 + $0x490] sm:$0xff] %v3201
                %v3203 = vld [vmem:[%s3035 + $0x298] sm:$0xff]
                %3204 = vst [vmem:[%s3036 + $0x498] sm:$0xff] %v3203
                %v3205 = vld [vmem:[%s3035 + $0x2a0] sm:$0xff]
                %3206 = vst [vmem:[%s3036 + $0x4a0] sm:$0xff] %v3205
                %v3207 = vld [vmem:[%s3035 + $0x2a8] sm:$0xff]
                %3208 = vst [vmem:[%s3036 + $0x4a8] sm:$0xff] %v3207
                %v3209 = vld [vmem:[%s3035 + $0x2b0] sm:$0xff]
                %3210 = vst [vmem:[%s3036 + $0x4b0] sm:$0xff] %v3209
                %v3211 = vld [vmem:[%s3035 + $0x2b8] sm:$0xff]
                %3212 = vst [vmem:[%s3036 + $0x4b8] sm:$0xff] %v3211
                %v3213 = vld [vmem:[%s3035 + $0x2c0] sm:$0xff]
                %3214 = vst [vmem:[%s3036 + $0x4c0] sm:$0xff] %v3213
                %v3215 = vld [vmem:[%s3035 + $0x2c8] sm:$0xff]
                %3216 = vst [vmem:[%s3036 + $0x4c8] sm:$0xff] %v3215
                %v3217 = vld [vmem:[%s3035 + $0x2d0] sm:$0xff]
                %3218 = vst [vmem:[%s3036 + $0x4d0] sm:$0xff] %v3217
                %v3219 = vld [vmem:[%s3035 + $0x2d8] sm:$0xff]
                %3220 = vst [vmem:[%s3036 + $0x4d8] sm:$0xff] %v3219
                %v3221 = vld [vmem:[%s3035 + $0x2e0] sm:$0xff]
                %3222 = vst [vmem:[%s3036 + $0x4e0] sm:$0xff] %v3221
                %v3223 = vld [vmem:[%s3035 + $0x2e8] sm:$0xff]
                %3224 = vst [vmem:[%s3036 + $0x4e8] sm:$0xff] %v3223
                %v3225 = vld [vmem:[%s3035 + $0x2f0] sm:$0xff]
                %3226 = vst [vmem:[%s3036 + $0x4f0] sm:$0xff] %v3225
                %v3227 = vld [vmem:[%s3035 + $0x2f8] sm:$0xff]
                %3228 = vst [vmem:[%s3036 + $0x4f8] sm:$0xff] %v3227
                %v3229 = vld [vmem:[%s3035 + $0x300] sm:$0xff]
                %3230 = vst [vmem:[%s3036 + $0x600] sm:$0xff] %v3229
                %v3231 = vld [vmem:[%s3035 + $0x308] sm:$0xff]
                %3232 = vst [vmem:[%s3036 + $0x608] sm:$0xff] %v3231
                %v3233 = vld [vmem:[%s3035 + $0x310] sm:$0xff]
                %3234 = vst [vmem:[%s3036 + $0x610] sm:$0xff] %v3233
                %v3235 = vld [vmem:[%s3035 + $0x318] sm:$0xff]
                %3236 = vst [vmem:[%s3036 + $0x618] sm:$0xff] %v3235
                %v3237 = vld [vmem:[%s3035 + $0x320] sm:$0xff]
                %3238 = vst [vmem:[%s3036 + $0x620] sm:$0xff] %v3237
                %v3239 = vld [vmem:[%s3035 + $0x328] sm:$0xff]
                %3240 = vst [vmem:[%s3036 + $0x628] sm:$0xff] %v3239
                %v3241 = vld [vmem:[%s3035 + $0x330] sm:$0xff]
                %3242 = vst [vmem:[%s3036 + $0x630] sm:$0xff] %v3241
                %v3243 = vld [vmem:[%s3035 + $0x338] sm:$0xff]
                %3244 = vst [vmem:[%s3036 + $0x638] sm:$0xff] %v3243
                %v3245 = vld [vmem:[%s3035 + $0x340] sm:$0xff]
                %3246 = vst [vmem:[%s3036 + $0x640] sm:$0xff] %v3245
                %v3247 = vld [vmem:[%s3035 + $0x348] sm:$0xff]
                %3248 = vst [vmem:[%s3036 + $0x648] sm:$0xff] %v3247
                %v3249 = vld [vmem:[%s3035 + $0x350] sm:$0xff]
                %3250 = vst [vmem:[%s3036 + $0x650] sm:$0xff] %v3249
                %v3251 = vld [vmem:[%s3035 + $0x358] sm:$0xff]
                %3252 = vst [vmem:[%s3036 + $0x658] sm:$0xff] %v3251
                %v3253 = vld [vmem:[%s3035 + $0x360] sm:$0xff]
                %3254 = vst [vmem:[%s3036 + $0x660] sm:$0xff] %v3253
                %v3255 = vld [vmem:[%s3035 + $0x368] sm:$0xff]
                %3256 = vst [vmem:[%s3036 + $0x668] sm:$0xff] %v3255
                %v3257 = vld [vmem:[%s3035 + $0x370] sm:$0xff]
                %3258 = vst [vmem:[%s3036 + $0x670] sm:$0xff] %v3257
                %v3259 = vld [vmem:[%s3035 + $0x378] sm:$0xff]
                %3260 = vst [vmem:[%s3036 + $0x678] sm:$0xff] %v3259
                %v3261 = vld [vmem:[%s3035 + $0x380] sm:$0xff]
                %3262 = vst [vmem:[%s3036 + $0x680] sm:$0xff] %v3261
                %v3263 = vld [vmem:[%s3035 + $0x388] sm:$0xff]
                %3264 = vst [vmem:[%s3036 + $0x688] sm:$0xff] %v3263
                %v3265 = vld [vmem:[%s3035 + $0x390] sm:$0xff]
                %3266 = vst [vmem:[%s3036 + $0x690] sm:$0xff] %v3265
                %v3267 = vld [vmem:[%s3035 + $0x398] sm:$0xff]
                %3268 = vst [vmem:[%s3036 + $0x698] sm:$0xff] %v3267
                %v3269 = vld [vmem:[%s3035 + $0x3a0] sm:$0xff]
                %3270 = vst [vmem:[%s3036 + $0x6a0] sm:$0xff] %v3269
                %v3271 = vld [vmem:[%s3035 + $0x3a8] sm:$0xff]
                %3272 = vst [vmem:[%s3036 + $0x6a8] sm:$0xff] %v3271
                %v3273 = vld [vmem:[%s3035 + $0x3b0] sm:$0xff]
                %3274 = vst [vmem:[%s3036 + $0x6b0] sm:$0xff] %v3273
                %v3275 = vld [vmem:[%s3035 + $0x3b8] sm:$0xff]
                %3276 = vst [vmem:[%s3036 + $0x6b8] sm:$0xff] %v3275
                %v3277 = vld [vmem:[%s3035 + $0x3c0] sm:$0xff]
                %3278 = vst [vmem:[%s3036 + $0x6c0] sm:$0xff] %v3277
                %v3279 = vld [vmem:[%s3035 + $0x3c8] sm:$0xff]
                %3280 = vst [vmem:[%s3036 + $0x6c8] sm:$0xff] %v3279
                %v3281 = vld [vmem:[%s3035 + $0x3d0] sm:$0xff]
                %3282 = vst [vmem:[%s3036 + $0x6d0] sm:$0xff] %v3281
                %v3283 = vld [vmem:[%s3035 + $0x3d8] sm:$0xff]
                %3284 = vst [vmem:[%s3036 + $0x6d8] sm:$0xff] %v3283
                %v3285 = vld [vmem:[%s3035 + $0x3e0] sm:$0xff]
                %3286 = vst [vmem:[%s3036 + $0x6e0] sm:$0xff] %v3285
                %v3287 = vld [vmem:[%s3035 + $0x3e8] sm:$0xff]
                %3288 = vst [vmem:[%s3036 + $0x6e8] sm:$0xff] %v3287
                %v3289 = vld [vmem:[%s3035 + $0x3f0] sm:$0xff]
                %3290 = vst [vmem:[%s3036 + $0x6f0] sm:$0xff] %v3289
                %v3291 = vld [vmem:[%s3035 + $0x3f8] sm:$0xff]
                %3292 = vst [vmem:[%s3036 + $0x6f8] sm:$0xff] %v3291
                %v3293 = vld [vmem:[%s3035 + $0x400] sm:$0xff]
                %3294 = vst [vmem:[%s3036 + $0x800] sm:$0xff] %v3293
                %v3295 = vld [vmem:[%s3035 + $0x408] sm:$0xff]
                %3296 = vst [vmem:[%s3036 + $0x808] sm:$0xff] %v3295
                %v3297 = vld [vmem:[%s3035 + $0x410] sm:$0xff]
                %3298 = vst [vmem:[%s3036 + $0x810] sm:$0xff] %v3297
                %v3299 = vld [vmem:[%s3035 + $0x418] sm:$0xff]
                %3300 = vst [vmem:[%s3036 + $0x818] sm:$0xff] %v3299
                %v3301 = vld [vmem:[%s3035 + $0x420] sm:$0xff]
                %3302 = vst [vmem:[%s3036 + $0x820] sm:$0xff] %v3301
                %v3303 = vld [vmem:[%s3035 + $0x428] sm:$0xff]
                %3304 = vst [vmem:[%s3036 + $0x828] sm:$0xff] %v3303
                %v3305 = vld [vmem:[%s3035 + $0x430] sm:$0xff]
                %3306 = vst [vmem:[%s3036 + $0x830] sm:$0xff] %v3305
                %v3307 = vld [vmem:[%s3035 + $0x438] sm:$0xff]
                %3308 = vst [vmem:[%s3036 + $0x838] sm:$0xff] %v3307
                %v3309 = vld [vmem:[%s3035 + $0x440] sm:$0xff]
                %3310 = vst [vmem:[%s3036 + $0x840] sm:$0xff] %v3309
                %v3311 = vld [vmem:[%s3035 + $0x448] sm:$0xff]
                %3312 = vst [vmem:[%s3036 + $0x848] sm:$0xff] %v3311
                %v3313 = vld [vmem:[%s3035 + $0x450] sm:$0xff]
                %3314 = vst [vmem:[%s3036 + $0x850] sm:$0xff] %v3313
                %v3315 = vld [vmem:[%s3035 + $0x458] sm:$0xff]
                %3316 = vst [vmem:[%s3036 + $0x858] sm:$0xff] %v3315
                %v3317 = vld [vmem:[%s3035 + $0x460] sm:$0xff]
                %3318 = vst [vmem:[%s3036 + $0x860] sm:$0xff] %v3317
                %v3319 = vld [vmem:[%s3035 + $0x468] sm:$0xff]
                %3320 = vst [vmem:[%s3036 + $0x868] sm:$0xff] %v3319
                %v3321 = vld [vmem:[%s3035 + $0x470] sm:$0xff]
                %3322 = vst [vmem:[%s3036 + $0x870] sm:$0xff] %v3321
                %v3323 = vld [vmem:[%s3035 + $0x478] sm:$0xff]
                %3324 = vst [vmem:[%s3036 + $0x878] sm:$0xff] %v3323
                %v3325 = vld [vmem:[%s3035 + $0x480] sm:$0xff]
                %3326 = vst [vmem:[%s3036 + $0x880] sm:$0xff] %v3325
                %v3327 = vld [vmem:[%s3035 + $0x488] sm:$0xff]
                %3328 = vst [vmem:[%s3036 + $0x888] sm:$0xff] %v3327
                %v3329 = vld [vmem:[%s3035 + $0x490] sm:$0xff]
                %3330 = vst [vmem:[%s3036 + $0x890] sm:$0xff] %v3329
                %v3331 = vld [vmem:[%s3035 + $0x498] sm:$0xff]
                %3332 = vst [vmem:[%s3036 + $0x898] sm:$0xff] %v3331
                %v3333 = vld [vmem:[%s3035 + $0x4a0] sm:$0xff]
                %3334 = vst [vmem:[%s3036 + $0x8a0] sm:$0xff] %v3333
                %v3335 = vld [vmem:[%s3035 + $0x4a8] sm:$0xff]
                %3336 = vst [vmem:[%s3036 + $0x8a8] sm:$0xff] %v3335
                %v3337 = vld [vmem:[%s3035 + $0x4b0] sm:$0xff]
                %3338 = vst [vmem:[%s3036 + $0x8b0] sm:$0xff] %v3337
                %v3339 = vld [vmem:[%s3035 + $0x4b8] sm:$0xff]
                %3340 = vst [vmem:[%s3036 + $0x8b8] sm:$0xff] %v3339
                %v3341 = vld [vmem:[%s3035 + $0x4c0] sm:$0xff]
                %3342 = vst [vmem:[%s3036 + $0x8c0] sm:$0xff] %v3341
                %v3343 = vld [vmem:[%s3035 + $0x4c8] sm:$0xff]
                %3344 = vst [vmem:[%s3036 + $0x8c8] sm:$0xff] %v3343
                %v3345 = vld [vmem:[%s3035 + $0x4d0] sm:$0xff]
                %3346 = vst [vmem:[%s3036 + $0x8d0] sm:$0xff] %v3345
                %v3347 = vld [vmem:[%s3035 + $0x4d8] sm:$0xff]
                %3348 = vst [vmem:[%s3036 + $0x8d8] sm:$0xff] %v3347
                %v3349 = vld [vmem:[%s3035 + $0x4e0] sm:$0xff]
                %3350 = vst [vmem:[%s3036 + $0x8e0] sm:$0xff] %v3349
                %v3351 = vld [vmem:[%s3035 + $0x4e8] sm:$0xff]
                %3352 = vst [vmem:[%s3036 + $0x8e8] sm:$0xff] %v3351
                %v3353 = vld [vmem:[%s3035 + $0x4f0] sm:$0xff]
                %3354 = vst [vmem:[%s3036 + $0x8f0] sm:$0xff] %v3353
                %v3355 = vld [vmem:[%s3035 + $0x4f8] sm:$0xff]
                %3356 = vst [vmem:[%s3036 + $0x8f8] sm:$0xff] %v3355
                %v3357 = vld [vmem:[%s3035 + $0x500] sm:$0xff]
                %3358 = vst [vmem:[%s3036 + $0xa00] sm:$0xff] %v3357
                %v3359 = vld [vmem:[%s3035 + $0x508] sm:$0xff]
                %3360 = vst [vmem:[%s3036 + $0xa08] sm:$0xff] %v3359
                %v3361 = vld [vmem:[%s3035 + $0x510] sm:$0xff]
                %3362 = vst [vmem:[%s3036 + $0xa10] sm:$0xff] %v3361
                %v3363 = vld [vmem:[%s3035 + $0x518] sm:$0xff]
                %3364 = vst [vmem:[%s3036 + $0xa18] sm:$0xff] %v3363
                %v3365 = vld [vmem:[%s3035 + $0x520] sm:$0xff]
                %3366 = vst [vmem:[%s3036 + $0xa20] sm:$0xff] %v3365
                %v3367 = vld [vmem:[%s3035 + $0x528] sm:$0xff]
                %3368 = vst [vmem:[%s3036 + $0xa28] sm:$0xff] %v3367
                %v3369 = vld [vmem:[%s3035 + $0x530] sm:$0xff]
                %3370 = vst [vmem:[%s3036 + $0xa30] sm:$0xff] %v3369
                %v3371 = vld [vmem:[%s3035 + $0x538] sm:$0xff]
                %3372 = vst [vmem:[%s3036 + $0xa38] sm:$0xff] %v3371
                %v3373 = vld [vmem:[%s3035 + $0x540] sm:$0xff]
                %3374 = vst [vmem:[%s3036 + $0xa40] sm:$0xff] %v3373
                %v3375 = vld [vmem:[%s3035 + $0x548] sm:$0xff]
                %3376 = vst [vmem:[%s3036 + $0xa48] sm:$0xff] %v3375
                %v3377 = vld [vmem:[%s3035 + $0x550] sm:$0xff]
                %3378 = vst [vmem:[%s3036 + $0xa50] sm:$0xff] %v3377
                %v3379 = vld [vmem:[%s3035 + $0x558] sm:$0xff]
                %3380 = vst [vmem:[%s3036 + $0xa58] sm:$0xff] %v3379
                %v3381 = vld [vmem:[%s3035 + $0x560] sm:$0xff]
                %3382 = vst [vmem:[%s3036 + $0xa60] sm:$0xff] %v3381
                %v3383 = vld [vmem:[%s3035 + $0x568] sm:$0xff]
                %3384 = vst [vmem:[%s3036 + $0xa68] sm:$0xff] %v3383
                %v3385 = vld [vmem:[%s3035 + $0x570] sm:$0xff]
                %3386 = vst [vmem:[%s3036 + $0xa70] sm:$0xff] %v3385
                %v3387 = vld [vmem:[%s3035 + $0x578] sm:$0xff]
                %3388 = vst [vmem:[%s3036 + $0xa78] sm:$0xff] %v3387
                %v3389 = vld [vmem:[%s3035 + $0x580] sm:$0xff]
                %3390 = vst [vmem:[%s3036 + $0xa80] sm:$0xff] %v3389
                %v3391 = vld [vmem:[%s3035 + $0x588] sm:$0xff]
                %3392 = vst [vmem:[%s3036 + $0xa88] sm:$0xff] %v3391
                %v3393 = vld [vmem:[%s3035 + $0x590] sm:$0xff]
                %3394 = vst [vmem:[%s3036 + $0xa90] sm:$0xff] %v3393
                %v3395 = vld [vmem:[%s3035 + $0x598] sm:$0xff]
                %3396 = vst [vmem:[%s3036 + $0xa98] sm:$0xff] %v3395
                %v3397 = vld [vmem:[%s3035 + $0x5a0] sm:$0xff]
                %3398 = vst [vmem:[%s3036 + $0xaa0] sm:$0xff] %v3397
                %v3399 = vld [vmem:[%s3035 + $0x5a8] sm:$0xff]
                %3400 = vst [vmem:[%s3036 + $0xaa8] sm:$0xff] %v3399
                %v3401 = vld [vmem:[%s3035 + $0x5b0] sm:$0xff]
                %3402 = vst [vmem:[%s3036 + $0xab0] sm:$0xff] %v3401
                %v3403 = vld [vmem:[%s3035 + $0x5b8] sm:$0xff]
                %3404 = vst [vmem:[%s3036 + $0xab8] sm:$0xff] %v3403
                %v3405 = vld [vmem:[%s3035 + $0x5c0] sm:$0xff]
                %3406 = vst [vmem:[%s3036 + $0xac0] sm:$0xff] %v3405
                %v3407 = vld [vmem:[%s3035 + $0x5c8] sm:$0xff]
                %3408 = vst [vmem:[%s3036 + $0xac8] sm:$0xff] %v3407
                %v3409 = vld [vmem:[%s3035 + $0x5d0] sm:$0xff]
                %3410 = vst [vmem:[%s3036 + $0xad0] sm:$0xff] %v3409
                %v3411 = vld [vmem:[%s3035 + $0x5d8] sm:$0xff]
                %3412 = vst [vmem:[%s3036 + $0xad8] sm:$0xff] %v3411
                %v3413 = vld [vmem:[%s3035 + $0x5e0] sm:$0xff]
                %3414 = vst [vmem:[%s3036 + $0xae0] sm:$0xff] %v3413
                %v3415 = vld [vmem:[%s3035 + $0x5e8] sm:$0xff]
                %3416 = vst [vmem:[%s3036 + $0xae8] sm:$0xff] %v3415
                %v3417 = vld [vmem:[%s3035 + $0x5f0] sm:$0xff]
                %3418 = vst [vmem:[%s3036 + $0xaf0] sm:$0xff] %v3417
                %v3419 = vld [vmem:[%s3035 + $0x5f8] sm:$0xff]
                %3420 = vst [vmem:[%s3036 + $0xaf8] sm:$0xff] %v3419
              $region69: #{feature_extractor_forward.1} parent=63 // loop_footer
                %s3034 = sadd.s32 1, %s3030
              $region70: #{feature_extractor_forward.1} parent=63 // loop_footer_branch
                %3029 = sbr.rel target = $region66
              $region71: #{feature_extractor_forward.1} parent=63 // loop_exit
                _
            $region64: #{feature_extractor_forward.1} parent=55 // pred_fallthru
              _
          $region56: #{feature_extractor_forward.1} parent=51 // pred_fallthru
            _
          %3817 = vnop
        $region52: #{feature_extractor_forward.1} parent=47 // pred_fallthru
          _
      $region48: #{feature_extractor_forward.1} parent=5 // pred_fallthru
        _
      %p3818 = scmp.le.s32.totalorder 2, %s13
      // Predicated region
      $region87: #{feature_extractor_forward.1} parent=5 // pred_check
        %p3819 = pneg %p3818
      $region88: #{feature_extractor_forward.1} parent=5 // pred_check_branch
        %3821 = sbr.rel (%p3819) target = $region90
      $region89: #{feature_extractor_forward.1} parent=5 // pred_region
        %s3822 = ssub.s32 %s13, 2
        // Predicated region
        $region91: #{feature_extractor_forward.1} parent=89 // pred_check
          %p3823 = pneg %p194
        $region92: #{feature_extractor_forward.1} parent=89 // pred_check_branch
          %3825 = sbr.rel (%p3823) target = $region94
        $region93: #{feature_extractor_forward.1} parent=89 // pred_region
          %s3826 = sand.u32 %s179, 1
          %s3827 = sand.u32 %s179, 1
          %s3828 = smul.addr %s3827, 1536
          %s3829 = scalar_lea.vmem [#allocation2], %s3828
        $region94: #{feature_extractor_forward.1} parent=89 // pred_fallthru
          _
      $region90: #{feature_extractor_forward.1} parent=5 // pred_fallthru
        _
    $region6: #{feature_extractor_forward.1} parent=1 // loop_footer
      %s17 = sadd.s32 1, %s13
    $region7: #{feature_extractor_forward.1} parent=1 // loop_footer_branch
      %12 = sbr.rel target = $region3
    $region8: #{feature_extractor_forward.1} parent=1 // loop_exit
      _

</llo_original>
